<compile_context>
chip_gen: v7x
topology: tpu7x:2x2x1
jax: 0.10.0
libtpu: 0.0.40
codegen_flags: <defaults>
</compile_context>

<pallas_src>
import functools

import jax
import jax.numpy as jnp
from jax.experimental import pallas as pl
from jax.experimental.pallas import tpu as pltpu


def _cdiv(a, b):
    return (a + b - 1) // b


def _round_up(x, m):
    return _cdiv(x, m) * m


def _polyphase_taps(k_size, stride, padding, dilation):
    """Per output phase r = o % stride: tap indices K_r and input offsets.

    Transposed-conv scatter relation (1-D): o = i*stride - padding + k*dilation.
    For outputs o = r + m*stride the contributing taps are
        K_r = {k : (r + padding - k*dilation) % stride == 0}
    with input index i = m + off(r, k),  off = (r + padding - k*dilation)//stride.
    """
    taps, offs = [], []
    for r in range(stride):
        ks, os_ = [], []
        for k in range(k_size):
            num = r + padding - k * dilation
            if num % stride == 0:
                ks.append(k)
                os_.append(num // stride)
        taps.append(ks)
        offs.append(os_)
    return taps, offs


def _cconvt_poly_kernel(x_ref, w_ref, b_ref, o_ref, patch_ref, *,
                        phases, tile_rows, wo_pp, cin2, cout2):
    # x_ref:     (Hp, Wp, 2*Cin)   bf16 un-stuffed, edge-padded sample (resident)
    # w_ref:     (kH*kW*2*Cin, 2*Cout) bf16, per-phase weight segments stacked on K
    # b_ref:     (1, 2*Cout)       f32 combined complex bias
    # o_ref:     (n_phase, tile_rows, Wo_pp, 2*Cout) f32 phase-major output tile
    # patch_ref: (tile_rows*Wo_pp, max_taps*2*Cin) bf16 im2col scratch (reused)
    j = pl.program_id(1)
    row0 = pl.multiple_of(j * tile_rows, 8)
    m = tile_rows * wo_pp
    bias = b_ref[...]                                   # (1, 2*Cout) f32

    for ph, (row_offs, col_offs, w_start) in enumerate(phases):
        n_taps = len(row_offs) * len(col_offs)
        if n_taps == 0:
            # Phase receives no taps (possible when gcd(dilation, stride) > 1):
            # output is just the bias.
            o_ref[ph] = jnp.broadcast_to(bias.reshape(1, 1, cout2),
                                         (tile_rows, wo_pp, cout2))
            continue

        # Assemble the im2col patch for this phase: one group of 2*Cin channels
        # per real tap, so a single MXU contraction sees K = n_taps*2*Cin.
        t = 0
        for ro in row_offs:                 # static unroll: <= ceil(kH/s) taps
            for co in col_offs:             # static unroll: <= ceil(kW/s) taps
                win = x_ref[pl.ds(row0 + ro, tile_rows), pl.ds(co, wo_pp), :]
                patch_ref[:, pl.ds(t * cin2, cin2)] = win.reshape(m, cin2)
                t += 1

        ksz = n_taps * cin2
        acc = jnp.dot(patch_ref[:, pl.ds(0, ksz)],
                      w_ref[pl.ds(w_start, ksz), :],
                      preferred_element_type=jnp.float32)
        acc = acc + bias                                  # (m, 2*Cout) f32
        o_ref[ph] = acc.reshape(tile_rows, wo_pp, cout2)


def complex_conv_transpose_2d(x, w_re, w_im, b_re, b_im, *,
                              stride=1, padding=0, output_padding=0, dilation=1):
    """x: [N, 2, Cin, H, W]; w_*: [Cin, Cout, kH, kW] (PyTorch ConvTranspose2d
    layout); b_*: [Cout].  Returns [N, 2, Cout, Ho, Wo] float32."""
    N, P, Cin, H, W = x.shape
    assert P == 2
    Cin_w, Cout, kH, kW = w_re.shape
    assert Cin_w == Cin and w_im.shape == w_re.shape
    for v in (stride, padding, output_padding, dilation):
        assert isinstance(v, int)
    s, p, op, d = stride, padding, output_padding, dilation
    assert s >= 1 and d >= 1 and p >= 0 and 0 <= op < max(s, d)
    # TODO(synk): groups != 1 and per-axis (tuple) stride/padding/dilation not implemented.

    Ho = (H - 1) * s - 2 * p + d * (kH - 1) + op + 1
    Wo = (W - 1) * s - 2 * p + d * (kW - 1) + op + 1
    assert Ho > 0 and Wo > 0
    Cin2, Cout2 = 2 * Cin, 2 * Cout
    n_phase = s * s

    # ---- fold complex arithmetic into one conv with stacked channels ---------
    # Scatter (tconv) orientation: no spatial flip, the polyphase offsets below
    # use the scatter relation directly.
    wr = jnp.transpose(w_re, (2, 3, 0, 1)).astype(jnp.float32)  # (kH,kW,Cin,Cout)
    wi = jnp.transpose(w_im, (2, 3, 0, 1)).astype(jnp.float32)
    w_comb = jnp.concatenate(
        [jnp.concatenate([wr, wi], axis=-1),      # rows: x_re contribution
         jnp.concatenate([-wi, wr], axis=-1)],    # rows: x_im contribution
        axis=2)                                   # (kH, kW, 2Cin, 2Cout)
    b_comb = jnp.concatenate([b_re - b_im, b_re + b_im]).astype(jnp.float32)
    b_comb = b_comb.reshape(1, Cout2)

    # ---- polyphase metadata (static python) ----------------------------------
    taps_h, offs_h = _polyphase_taps(kH, s, p, d)
    taps_w, offs_w = _polyphase_taps(kW, s, p, d)
    all_off_h = [o for lst in offs_h for o in lst]
    all_off_w = [o for lst in offs_w for o in lst]
    padl_h = max(0, -min(all_off_h))
    padl_w = max(0, -min(all_off_w))
    max_off_h = max(max(all_off_h), 0)
    max_off_w = max(max(all_off_w), 0)

    # Per-phase output extents and row tiling.
    ho_pp = _cdiv(Ho, s)                    # per-phase rows needed (max over phases)
    wo_pp = _round_up(_cdiv(Wo, s), 8)      # mult of 8 -> free reshapes in-kernel

    target_m = 1024                         # rows per MXU call
    tile_rows = min(_round_up(ho_pp, 8),
                    max(8, _round_up(_cdiv(target_m, wo_pp), 8)))

    def vmem_estimate(t):
        hpp = _round_up(ho_pp, t)
        hp = padl_h + max(H, hpp + max_off_h)
        wp = padl_w + max(W, wo_pp + max_off_w)
        mm = t * wo_pp
        x_bytes = 2 * hp * wp * Cin2 * 2            # double-buffered bf16 sample
        o_bytes = 2 * n_phase * mm * Cout2 * 4      # double-buffered f32 out block
        w_bytes = 2 * kH * kW * Cin2 * Cout2 * 2
        tmp = 2 * mm * kH * kW * Cin2 * 2 + mm * Cout2 * 4   # patch + acc
        return x_bytes + o_bytes + w_bytes + tmp

    while tile_rows > 8 and vmem_estimate(tile_rows) > 24 * 1024 * 1024:
        tile_rows -= 8
    n_row_tiles = _cdiv(ho_pp, tile_rows)
    ho_pp_pad = n_row_tiles * tile_rows

    Hp = padl_h + max(H, ho_pp_pad + max_off_h)
    Wp = padl_w + max(W, wo_pp + max_off_w)

    # ---- layout: NCHW(complex) -> NHWC stacked channels, bf16, edge-padded ---
    x_nhwc = jnp.transpose(x.reshape(N, Cin2, H, W), (0, 2, 3, 1))
    x_pad = jnp.pad(x_nhwc.astype(jnp.bfloat16),
                    ((0, 0),
                     (padl_h, Hp - padl_h - H),
                     (padl_w, Wp - padl_w - W),
                     (0, 0)))

    # ---- per-phase weight segments stacked along K ----------------------------
    phases, segs = [], []
    w_start = 0
    for rh in range(s):
        for rw in range(s):
            t_h, t_w = len(taps_h[rh]), len(taps_w[rw])
            row_offs = tuple(o + padl_h for o in offs_h[rh])
            col_offs = tuple(o + padl_w for o in offs_w[rw])
            phases.append((row_offs, col_offs, w_start))
            if t_h == 0 or t_w == 0:
                continue
            seg = w_comb[jnp.asarray(taps_h[rh]), :, :, :]
            seg = seg[:, jnp.asarray(taps_w[rw]), :, :]      # (Th, Tw, 2Cin, 2Cout)
            segs.append(seg.reshape(t_h * t_w * Cin2, Cout2))
            w_start += t_h * t_w * Cin2
    w_all = jnp.concatenate(segs, axis=0).astype(jnp.bfloat16)   # (kH*kW*2Cin, 2Cout)
    K_total = int(w_all.shape[0])
    max_taps = max(len(r) * len(c) for r, c, _ in phases)
    max_k = max(1, max_taps) * Cin2

    kernel = functools.partial(
        _cconvt_poly_kernel,
        phases=tuple(phases), tile_rows=tile_rows, wo_pp=wo_pp,
        cin2=Cin2, cout2=Cout2)

    flops = 2 * N * H * W * kH * kW * Cin2 * Cout2
    bytes_accessed = int(x_pad.size * 2 + w_all.size * 2 + b_comb.size * 4
                         + N * n_phase * ho_pp_pad * wo_pp * Cout2 * 4)
    # Raise the scoped-VMEM cap (32 MiB default) but stay under v7x's 64 MiB.
    vmem_lim = int(min(48 * 1024 * 1024,
                       max(32 * 1024 * 1024, 2 * vmem_estimate(tile_rows))))

    out_poly = pl.pallas_call(
        kernel,
        out_shape=jax.ShapeDtypeStruct((N, n_phase, ho_pp_pad, wo_pp, Cout2),
                                       jnp.float32),
        grid_spec=pltpu.PrefetchScalarGridSpec(
            num_scalar_prefetch=0,
            grid=(N, n_row_tiles),
            in_specs=[
                # un-stuffed bf16 sample, resident & revisited across j
                pl.BlockSpec((None, Hp, Wp, Cin2), lambda n, j: (n, 0, 0, 0)),
                # all-phase weights + bias, tiny constant blocks
                pl.BlockSpec((K_total, Cout2), lambda n, j: (0, 0)),
                pl.BlockSpec((1, Cout2), lambda n, j: (0, 0)),
            ],
            out_specs=pl.BlockSpec((None, n_phase, tile_rows, wo_pp, Cout2),
                                   lambda n, j: (n, 0, j, 0, 0)),
            scratch_shapes=[pltpu.VMEM((tile_rows * wo_pp, max_k), jnp.bfloat16)],
        ),
        compiler_params=pltpu.CompilerParams(
            dimension_semantics=("parallel", "parallel"),
            vmem_limit_bytes=vmem_lim),
        cost_estimate=pl.CostEstimate(flops=flops, transcendentals=0,
                                      bytes_accessed=bytes_accessed),
    )(x_pad, w_all, b_comb)

    # Phase-major -> interleaved NCHW; this transpose replaces the NHWC->NCHW
    # transpose the dense version needed anyway, so the interleave is ~free.
    out = out_poly.reshape(N, s, s, ho_pp_pad, wo_pp, Cout2)
    out = jnp.transpose(out, (0, 5, 3, 1, 4, 2))      # N, 2Cout, m_h, r_h, m_w, r_w
    out = out.reshape(N, Cout2, ho_pp_pad * s, wo_pp * s)[:, :, :Ho, :Wo]
    return out.reshape(N, 2, Cout, Ho, Wo)


# ----------------------------- pure-JAX reference ----------------------------
def _tconv2d_ref(x, w, b, s, p, op, d):
    """Direct scatter-add reference of torch.nn.ConvTranspose2d (groups=1)."""
    N, Cin, H, W = x.shape
    _, Cout, kH, kW = w.shape
    Ho = (H - 1) * s - 2 * p + d * (kH - 1) + op + 1
    Wo = (W - 1) * s - 2 * p + d * (kW - 1) + op + 1
    Hf = (H - 1) * s + d * (kH - 1) + 1
    Wf = (W - 1) * s + d * (kW - 1) + 1
    out = jnp.zeros((N, Cout, Hf, Wf), jnp.float32)
    for kh in range(kH):
        for kw in range(kW):
            contrib = jnp.einsum('nihw,io->nohw', x, w[:, :, kh, kw])
            out = out.at[:, :, kh * d:kh * d + (H - 1) * s + 1:s,
                               kw * d:kw * d + (W - 1) * s + 1:s].add(contrib)
    out = jnp.pad(out, ((0, 0), (0, 0),
                        (0, max(0, p + Ho - Hf)), (0, max(0, p + Wo - Wf))))
    out = out[:, :, p:p + Ho, p:p + Wo]
    return out + b.reshape(1, Cout, 1, 1)


def _reference(x, w_re, w_im, b_re, b_im, s, p, op, d):
    xr, xi = x[:, 0], x[:, 1]
    real = (_tconv2d_ref(xr, w_re, b_re, s, p, op, d)
            - _tconv2d_ref(xi, w_im, b_im, s, p, op, d))
    imag = (_tconv2d_ref(xi, w_re, b_re, s, p, op, d)
            + _tconv2d_ref(xr, w_im, b_im, s, p, op, d))
    return jnp.stack([real, imag], axis=1)


if __name__ == "__main__":
    N, Cin, Cout, H, W = 2, 4, 4, 16, 16
    kH = kW = 3
    stride, padding, output_padding, dilation = 2, 1, 1, 1

    key = jax.random.PRNGKey(0)
    kx, kwr, kwi, kbr, kbi = jax.random.split(key, 5)
    x = jax.random.normal(kx, (N, 2, Cin, H, W), dtype=jnp.float32)
    w_re = 0.2 * jax.random.normal(kwr, (Cin, Cout, kH, kW), dtype=jnp.float32)
    w_im = 0.2 * jax.random.normal(kwi, (Cin, Cout, kH, kW), dtype=jnp.float32)
    b_re = 0.1 * jax.random.normal(kbr, (Cout,), dtype=jnp.float32)
    b_im = 0.1 * jax.random.normal(kbi, (Cout,), dtype=jnp.float32)

    # The kernel computes with bf16 inputs/weights (f32 accumulation).  Round
    # inputs/weights to bf16 up-front and feed the SAME rounded values to both
    # paths so the check stays tight (differences = accumulation order only).
    x_q = x.astype(jnp.bfloat16).astype(jnp.float32)
    wr_q = w_re.astype(jnp.bfloat16).astype(jnp.float32)
    wi_q = w_im.astype(jnp.bfloat16).astype(jnp.float32)

    out = complex_conv_transpose_2d(
        x_q, wr_q, wi_q, b_re, b_im,
        stride=stride, padding=padding,
        output_padding=output_padding, dilation=dilation)
    out = jax.block_until_ready(out)

    ref = _reference(x_q, wr_q, wi_q, b_re, b_im,
                     stride, padding, output_padding, dilation)
    Ho = (H - 1) * stride - 2 * padding + dilation * (kH - 1) + output_padding + 1
    Wo = (W - 1) * stride - 2 * padding + dilation * (kW - 1) + output_padding + 1
    assert out.shape == (N, 2, Cout, Ho, Wo), out.shape
    err = float(jnp.max(jnp.abs(out - ref)))
    assert jnp.allclose(out, ref, atol=2e-3, rtol=2e-3), f"mismatch vs reference: {err}"

    print("KERNEL_OK")
</pallas_src>

<mosaic_0001>
module attributes {stable_mosaic.version = 11 : i64} {
  func.func @_cconvt_poly_kernel(%arg0: i32, %arg1: i32, %arg2: memref<1x17x17x8xbf16, #tpu.memory_space<vmem>>, %arg3: memref<72x8xbf16, #tpu.memory_space<vmem>>, %arg4: memref<1x8xf32, #tpu.memory_space<vmem>>, %arg5: memref<1x4x16x16x8xf32, #tpu.memory_space<vmem>>, %arg6: memref<256x32xbf16, #tpu.memory_space<vmem>>) attributes {dimension_semantics = [#tpu.dimension_semantics<parallel>, #tpu.dimension_semantics<parallel>], iteration_bounds = array<i64: 2, 1>, scalar_prefetch = 0 : i64, scratch_operands = 1 : i64, tpu.core_type = #tpu.core_type<tc>, window_params = [{transform_indices = @transform_0, window_bounds = array<i64: 1, 17, 17, 8>}, {pipeline_mode = #tpu.pipeline_mode<synchronous>, transform_indices = @transform_1, window_bounds = array<i64: 72, 8>}, {pipeline_mode = #tpu.pipeline_mode<synchronous>, transform_indices = @transform_2, window_bounds = array<i64: 1, 8>}, {transform_indices = @transform_3, window_bounds = array<i64: 1, 4, 16, 16, 8>}]} {
    %c16_i32 = arith.constant 16 : i32
    %0 = arith.muli %arg1, %c16_i32 : i32
    %1 = tpu.assume_multiple %0, 8 : i32
    %c0 = arith.constant 0 : index
    %c0_0 = arith.constant 0 : index
    %2 = vector.load %arg4[%c0, %c0_0] : memref<1x8xf32, #tpu.memory_space<vmem>>, vector<1x8xf32>
    %c0_i32 = arith.constant 0 : i32
    %3 = arith.addi %1, %c0_i32 : i32
    %c0_1 = arith.constant 0 : index
    %4 = arith.index_cast %3 : i32 to index
    %c0_2 = arith.constant 0 : index
    %c0_3 = arith.constant 0 : index
    %5 = vector.load %arg2[%c0_1, %4, %c0_2, %c0_3] : memref<1x17x17x8xbf16, #tpu.memory_space<vmem>>, vector<1x16x16x8xbf16>
    %6 = vector.shape_cast %5 : vector<1x16x16x8xbf16> to vector<16x16x8xbf16>
    %7 = vector.shape_cast %6 : vector<16x16x8xbf16> to vector<256x8xbf16>
    %c0_4 = arith.constant 0 : index
    %c0_5 = arith.constant 0 : index
    %8 = vector.load %arg6[%c0_4, %c0_5] : memref<256x32xbf16, #tpu.memory_space<vmem>>, vector<256x8xbf16>
    tpu.vector_store %arg6[%c0_4, %c0_5], %7 {strides = array<i32>} : memref<256x32xbf16, #tpu.memory_space<vmem>>, vector<256x8xbf16>,
    %c0_6 = arith.constant 0 : index
    %c0_7 = arith.constant 0 : index
    %9 = vector.load %arg6[%c0_6, %c0_7] : memref<256x32xbf16, #tpu.memory_space<vmem>>, vector<256x8xbf16>
    %c0_8 = arith.constant 0 : index
    %c0_9 = arith.constant 0 : index
    %10 = vector.load %arg3[%c0_8, %c0_9] : memref<72x8xbf16, #tpu.memory_space<vmem>>, vector<8x8xbf16>
    %cst = arith.constant dense<0.000000e+00> : vector<256x8xf32>
    %11 = tpu.matmul %9, %10, %cst {dimension_numbers = #tpu.dot_dimension_numbers<[1], [0], [0], [1], [0, 0, 1, 1], [], []>} : vector<256x8xbf16>, vector<8x8xbf16>, vector<256x8xf32> -> vector<256x8xf32>
    %12 = vector.broadcast %2 : vector<1x8xf32> to vector<256x8xf32>
    %13 = arith.addf %11, %12 : vector<256x8xf32>
    %14 = vector.shape_cast %13 : vector<256x8xf32> to vector<16x16x8xf32>
    %c0_10 = arith.constant 0 : index
    %c0_11 = arith.constant 0 : index
    %c0_12 = arith.constant 0 : index
    %c0_13 = arith.constant 0 : index
    %c0_14 = arith.constant 0 : index
    %15 = vector.load %arg5[%c0_10, %c0_11, %c0_12, %c0_13, %c0_14] : memref<1x4x16x16x8xf32, #tpu.memory_space<vmem>>, vector<1x1x16x16x8xf32>
    %16 = vector.shape_cast %15 : vector<1x1x16x16x8xf32> to vector<16x16x8xf32>
    %17 = vector.shape_cast %14 : vector<16x16x8xf32> to vector<1x1x16x16x8xf32>
    tpu.vector_store %arg5[%c0_10, %c0_11, %c0_12, %c0_13, %c0_14], %17 {strides = array<i32>} : memref<1x4x16x16x8xf32, #tpu.memory_space<vmem>>, vector<1x1x16x16x8xf32>,
    %c0_i32_15 = arith.constant 0 : i32
    %18 = arith.addi %1, %c0_i32_15 : i32
    %c0_16 = arith.constant 0 : index
    %19 = arith.index_cast %18 : i32 to index
    %c1 = arith.constant 1 : index
    %c0_17 = arith.constant 0 : index
    %20 = vector.load %arg2[%c0_16, %19, %c1, %c0_17] : memref<1x17x17x8xbf16, #tpu.memory_space<vmem>>, vector<1x16x16x8xbf16>
    %21 = vector.shape_cast %20 : vector<1x16x16x8xbf16> to vector<16x16x8xbf16>
    %22 = vector.shape_cast %21 : vector<16x16x8xbf16> to vector<256x8xbf16>
    %c0_18 = arith.constant 0 : index
    %c0_19 = arith.constant 0 : index
    %23 = vector.load %arg6[%c0_18, %c0_19] : memref<256x32xbf16, #tpu.memory_space<vmem>>, vector<256x8xbf16>
    tpu.vector_store %arg6[%c0_18, %c0_19], %22 {strides = array<i32>} : memref<256x32xbf16, #tpu.memory_space<vmem>>, vector<256x8xbf16>,
    %c0_i32_20 = arith.constant 0 : i32
    %24 = arith.addi %1, %c0_i32_20 : i32
    %c0_21 = arith.constant 0 : index
    %25 = arith.index_cast %24 : i32 to index
    %c0_22 = arith.constant 0 : index
    %c0_23 = arith.constant 0 : index
    %26 = vector.load %arg2[%c0_21, %25, %c0_22, %c0_23] : memref<1x17x17x8xbf16, #tpu.memory_space<vmem>>, vector<1x16x16x8xbf16>
    %27 = vector.shape_cast %26 : vector<1x16x16x8xbf16> to vector<16x16x8xbf16>
    %28 = vector.shape_cast %27 : vector<16x16x8xbf16> to vector<256x8xbf16>
    %c0_24 = arith.constant 0 : index
    %c8 = arith.constant 8 : index
    %29 = vector.load %arg6[%c0_24, %c8] : memref<256x32xbf16, #tpu.memory_space<vmem>>, vector<256x8xbf16>
    tpu.vector_store %arg6[%c0_24, %c8], %28 {strides = array<i32>} : memref<256x32xbf16, #tpu.memory_space<vmem>>, vector<256x8xbf16>,
    %c0_25 = arith.constant 0 : index
    %c0_26 = arith.constant 0 : index
    %30 = vector.load %arg6[%c0_25, %c0_26] : memref<256x32xbf16, #tpu.memory_space<vmem>>, vector<256x16xbf16>
    %c8_27 = arith.constant 8 : index
    %c0_28 = arith.constant 0 : index
    %31 = vector.load %arg3[%c8_27, %c0_28] : memref<72x8xbf16, #tpu.memory_space<vmem>>, vector<16x8xbf16>
    %cst_29 = arith.constant dense<0.000000e+00> : vector<256x8xf32>
    %32 = tpu.matmul %30, %31, %cst_29 {dimension_numbers = #tpu.dot_dimension_numbers<[1], [0], [0], [1], [0, 0, 1, 1], [], []>} : vector<256x16xbf16>, vector<16x8xbf16>, vector<256x8xf32> -> vector<256x8xf32>
    %33 = vector.broadcast %2 : vector<1x8xf32> to vector<256x8xf32>
    %34 = arith.addf %32, %33 : vector<256x8xf32>
    %35 = vector.shape_cast %34 : vector<256x8xf32> to vector<16x16x8xf32>
    %c0_30 = arith.constant 0 : index
    %c1_31 = arith.constant 1 : index
    %c0_32 = arith.constant 0 : index
    %c0_33 = arith.constant 0 : index
    %c0_34 = arith.constant 0 : index
    %36 = vector.load %arg5[%c0_30, %c1_31, %c0_32, %c0_33, %c0_34] : memref<1x4x16x16x8xf32, #tpu.memory_space<vmem>>, vector<1x1x16x16x8xf32>
    %37 = vector.shape_cast %36 : vector<1x1x16x16x8xf32> to vector<16x16x8xf32>
    %38 = vector.shape_cast %35 : vector<16x16x8xf32> to vector<1x1x16x16x8xf32>
    tpu.vector_store %arg5[%c0_30, %c1_31, %c0_32, %c0_33, %c0_34], %38 {strides = array<i32>} : memref<1x4x16x16x8xf32, #tpu.memory_space<vmem>>, vector<1x1x16x16x8xf32>,
    %c1_i32 = arith.constant 1 : i32
    %39 = arith.addi %1, %c1_i32 : i32
    %c0_35 = arith.constant 0 : index
    %40 = arith.index_cast %39 : i32 to index
    %c0_36 = arith.constant 0 : index
    %c0_37 = arith.constant 0 : index
    %41 = vector.load %arg2[%c0_35, %40, %c0_36, %c0_37] : memref<1x17x17x8xbf16, #tpu.memory_space<vmem>>, vector<1x16x16x8xbf16>
    %42 = vector.shape_cast %41 : vector<1x16x16x8xbf16> to vector<16x16x8xbf16>
    %43 = vector.shape_cast %42 : vector<16x16x8xbf16> to vector<256x8xbf16>
    %c0_38 = arith.constant 0 : index
    %c0_39 = arith.constant 0 : index
    %44 = vector.load %arg6[%c0_38, %c0_39] : memref<256x32xbf16, #tpu.memory_space<vmem>>, vector<256x8xbf16>
    tpu.vector_store %arg6[%c0_38, %c0_39], %43 {strides = array<i32>} : memref<256x32xbf16, #tpu.memory_space<vmem>>, vector<256x8xbf16>,
    %c0_i32_40 = arith.constant 0 : i32
    %45 = arith.addi %1, %c0_i32_40 : i32
    %c0_41 = arith.constant 0 : index
    %46 = arith.index_cast %45 : i32 to index
    %c0_42 = arith.constant 0 : index
    %c0_43 = arith.constant 0 : index
    %47 = vector.load %arg2[%c0_41, %46, %c0_42, %c0_43] : memref<1x17x17x8xbf16, #tpu.memory_space<vmem>>, vector<1x16x16x8xbf16>
    %48 = vector.shape_cast %47 : vector<1x16x16x8xbf16> to vector<16x16x8xbf16>
    %49 = vector.shape_cast %48 : vector<16x16x8xbf16> to vector<256x8xbf16>
    %c0_44 = arith.constant 0 : index
    %c8_45 = arith.constant 8 : index
    %50 = vector.load %arg6[%c0_44, %c8_45] : memref<256x32xbf16, #tpu.memory_space<vmem>>, vector<256x8xbf16>
    tpu.vector_store %arg6[%c0_44, %c8_45], %49 {strides = array<i32>} : memref<256x32xbf16, #tpu.memory_space<vmem>>, vector<256x8xbf16>,
    %c0_46 = arith.constant 0 : index
    %c0_47 = arith.constant 0 : index
    %51 = vector.load %arg6[%c0_46, %c0_47] : memref<256x32xbf16, #tpu.memory_space<vmem>>, vector<256x16xbf16>
    %c24 = arith.constant 24 : index
    %c0_48 = arith.constant 0 : index
    %52 = vector.load %arg3[%c24, %c0_48] : memref<72x8xbf16, #tpu.memory_space<vmem>>, vector<16x8xbf16>
    %cst_49 = arith.constant dense<0.000000e+00> : vector<256x8xf32>
    %53 = tpu.matmul %51, %52, %cst_49 {dimension_numbers = #tpu.dot_dimension_numbers<[1], [0], [0], [1], [0, 0, 1, 1], [], []>} : vector<256x16xbf16>, vector<16x8xbf16>, vector<256x8xf32> -> vector<256x8xf32>
    %54 = vector.broadcast %2 : vector<1x8xf32> to vector<256x8xf32>
    %55 = arith.addf %53, %54 : vector<256x8xf32>
    %56 = vector.shape_cast %55 : vector<256x8xf32> to vector<16x16x8xf32>
    %c0_50 = arith.constant 0 : index
    %c2 = arith.constant 2 : index
    %c0_51 = arith.constant 0 : index
    %c0_52 = arith.constant 0 : index
    %c0_53 = arith.constant 0 : index
    %57 = vector.load %arg5[%c0_50, %c2, %c0_51, %c0_52, %c0_53] : memref<1x4x16x16x8xf32, #tpu.memory_space<vmem>>, vector<1x1x16x16x8xf32>
    %58 = vector.shape_cast %57 : vector<1x1x16x16x8xf32> to vector<16x16x8xf32>
    %59 = vector.shape_cast %56 : vector<16x16x8xf32> to vector<1x1x16x16x8xf32>
    tpu.vector_store %arg5[%c0_50, %c2, %c0_51, %c0_52, %c0_53], %59 {strides = array<i32>} : memref<1x4x16x16x8xf32, #tpu.memory_space<vmem>>, vector<1x1x16x16x8xf32>,
    %c1_i32_54 = arith.constant 1 : i32
    %60 = arith.addi %1, %c1_i32_54 : i32
    %c0_55 = arith.constant 0 : index
    %61 = arith.index_cast %60 : i32 to index
    %c1_56 = arith.constant 1 : index
    %c0_57 = arith.constant 0 : index
    %62 = vector.load %arg2[%c0_55, %61, %c1_56, %c0_57] : memref<1x17x17x8xbf16, #tpu.memory_space<vmem>>, vector<1x16x16x8xbf16>
    %63 = vector.shape_cast %62 : vector<1x16x16x8xbf16> to vector<16x16x8xbf16>
    %64 = vector.shape_cast %63 : vector<16x16x8xbf16> to vector<256x8xbf16>
    %c0_58 = arith.constant 0 : index
    %c0_59 = arith.constant 0 : index
    %65 = vector.load %arg6[%c0_58, %c0_59] : memref<256x32xbf16, #tpu.memory_space<vmem>>, vector<256x8xbf16>
    tpu.vector_store %arg6[%c0_58, %c0_59], %64 {strides = array<i32>} : memref<256x32xbf16, #tpu.memory_space<vmem>>, vector<256x8xbf16>,
    %c1_i32_60 = arith.constant 1 : i32
    %66 = arith.addi %1, %c1_i32_60 : i32
    %c0_61 = arith.constant 0 : index
    %67 = arith.index_cast %66 : i32 to index
    %c0_62 = arith.constant 0 : index
    %c0_63 = arith.constant 0 : index
    %68 = vector.load %arg2[%c0_61, %67, %c0_62, %c0_63] : memref<1x17x17x8xbf16, #tpu.memory_space<vmem>>, vector<1x16x16x8xbf16>
    %69 = vector.shape_cast %68 : vector<1x16x16x8xbf16> to vector<16x16x8xbf16>
    %70 = vector.shape_cast %69 : vector<16x16x8xbf16> to vector<256x8xbf16>
    %c0_64 = arith.constant 0 : index
    %c8_65 = arith.constant 8 : index
    %71 = vector.load %arg6[%c0_64, %c8_65] : memref<256x32xbf16, #tpu.memory_space<vmem>>, vector<256x8xbf16>
    tpu.vector_store %arg6[%c0_64, %c8_65], %70 {strides = array<i32>} : memref<256x32xbf16, #tpu.memory_space<vmem>>, vector<256x8xbf16>,
    %c0_i32_66 = arith.constant 0 : i32
    %72 = arith.addi %1, %c0_i32_66 : i32
    %c0_67 = arith.constant 0 : index
    %73 = arith.index_cast %72 : i32 to index
    %c1_68 = arith.constant 1 : index
    %c0_69 = arith.constant 0 : index
    %74 = vector.load %arg2[%c0_67, %73, %c1_68, %c0_69] : memref<1x17x17x8xbf16, #tpu.memory_space<vmem>>, vector<1x16x16x8xbf16>
    %75 = vector.shape_cast %74 : vector<1x16x16x8xbf16> to vector<16x16x8xbf16>
    %76 = vector.shape_cast %75 : vector<16x16x8xbf16> to vector<256x8xbf16>
    %c0_70 = arith.constant 0 : index
    %c16 = arith.constant 16 : index
    %77 = vector.load %arg6[%c0_70, %c16] : memref<256x32xbf16, #tpu.memory_space<vmem>>, vector<256x8xbf16>
    tpu.vector_store %arg6[%c0_70, %c16], %76 {strides = array<i32>} : memref<256x32xbf16, #tpu.memory_space<vmem>>, vector<256x8xbf16>,
    %c0_i32_71 = arith.constant 0 : i32
    %78 = arith.addi %1, %c0_i32_71 : i32
    %c0_72 = arith.constant 0 : index
    %79 = arith.index_cast %78 : i32 to index
    %c0_73 = arith.constant 0 : index
    %c0_74 = arith.constant 0 : index
    %80 = vector.load %arg2[%c0_72, %79, %c0_73, %c0_74] : memref<1x17x17x8xbf16, #tpu.memory_space<vmem>>, vector<1x16x16x8xbf16>
    %81 = vector.shape_cast %80 : vector<1x16x16x8xbf16> to vector<16x16x8xbf16>
    %82 = vector.shape_cast %81 : vector<16x16x8xbf16> to vector<256x8xbf16>
    %c0_75 = arith.constant 0 : index
    %c24_76 = arith.constant 24 : index
    %83 = vector.load %arg6[%c0_75, %c24_76] : memref<256x32xbf16, #tpu.memory_space<vmem>>, vector<256x8xbf16>
    tpu.vector_store %arg6[%c0_75, %c24_76], %82 {strides = array<i32>} : memref<256x32xbf16, #tpu.memory_space<vmem>>, vector<256x8xbf16>,
    %c0_77 = arith.constant 0 : index
    %c0_78 = arith.constant 0 : index
    %84 = vector.load %arg6[%c0_77, %c0_78] : memref<256x32xbf16, #tpu.memory_space<vmem>>, vector<256x32xbf16>
    %c40 = arith.constant 40 : index
    %c0_79 = arith.constant 0 : index
    %85 = vector.load %arg3[%c40, %c0_79] : memref<72x8xbf16, #tpu.memory_space<vmem>>, vector<32x8xbf16>
    %cst_80 = arith.constant dense<0.000000e+00> : vector<256x8xf32>
    %86 = tpu.matmul %84, %85, %cst_80 {dimension_numbers = #tpu.dot_dimension_numbers<[1], [0], [0], [1], [0, 0, 1, 1], [], []>} : vector<256x32xbf16>, vector<32x8xbf16>, vector<256x8xf32> -> vector<256x8xf32>
    %87 = vector.broadcast %2 : vector<1x8xf32> to vector<256x8xf32>
    %88 = arith.addf %86, %87 : vector<256x8xf32>
    %89 = vector.shape_cast %88 : vector<256x8xf32> to vector<16x16x8xf32>
    %c0_81 = arith.constant 0 : index
    %c3 = arith.constant 3 : index
    %c0_82 = arith.constant 0 : index
    %c0_83 = arith.constant 0 : index
    %c0_84 = arith.constant 0 : index
    %90 = vector.load %arg5[%c0_81, %c3, %c0_82, %c0_83, %c0_84] : memref<1x4x16x16x8xf32, #tpu.memory_space<vmem>>, vector<1x1x16x16x8xf32>
    %91 = vector.shape_cast %90 : vector<1x1x16x16x8xf32> to vector<16x16x8xf32>
    %92 = vector.shape_cast %89 : vector<16x16x8xf32> to vector<1x1x16x16x8xf32>
    tpu.vector_store %arg5[%c0_81, %c3, %c0_82, %c0_83, %c0_84], %92 {strides = array<i32>} : memref<1x4x16x16x8xf32, #tpu.memory_space<vmem>>, vector<1x1x16x16x8xf32>,
    return
  }
  func.func @transform_0(%arg0: i32, %arg1: i32) -> (i32, i32, i32, i32) {
    %c0_i32 = arith.constant 0 : i32
    %c0_i32_0 = arith.constant 0 : i32
    %c0_i32_1 = arith.constant 0 : i32
    %c0_i32_2 = arith.constant 0 : i32
    return %arg0, %c0_i32, %c0_i32_0, %c0_i32_1 : i32, i32, i32, i32
  }
  func.func @transform_1(%arg0: i32, %arg1: i32) -> (i32, i32) {
    %c0_i32 = arith.constant 0 : i32
    %c0_i32_0 = arith.constant 0 : i32
    %c0_i32_1 = arith.constant 0 : i32
    return %c0_i32, %c0_i32_0 : i32, i32
  }
  func.func @transform_2(%arg0: i32, %arg1: i32) -> (i32, i32) {
    %c0_i32 = arith.constant 0 : i32
    %c0_i32_0 = arith.constant 0 : i32
    %c0_i32_1 = arith.constant 0 : i32
    return %c0_i32, %c0_i32_0 : i32, i32
  }
  func.func @transform_3(%arg0: i32, %arg1: i32) -> (i32, i32, i32, i32, i32) {
    %c0_i32 = arith.constant 0 : i32
    %c0_i32_0 = arith.constant 0 : i32
    %c0_i32_1 = arith.constant 0 : i32
    %c0_i32_2 = arith.constant 0 : i32
    return %arg0, %c0_i32, %arg1, %c0_i32_0, %c0_i32_1 : i32, i32, i32, i32, i32
  }
}

</mosaic_0001>

<llo_original>
// kernel: tpu_custom_call.1
$region0: #{tpu_custom_call.1}
  #allocation0 [shape = 'u32[]', space=smem, size = 0x4, offset = 0x4, fixed_abs, tag = 'smem constant byte address 0x4 - core index']
  #allocation1 [shape = 'u32[144,128]{1,0:T(1,128)}', space=vmem, size = 0x12000, scoped, tag = 'internal scratch']
  #allocation2 [shape = 'bf16[256,32]{1,0:T(16,128)(2,1)}', space=vmem, size = 0x10000, scoped, tag = 'scratch operand']
  %s0 = inlined_call_operand.vmem [shape: bf16[2,17,17,8], index: 0, kind: input, shape index: {}]
  %s1 = inlined_call_operand.vmem [shape: bf16[72,8], index: 1, kind: input, shape index: {}]
  %s2 = inlined_call_operand.vmem [shape: f32[1,8], index: 2, kind: input, shape index: {}]
  %s3 = inlined_call_operand.vmem [shape: f32[2,4,16,16,8], index: 3, kind: output, shape index: {}]
  %s4 = sld [smem:[#allocation0]]
  $region45: #{tpu_custom_call.1} parent=0
    _
  %s6 = ssub.s32 1, %s4
  %s7 = scalar_select 0, %s6, %s4
  loop: start=0, step=1, limit=4
  $region2: #{tpu_custom_call.1} parent=0 // loop_pre_header
    _
  $region3: #{tpu_custom_call.1} parent=0 // loop_header
    %s9 = sphi 0, %s13
    %p10 = scmp.ge.s32.totalorder %s9, 4
    %s16 = sphi 0, %s28
    %s17 = sphi 0, %s24
    %s18 = sphi 0, %s16
    %s19 = sphi 0, %s17
    %s20 = sphi 0, %s18
    %s21 = sphi 0, %s19
    %s31 = sphi 0, %s33
    %s34 = sphi 0, %s31
    %s35 = sphi 0, %s34
    %s51 = sphi 0, %s35
    %s55 = sphi 0, %s55
    %s57 = sphi 0, %s55
    %s58 = sphi 0, %s57
    %s72 = sphi 0, %s58
    %s76 = sphi 0, %s76
    %s78 = sphi 0, %s76
    %s79 = sphi 0, %s78
    %s93 = sphi 0, %s79
    %s101 = sphi 0, %s103
    %s104 = sphi 0, %s101
    %s105 = sphi 0, %s104
    %s121 = sphi 0, %s105
  $region4: #{tpu_custom_call.1} parent=0 // loop_header_branch
    %12 = sbr.rel (%p10) target = $region8
  $region5: #{tpu_custom_call.1} parent=0 // loop_body
    %s14 = ssub.s32 %s9, 1
    %s15 = ssub.s32 %s9, 2
    %s22 = sadd.s32 1, %s17
    %p23 = scmp.ge.s32.totalorder %s22, 1
    %s24 = scalar_select %p23, 0, %s22
    %s25 = sadd.s32 1, %s16
    %s26 = scalar_select %p23, %s25, %s16
    %p27 = scmp.ge.s32.totalorder %s26, 2
    %s28 = scalar_select %p27, 0, %s26
    %s29 = ssub.s32 %s16, %s28
    %p30 = scmp.eq.s32.totalorder %s29, 0
    %s32 = sadd.s32 %s31, 1
    %s33 = scalar_select %p30, %s31, %s32
    %p36 = pneg %p30
    %p37 = scmp.eq.s32.totalorder %s9, 1
    %p38 = por %p36, %p37
    %p39 = scmp.ne.s32.totalorder %s31, %s34
    %p40 = scmp.eq.s32.totalorder %s9, 0
    %p41 = por %p39, %p40
    %p42 = scmp.ne.s32.totalorder %s31, %s34
    %p43 = scmp.eq.s32.totalorder %s14, 1
    %p44 = por %p42, %p43
    %p45 = scmp.ne.s32.totalorder %s34, %s35
    %p46 = scmp.eq.s32.totalorder %s14, 0
    %p47 = por %p45, %p46
    %p48 = scmp.ne.s32.totalorder %s34, %s35
    %p49 = scmp.eq.s32.totalorder %s15, 1
    %p50 = por %p48, %p49
    %p52 = scmp.ne.s32.totalorder %s35, %s51
    %p53 = scmp.eq.s32.totalorder %s15, 0
    %p54 = por %p52, %p53
    %s56 = sadd.s32 %s55, 1
    %p59 = scmp.eq.s32.totalorder %s9, 1
    %p60 = scmp.ne.s32.totalorder %s55, %s57
    %p61 = scmp.eq.s32.totalorder %s9, 0
    %p62 = por %p60, %p61
    %p63 = scmp.ne.s32.totalorder %s55, %s57
    %p64 = scmp.eq.s32.totalorder %s14, 1
    %p65 = por %p63, %p64
    %p66 = scmp.ne.s32.totalorder %s57, %s58
    %p67 = scmp.eq.s32.totalorder %s14, 0
    %p68 = por %p66, %p67
    %p69 = scmp.ne.s32.totalorder %s57, %s58
    %p70 = scmp.eq.s32.totalorder %s15, 1
    %p71 = por %p69, %p70
    %p73 = scmp.ne.s32.totalorder %s58, %s72
    %p74 = scmp.eq.s32.totalorder %s15, 0
    %p75 = por %p73, %p74
    %s77 = sadd.s32 %s76, 1
    %p80 = scmp.eq.s32.totalorder %s9, 1
    %p81 = scmp.ne.s32.totalorder %s76, %s78
    %p82 = scmp.eq.s32.totalorder %s9, 0
    %p83 = por %p81, %p82
    %p84 = scmp.ne.s32.totalorder %s76, %s78
    %p85 = scmp.eq.s32.totalorder %s14, 1
    %p86 = por %p84, %p85
    %p87 = scmp.ne.s32.totalorder %s78, %s79
    %p88 = scmp.eq.s32.totalorder %s14, 0
    %p89 = por %p87, %p88
    %p90 = scmp.ne.s32.totalorder %s78, %s79
    %p91 = scmp.eq.s32.totalorder %s15, 1
    %p92 = por %p90, %p91
    %p94 = scmp.ne.s32.totalorder %s79, %s93
    %p95 = scmp.eq.s32.totalorder %s15, 0
    %p96 = por %p94, %p95
    %s97 = ssub.s32 %s16, %s28
    %s98 = ssub.s32 %s17, %s24
    %s99 = sor.u32 %s97, %s98
    %p100 = scmp.eq.s32.totalorder %s99, 0
    %s102 = sadd.s32 %s101, 1
    %s103 = scalar_select %p100, %s101, %s102
    %p106 = pneg %p100
    %p107 = scmp.eq.s32.totalorder %s9, 1
    %p108 = por %p106, %p107
    %p109 = scmp.ne.s32.totalorder %s101, %s104
    %p110 = scmp.eq.s32.totalorder %s9, 0
    %p111 = por %p109, %p110
    %p112 = scmp.ne.s32.totalorder %s101, %s104
    %p113 = scmp.eq.s32.totalorder %s14, 1
    %p114 = por %p112, %p113
    %p115 = scmp.ne.s32.totalorder %s104, %s105
    %p116 = scmp.eq.s32.totalorder %s14, 0
    %p117 = por %p115, %p116
    %p118 = scmp.ne.s32.totalorder %s104, %s105
    %p119 = scmp.eq.s32.totalorder %s15, 1
    %p120 = por %p118, %p119
    %p122 = scmp.ne.s32.totalorder %s105, %s121
    %p123 = scmp.eq.s32.totalorder %s15, 0
    %p124 = por %p122, %p123
    %p125 = scmp.le.s32.totalorder 1, %s9
    %p126 = scmp.lt.s32.totalorder %s9, 3
    %p127 = pnand %p125, %p126
    %p128 = pneg %p127
    // Predicated region
    $region9: #{tpu_custom_call.1} parent=5 // pred_check
      _
    $region10: #{tpu_custom_call.1} parent=5 // pred_check_branch
      %130 = sbr.rel (%p127) target = $region12
    $region11: #{tpu_custom_call.1} parent=5 // pred_region
      %s131 = ssub.s32 %s9, 1
      // Predicated region
      $region13: #{tpu_custom_call.1} parent=11 // pred_check
        %p132 = pneg %p68
      $region14: #{tpu_custom_call.1} parent=11 // pred_check_branch
        %134 = sbr.rel (%p132) target = $region16
      $region15: #{tpu_custom_call.1} parent=11 // pred_region
        _
      $region16: #{tpu_custom_call.1} parent=11 // pred_fallthru
        _
      // Predicated region
      $region17: #{tpu_custom_call.1} parent=11 // pred_check
        %p135 = pneg %p89
      $region18: #{tpu_custom_call.1} parent=11 // pred_check_branch
        %137 = sbr.rel (%p135) target = $region20
      $region19: #{tpu_custom_call.1} parent=11 // pred_region
        _
      $region20: #{tpu_custom_call.1} parent=11 // pred_fallthru
        _
    $region12: #{tpu_custom_call.1} parent=5 // pred_fallthru
      _
    %p138 = scmp.lt.s32.totalorder %s9, 2
    // Predicated region
    $region21: #{tpu_custom_call.1} parent=5 // pred_check
      %p139 = pneg %p138
    $region22: #{tpu_custom_call.1} parent=5 // pred_check_branch
      %141 = sbr.rel (%p139) target = $region24
    $region23: #{tpu_custom_call.1} parent=5 // pred_region
      // Predicated region
      $region25: #{tpu_custom_call.1} parent=23 // pred_check
        %p142 = pneg %p41
      $region26: #{tpu_custom_call.1} parent=23 // pred_check_branch
        %144 = sbr.rel (%p142) target = $region28
      $region27: #{tpu_custom_call.1} parent=23 // pred_region
        %p145 = scmp.lt.s32.totalorder %s16, 1
        %s146 = scalar_select %p145, %s16, 1
        %s147 = smul.addr %s146, 51
        %s148 = smul.addr %s147, 4
        %s149 = scalar_lea.vmem %s0, %s148
      $region28: #{tpu_custom_call.1} parent=23 // pred_fallthru
        _
    $region24: #{tpu_custom_call.1} parent=5 // pred_fallthru
      _
    %p150 = scmp.le.s32.totalorder 1, %s9
    %p151 = scmp.lt.s32.totalorder %s9, 3
    %p152 = pnand %p150, %p151
    %p153 = pneg %p152
    // Predicated region
    $region29: #{tpu_custom_call.1} parent=5 // pred_check
      _
    $region30: #{tpu_custom_call.1} parent=5 // pred_check_branch
      %155 = sbr.rel (%p152) target = $region32
    $region31: #{tpu_custom_call.1} parent=5 // pred_region
      %s156 = ssub.s32 %s9, 1
      %p157 = scmp.lt.s32.totalorder %s18, 1
      %s158 = scalar_select %p157, %s18, 1
      %s159 = smul.addr %s158, 51
      %s160 = smul.addr %s159, 4
      %s161 = scalar_lea.vmem %s0, %s160
      %p162 = pneg %p47
      %p163 = pneg %p44
      %p164 = pneg %p68
      %p165 = pneg %p65
      %p166 = pneg %p89
      %p167 = pneg %p86
      %p168 = pneg %p117
      %p169 = pneg %p114
      %s170 = smul.u32 16, %s19
      %p171 = scmp.lt.s32.totalorder %s18, 1
      %s172 = scalar_select %p171, %s18, 1
      %p173 = scmp.lt.s32.totalorder %s170, 15
      %s174 = scalar_select %p173, %s170, 15
      %s175 = smul.addr %s174, 2
      %s176 = smul.addr %s172, 128
      %s177 = sadd.s32 %s175, %s176
      %s178 = smul.addr %s177, 8
      %s179 = scalar_lea.vmem %s3, %s178
      %p180 = scmp.lt.s32.totalorder %s18, 1
      %s181 = scalar_select %p180, %s18, 1
      %s182 = smul.addr %s181, 51
      %s183 = smul.addr %s182, 4
      %s184 = scalar_lea.vmem %s0, %s183
      %s185 = smul.u32 16, %s19
      %p186 = scmp.lt.s32.totalorder %s18, 1
      %s187 = scalar_select %p186, %s18, 1
      %p188 = scmp.lt.s32.totalorder %s185, 15
      %s189 = scalar_select %p188, %s185, 15
      %s190 = smul.addr %s189, 2
      %s191 = smul.addr %s187, 128
      %s192 = sadd.s32 %s190, %s191
      %s193 = smul.addr %s192, 8
      %s194 = scalar_lea.vmem %s3, %s193
      %s195 = smul.u32 16, %s19
      %s197 = smul.u32 %s19, 16
      %v198 = vld [vmem:[%s2] sm:$0x1]
      %s199 = smul.u32 %s197, 3
      %s200 = smul.addr %s199, 4
      %s201 = scalar_lea.vmem %s184, %s200
      %v202 = vld [vmem:[%s201] sm:$0xf]
      %v203 = vld [vmem:[%s201 + $0x4] sm:$0xf]
      %v204 = vld [vmem:[%s201 + $0xc] sm:$0xf]
      %v205 = vld [vmem:[%s201 + $0x10] sm:$0xf]
      %v206 = vld [vmem:[%s201 + $0x18] sm:$0xf]
      %v207 = vld [vmem:[%s201 + $0x1c] sm:$0xf]
      %v208 = vld [vmem:[%s201 + $0x24] sm:$0xf]
      %v209 = vld [vmem:[%s201 + $0x28] sm:$0xf]
      %v210 = vld [vmem:[%s201 + $0x30] sm:$0xf]
      %v211 = vld [vmem:[%s201 + $0x34] sm:$0xf]
      %v212 = vld [vmem:[%s201 + $0x3c] sm:$0xf]
      %v213 = vld [vmem:[%s201 + $0x40] sm:$0xf]
      %v214 = vld [vmem:[%s201 + $0x48] sm:$0xf]
      %v215 = vld [vmem:[%s201 + $0x4c] sm:$0xf]
      %v216 = vld [vmem:[%s201 + $0x54] sm:$0xf]
      %v217 = vld [vmem:[%s201 + $0x58] sm:$0xf]
      %v218 = vld [vmem:[%s201 + $0x60] sm:$0xf]
      %v219 = vld [vmem:[%s201 + $0x64] sm:$0xf]
      %v220 = vld [vmem:[%s201 + $0x6c] sm:$0xf]
      %v221 = vld [vmem:[%s201 + $0x70] sm:$0xf]
      %v222 = vld [vmem:[%s201 + $0x78] sm:$0xf]
      %v223 = vld [vmem:[%s201 + $0x7c] sm:$0xf]
      %v224 = vld [vmem:[%s201 + $0x84] sm:$0xf]
      %v225 = vld [vmem:[%s201 + $0x88] sm:$0xf]
      %v226 = vld [vmem:[%s201 + $0x90] sm:$0xf]
      %v227 = vld [vmem:[%s201 + $0x94] sm:$0xf]
      %v228 = vld [vmem:[%s201 + $0x9c] sm:$0xf]
      %v229 = vld [vmem:[%s201 + $0xa0] sm:$0xf]
      %v230 = vld [vmem:[%s201 + $0xa8] sm:$0xf]
      %v231 = vld [vmem:[%s201 + $0xac] sm:$0xf]
      %v232 = vld [vmem:[%s201 + $0xb4] sm:$0xf]
      %v233 = vld [vmem:[%s201 + $0xb8] sm:$0xf]
      %v266 = vunpack.c.l.b16 %v202
      %v267 = vunpack.c.l.b16 %v203
      %v268 = vunpack.c.l.b16 %v204
      %v269 = vunpack.c.l.b16 %v205
      %v270 = vunpack.c.l.b16 %v206
      %v271 = vunpack.c.l.b16 %v207
      %v272 = vunpack.c.l.b16 %v208
      %v273 = vunpack.c.l.b16 %v209
      %v274 = vunpack.c.l.b16 %v210
      %v275 = vunpack.c.l.b16 %v211
      %v276 = vunpack.c.l.b16 %v212
      %v277 = vunpack.c.l.b16 %v213
      %v278 = vunpack.c.l.b16 %v214
      %v279 = vunpack.c.l.b16 %v215
      %v280 = vunpack.c.l.b16 %v216
      %v281 = vunpack.c.l.b16 %v217
      %v282 = vunpack.c.l.b16 %v218
      %v283 = vunpack.c.l.b16 %v219
      %v284 = vunpack.c.l.b16 %v220
      %v285 = vunpack.c.l.b16 %v221
      %v286 = vunpack.c.l.b16 %v222
      %v287 = vunpack.c.l.b16 %v223
      %v288 = vunpack.c.l.b16 %v224
      %v289 = vunpack.c.l.b16 %v225
      %v290 = vunpack.c.l.b16 %v226
      %v291 = vunpack.c.l.b16 %v227
      %v292 = vunpack.c.l.b16 %v228
      %v293 = vunpack.c.l.b16 %v229
      %v294 = vunpack.c.l.b16 %v230
      %v295 = vunpack.c.l.b16 %v231
      %v296 = vunpack.c.l.b16 %v232
      %v297 = vunpack.c.l.b16 %v233
      %v298 = vpack.c.b16 %v267, %v266
      %v299 = vpack.c.b16 %v269, %v268
      %v300 = vpack.c.b16 %v271, %v270
      %v301 = vpack.c.b16 %v273, %v272
      %v302 = vpack.c.b16 %v275, %v274
      %v303 = vpack.c.b16 %v277, %v276
      %v304 = vpack.c.b16 %v279, %v278
      %v305 = vpack.c.b16 %v281, %v280
      %v306 = vpack.c.b16 %v283, %v282
      %v307 = vpack.c.b16 %v285, %v284
      %v308 = vpack.c.b16 %v287, %v286
      %v309 = vpack.c.b16 %v289, %v288
      %v310 = vpack.c.b16 %v291, %v290
      %v311 = vpack.c.b16 %v293, %v292
      %v312 = vpack.c.b16 %v295, %v294
      %v313 = vpack.c.b16 %v297, %v296
      %vm330 = vcmask 64512
      %331 = vst.msk [vmem:[#allocation2] sm:$0xff] %vm330, %v298
      %332 = vst.msk [vmem:[#allocation2 + $0x8] sm:$0xff] %vm330, %v299
      %333 = vst.msk [vmem:[#allocation2 + $0x10] sm:$0xff] %vm330, %v300
      %334 = vst.msk [vmem:[#allocation2 + $0x18] sm:$0xff] %vm330, %v301
      %335 = vst.msk [vmem:[#allocation2 + $0x20] sm:$0xff] %vm330, %v302
      %336 = vst.msk [vmem:[#allocation2 + $0x28] sm:$0xff] %vm330, %v303
      %337 = vst.msk [vmem:[#allocation2 + $0x30] sm:$0xff] %vm330, %v304
      %338 = vst.msk [vmem:[#allocation2 + $0x38] sm:$0xff] %vm330, %v305
      %339 = vst.msk [vmem:[#allocation2 + $0x40] sm:$0xff] %vm330, %v306
      %340 = vst.msk [vmem:[#allocation2 + $0x48] sm:$0xff] %vm330, %v307
      %341 = vst.msk [vmem:[#allocation2 + $0x50] sm:$0xff] %vm330, %v308
      %342 = vst.msk [vmem:[#allocation2 + $0x58] sm:$0xff] %vm330, %v309
      %343 = vst.msk [vmem:[#allocation2 + $0x60] sm:$0xff] %vm330, %v310
      %344 = vst.msk [vmem:[#allocation2 + $0x68] sm:$0xff] %vm330, %v311
      %345 = vst.msk [vmem:[#allocation2 + $0x70] sm:$0xff] %vm330, %v312
      %346 = vst.msk [vmem:[#allocation2 + $0x78] sm:$0xff] %vm330, %v313
      %v347 = vld [vmem:[#allocation2] sm:$0xff]
      %v348 = vld [vmem:[#allocation2 + $0x8] sm:$0xff]
      %v349 = vld [vmem:[#allocation2 + $0x10] sm:$0xff]
      %v350 = vld [vmem:[#allocation2 + $0x18] sm:$0xff]
      %v351 = vld [vmem:[#allocation2 + $0x20] sm:$0xff]
      %v352 = vld [vmem:[#allocation2 + $0x28] sm:$0xff]
      %v353 = vld [vmem:[#allocation2 + $0x30] sm:$0xff]
      %v354 = vld [vmem:[#allocation2 + $0x38] sm:$0xff]
      %v355 = vld [vmem:[#allocation2 + $0x40] sm:$0xff]
      %v356 = vld [vmem:[#allocation2 + $0x48] sm:$0xff]
      %v357 = vld [vmem:[#allocation2 + $0x50] sm:$0xff]
      %v358 = vld [vmem:[#allocation2 + $0x58] sm:$0xff]
      %v359 = vld [vmem:[#allocation2 + $0x60] sm:$0xff]
      %v360 = vld [vmem:[#allocation2 + $0x68] sm:$0xff]
      %v361 = vld [vmem:[#allocation2 + $0x70] sm:$0xff]
      %v362 = vld [vmem:[#allocation2 + $0x78] sm:$0xff]
      %v363 = vld [vmem:[%s1] sm:$0xf]
      %v365 = vlaneseq
      %v366 = vshrl.u32 %v365, 7
      %v367 = vsub.s32 0, %v366
      %v368 = vrot.slane %v198, %v367
      %v371 = vsel %vm330, %v347, 0
      %v374 = vsel %vm330, %v348, 0
      %v377 = vsel %vm330, %v349, 0
      %v380 = vsel %vm330, %v350, 0
      %v383 = vsel %vm330, %v351, 0
      %v386 = vsel %vm330, %v352, 0
      %v389 = vsel %vm330, %v353, 0
      %v392 = vsel %vm330, %v354, 0
      %v395 = vsel %vm330, %v355, 0
      %v398 = vsel %vm330, %v356, 0
      %v401 = vsel %vm330, %v357, 0
      %v404 = vsel %vm330, %v358, 0
      %v407 = vsel %vm330, %v359, 0
      %v410 = vsel %vm330, %v360, 0
      %v413 = vsel %vm330, %v361, 0
      %v416 = vsel %vm330, %v362, 0
      %vm418 = vcmask 1043456
      %v420 = vsel %vm418, %v363, 0
      %422 = vmatprep.subr.bf16.mxu0 0
      %423 = vmatpush1.bf16.msra.mxu0 %v420
      %424 = vmatprep.subr.bf16.mxu0 0
      %425 = vmatpush1.bf16.msra.mxu0 0
      %426 = vmatprep.subr.bf16.mxu0 0
      %427 = vmatpush1.bf16.msra.mxu0 0
      %428 = vmatprep.subr.bf16.mxu0 0
      %429 = vmatpush1.bf16.msra.mxu0 0
      %430 = vmatprep.subr.bf16.mxu0 0
      %431 = vmatpush1.bf16.msra.mxu0 0
      %432 = vmatprep.subr.bf16.mxu0 0
      %433 = vmatpush1.bf16.msra.mxu0 0
      %434 = vmatprep.subr.bf16.mxu0 0
      %435 = vmatpush1.bf16.msra.mxu0 0
      %436 = vmatprep.subr.bf16.mxu0 0
      %437 = vmatpush1.bf16.msra.mxu0 0
      %438 = vmatprep.subr.bf16.mxu0 0
      %439 = vmatpush1.bf16.msra.mxu0 0
      %440 = vmatprep.subr.bf16.mxu0 0
      %441 = vmatpush1.bf16.msra.mxu0 0
      %442 = vmatprep.subr.bf16.mxu0 0
      %443 = vmatpush1.bf16.msra.mxu0 0
      %444 = vmatprep.subr.bf16.mxu0 0
      %445 = vmatpush1.bf16.msra.mxu0 0
      %446 = vmatprep.subr.bf16.mxu0 0
      %447 = vmatpush1.bf16.msra.mxu0 0
      %448 = vmatprep.subr.bf16.mxu0 0
      %449 = vmatpush1.bf16.msra.mxu0 0
      %450 = vmatprep.subr.bf16.mxu0 0
      %451 = vmatpush1.bf16.msra.mxu0 0
      %452 = vmatprep.subr.bf16.mxu0 0
      %453 = vmatpush1.bf16.msra.mxu0 0
      %454 = vmatprep.mubr.bf16.mxu0 0
      %455 = vmatmul.mubr.bf16.gmra.mrb[0].mxu0 %v371
      %v456 = vpop.f32.mrb[0].mxu0
      %v457 = vadd.f32 %v368, %v456
      %v458 = vpop.f32.mrb[0].mxu0
      %v459 = vpop.f32.mrb[0].mxu0
      %v460 = vadd.f32 %v368, %v459
      %v461 = vpop.f32.mrb[0].mxu0
      %462 = vmatprep.mubr.bf16.mxu0 0
      %463 = vmatmul.mubr.bf16.gmra.mrb[0].mxu0 %v374
      %v464 = vpop.f32.mrb[0].mxu0
      %v465 = vadd.f32 %v368, %v464
      %v466 = vpop.f32.mrb[0].mxu0
      %v467 = vpop.f32.mrb[0].mxu0
      %v468 = vadd.f32 %v368, %v467
      %v469 = vpop.f32.mrb[0].mxu0
      %470 = vmatprep.mubr.bf16.mxu0 0
      %471 = vmatmul.mubr.bf16.gmra.mrb[0].mxu0 %v377
      %v472 = vpop.f32.mrb[0].mxu0
      %v473 = vadd.f32 %v368, %v472
      %v474 = vpop.f32.mrb[0].mxu0
      %v475 = vpop.f32.mrb[0].mxu0
      %v476 = vadd.f32 %v368, %v475
      %v477 = vpop.f32.mrb[0].mxu0
      %478 = vmatprep.mubr.bf16.mxu0 0
      %479 = vmatmul.mubr.bf16.gmra.mrb[0].mxu0 %v380
      %v480 = vpop.f32.mrb[0].mxu0
      %v481 = vadd.f32 %v368, %v480
      %v482 = vpop.f32.mrb[0].mxu0
      %v483 = vpop.f32.mrb[0].mxu0
      %v484 = vadd.f32 %v368, %v483
      %v485 = vpop.f32.mrb[0].mxu0
      %486 = vmatprep.mubr.bf16.mxu0 0
      %487 = vmatmul.mubr.bf16.gmra.mrb[0].mxu0 %v383
      %v488 = vpop.f32.mrb[0].mxu0
      %v489 = vadd.f32 %v368, %v488
      %v490 = vpop.f32.mrb[0].mxu0
      %v491 = vpop.f32.mrb[0].mxu0
      %v492 = vadd.f32 %v368, %v491
      %v493 = vpop.f32.mrb[0].mxu0
      %494 = vmatprep.mubr.bf16.mxu0 0
      %495 = vmatmul.mubr.bf16.gmra.mrb[0].mxu0 %v386
      %v496 = vpop.f32.mrb[0].mxu0
      %v497 = vadd.f32 %v368, %v496
      %v498 = vpop.f32.mrb[0].mxu0
      %v499 = vpop.f32.mrb[0].mxu0
      %v500 = vadd.f32 %v368, %v499
      %v501 = vpop.f32.mrb[0].mxu0
      %502 = vmatprep.mubr.bf16.mxu0 0
      %503 = vmatmul.mubr.bf16.gmra.mrb[0].mxu0 %v389
      %v504 = vpop.f32.mrb[0].mxu0
      %v505 = vadd.f32 %v368, %v504
      %v506 = vpop.f32.mrb[0].mxu0
      %v507 = vpop.f32.mrb[0].mxu0
      %v508 = vadd.f32 %v368, %v507
      %v509 = vpop.f32.mrb[0].mxu0
      %510 = vmatprep.mubr.bf16.mxu0 0
      %511 = vmatmul.mubr.bf16.gmra.mrb[0].mxu0 %v392
      %v512 = vpop.f32.mrb[0].mxu0
      %v513 = vadd.f32 %v368, %v512
      %v514 = vpop.f32.mrb[0].mxu0
      %v515 = vpop.f32.mrb[0].mxu0
      %v516 = vadd.f32 %v368, %v515
      %v517 = vpop.f32.mrb[0].mxu0
      %518 = vmatprep.mubr.bf16.mxu0 0
      %519 = vmatmul.mubr.bf16.gmra.mrb[0].mxu0 %v395
      %v520 = vpop.f32.mrb[0].mxu0
      %v521 = vadd.f32 %v368, %v520
      %v522 = vpop.f32.mrb[0].mxu0
      %v523 = vpop.f32.mrb[0].mxu0
      %v524 = vadd.f32 %v368, %v523
      %v525 = vpop.f32.mrb[0].mxu0
      %526 = vmatprep.mubr.bf16.mxu0 0
      %527 = vmatmul.mubr.bf16.gmra.mrb[0].mxu0 %v398
      %v528 = vpop.f32.mrb[0].mxu0
      %v529 = vadd.f32 %v368, %v528
      %v530 = vpop.f32.mrb[0].mxu0
      %v531 = vpop.f32.mrb[0].mxu0
      %v532 = vadd.f32 %v368, %v531
      %v533 = vpop.f32.mrb[0].mxu0
      %534 = vmatprep.mubr.bf16.mxu0 0
      %535 = vmatmul.mubr.bf16.gmra.mrb[0].mxu0 %v401
      %v536 = vpop.f32.mrb[0].mxu0
      %v537 = vadd.f32 %v368, %v536
      %v538 = vpop.f32.mrb[0].mxu0
      %v539 = vpop.f32.mrb[0].mxu0
      %v540 = vadd.f32 %v368, %v539
      %v541 = vpop.f32.mrb[0].mxu0
      %542 = vmatprep.mubr.bf16.mxu0 0
      %543 = vmatmul.mubr.bf16.gmra.mrb[0].mxu0 %v404
      %v544 = vpop.f32.mrb[0].mxu0
      %v545 = vadd.f32 %v368, %v544
      %v546 = vpop.f32.mrb[0].mxu0
      %v547 = vpop.f32.mrb[0].mxu0
      %v548 = vadd.f32 %v368, %v547
      %v549 = vpop.f32.mrb[0].mxu0
      %550 = vmatprep.mubr.bf16.mxu0 0
      %551 = vmatmul.mubr.bf16.gmra.mrb[0].mxu0 %v407
      %v552 = vpop.f32.mrb[0].mxu0
      %v553 = vadd.f32 %v368, %v552
      %v554 = vpop.f32.mrb[0].mxu0
      %v555 = vpop.f32.mrb[0].mxu0
      %v556 = vadd.f32 %v368, %v555
      %v557 = vpop.f32.mrb[0].mxu0
      %558 = vmatprep.mubr.bf16.mxu0 0
      %559 = vmatmul.mubr.bf16.gmra.mrb[0].mxu0 %v410
      %v560 = vpop.f32.mrb[0].mxu0
      %v561 = vadd.f32 %v368, %v560
      %v562 = vpop.f32.mrb[0].mxu0
      %v563 = vpop.f32.mrb[0].mxu0
      %v564 = vadd.f32 %v368, %v563
      %v565 = vpop.f32.mrb[0].mxu0
      %566 = vmatprep.mubr.bf16.mxu0 0
      %567 = vmatmul.mubr.bf16.gmra.mrb[0].mxu0 %v413
      %v568 = vpop.f32.mrb[0].mxu0
      %v569 = vadd.f32 %v368, %v568
      %v570 = vpop.f32.mrb[0].mxu0
      %v571 = vpop.f32.mrb[0].mxu0
      %v572 = vadd.f32 %v368, %v571
      %v573 = vpop.f32.mrb[0].mxu0
      %574 = vmatprep.mubr.bf16.mxu0 0
      %575 = vmatmul.mubr.bf16.gmra.mrb[0].mxu0 %v416
      %v576 = vpop.f32.mrb[0].mxu0
      %v577 = vadd.f32 %v368, %v576
      %v578 = vpop.f32.mrb[0].mxu0
      %v579 = vpop.f32.mrb[0].mxu0
      %v580 = vadd.f32 %v368, %v579
      %v581 = vpop.f32.mrb[0].mxu0
      %582 = vdwg.mxu0
      %583 = vst.msk [vmem:[%s194] sm:$0xff] %vm330, %v457
      %584 = vst.msk [vmem:[%s194 + $0x8] sm:$0xff] %vm330, %v460
      %585 = vst.msk [vmem:[%s194 + $0x10] sm:$0xff] %vm330, %v465
      %586 = vst.msk [vmem:[%s194 + $0x18] sm:$0xff] %vm330, %v468
      %587 = vst.msk [vmem:[%s194 + $0x20] sm:$0xff] %vm330, %v473
      %588 = vst.msk [vmem:[%s194 + $0x28] sm:$0xff] %vm330, %v476
      %589 = vst.msk [vmem:[%s194 + $0x30] sm:$0xff] %vm330, %v481
      %590 = vst.msk [vmem:[%s194 + $0x38] sm:$0xff] %vm330, %v484
      %591 = vst.msk [vmem:[%s194 + $0x40] sm:$0xff] %vm330, %v489
      %592 = vst.msk [vmem:[%s194 + $0x48] sm:$0xff] %vm330, %v492
      %593 = vst.msk [vmem:[%s194 + $0x50] sm:$0xff] %vm330, %v497
      %594 = vst.msk [vmem:[%s194 + $0x58] sm:$0xff] %vm330, %v500
      %595 = vst.msk [vmem:[%s194 + $0x60] sm:$0xff] %vm330, %v505
      %596 = vst.msk [vmem:[%s194 + $0x68] sm:$0xff] %vm330, %v508
      %597 = vst.msk [vmem:[%s194 + $0x70] sm:$0xff] %vm330, %v513
      %598 = vst.msk [vmem:[%s194 + $0x78] sm:$0xff] %vm330, %v516
      %599 = vst.msk [vmem:[%s194 + $0x80] sm:$0xff] %vm330, %v521
      %600 = vst.msk [vmem:[%s194 + $0x88] sm:$0xff] %vm330, %v524
      %601 = vst.msk [vmem:[%s194 + $0x90] sm:$0xff] %vm330, %v529
      %602 = vst.msk [vmem:[%s194 + $0x98] sm:$0xff] %vm330, %v532
      %603 = vst.msk [vmem:[%s194 + $0xa0] sm:$0xff] %vm330, %v537
      %604 = vst.msk [vmem:[%s194 + $0xa8] sm:$0xff] %vm330, %v540
      %605 = vst.msk [vmem:[%s194 + $0xb0] sm:$0xff] %vm330, %v545
      %606 = vst.msk [vmem:[%s194 + $0xb8] sm:$0xff] %vm330, %v548
      %607 = vst.msk [vmem:[%s194 + $0xc0] sm:$0xff] %vm330, %v553
      %608 = vst.msk [vmem:[%s194 + $0xc8] sm:$0xff] %vm330, %v556
      %609 = vst.msk [vmem:[%s194 + $0xd0] sm:$0xff] %vm330, %v561
      %610 = vst.msk [vmem:[%s194 + $0xd8] sm:$0xff] %vm330, %v564
      %611 = vst.msk [vmem:[%s194 + $0xe0] sm:$0xff] %vm330, %v569
      %612 = vst.msk [vmem:[%s194 + $0xe8] sm:$0xff] %vm330, %v572
      %613 = vst.msk [vmem:[%s194 + $0xf0] sm:$0xff] %vm330, %v577
      %614 = vst.msk [vmem:[%s194 + $0xf8] sm:$0xff] %vm330, %v580
      %v615 = vld [vmem:[%s201] sm:$0xf]
      %v616 = vld [vmem:[%s201 + $0x4] sm:$0xf]
      %v617 = vld [vmem:[%s201 + $0x8] sm:$0x1]
      %v618 = vld [vmem:[%s201 + $0xc] sm:$0xf]
      %v619 = vld [vmem:[%s201 + $0x10] sm:$0xf]
      %v620 = vld [vmem:[%s201 + $0x14] sm:$0x1]
      %v621 = vld [vmem:[%s201 + $0x18] sm:$0xf]
      %v622 = vld [vmem:[%s201 + $0x1c] sm:$0xf]
      %v623 = vld [vmem:[%s201 + $0x20] sm:$0x1]
      %v624 = vld [vmem:[%s201 + $0x24] sm:$0xf]
      %v625 = vld [vmem:[%s201 + $0x28] sm:$0xf]
      %v626 = vld [vmem:[%s201 + $0x2c] sm:$0x1]
      %v627 = vld [vmem:[%s201 + $0x30] sm:$0xf]
      %v628 = vld [vmem:[%s201 + $0x34] sm:$0xf]
      %v629 = vld [vmem:[%s201 + $0x38] sm:$0x1]
      %v630 = vld [vmem:[%s201 + $0x3c] sm:$0xf]
      %v631 = vld [vmem:[%s201 + $0x40] sm:$0xf]
      %v632 = vld [vmem:[%s201 + $0x44] sm:$0x1]
      %v633 = vld [vmem:[%s201 + $0x48] sm:$0xf]
      %v634 = vld [vmem:[%s201 + $0x4c] sm:$0xf]
      %v635 = vld [vmem:[%s201 + $0x50] sm:$0x1]
      %v636 = vld [vmem:[%s201 + $0x54] sm:$0xf]
      %v637 = vld [vmem:[%s201 + $0x58] sm:$0xf]
      %v638 = vld [vmem:[%s201 + $0x5c] sm:$0x1]
      %v639 = vld [vmem:[%s201 + $0x60] sm:$0xf]
      %v640 = vld [vmem:[%s201 + $0x64] sm:$0xf]
      %v641 = vld [vmem:[%s201 + $0x68] sm:$0x1]
      %v642 = vld [vmem:[%s201 + $0x6c] sm:$0xf]
      %v643 = vld [vmem:[%s201 + $0x70] sm:$0xf]
      %v644 = vld [vmem:[%s201 + $0x74] sm:$0x1]
      %v645 = vld [vmem:[%s201 + $0x78] sm:$0xf]
      %v646 = vld [vmem:[%s201 + $0x7c] sm:$0xf]
      %v647 = vld [vmem:[%s201 + $0x80] sm:$0x1]
      %v648 = vld [vmem:[%s201 + $0x84] sm:$0xf]
      %v649 = vld [vmem:[%s201 + $0x88] sm:$0xf]
      %v650 = vld [vmem:[%s201 + $0x8c] sm:$0x1]
      %v651 = vld [vmem:[%s201 + $0x90] sm:$0xf]
      %v652 = vld [vmem:[%s201 + $0x94] sm:$0xf]
      %v653 = vld [vmem:[%s201 + $0x98] sm:$0x1]
      %v654 = vld [vmem:[%s201 + $0x9c] sm:$0xf]
      %v655 = vld [vmem:[%s201 + $0xa0] sm:$0xf]
      %v656 = vld [vmem:[%s201 + $0xa4] sm:$0x1]
      %v657 = vld [vmem:[%s201 + $0xa8] sm:$0xf]
      %v658 = vld [vmem:[%s201 + $0xac] sm:$0xf]
      %v659 = vld [vmem:[%s201 + $0xb0] sm:$0x1]
      %v660 = vld [vmem:[%s201 + $0xb4] sm:$0xf]
      %v661 = vld [vmem:[%s201 + $0xb8] sm:$0xf]
      %v662 = vld [vmem:[%s201 + $0xbc] sm:$0x1]
      %vm663 = vsmask.f32 3328
      %vm664 = vsmask.f32 7440
      %vm665 = vmor %vm663, %vm664
      %v667 = vshrl.u32 %v615, 16
      %v669 = vrot.slane %v667, 4
      %v670 = vshll.u32 %v615, 16
      %v672 = vrot.slane %v670, 5
      %v673 = vor.u32 %v669, %v672
      %v674 = vrot.slane %v673, 4
      %v676 = vshll.u32 %v616, 16
      %v678 = vrot.slane %v676, 5
      %v679 = vsel %vm665, %v674, %v678
      %v680 = vshrl.u32 %v616, 16
      %v682 = vrot.slane %v680, 4
      %v683 = vor.u32 %v682, %v678
      %v684 = vrot.slane %v683, 4
      %v686 = vshll.u32 %v617, 16
      %v688 = vrot.slane %v686, 5
      %v689 = vsel %vm665, %v684, %v688
      %v691 = vshrl.u32 %v618, 16
      %v693 = vrot.slane %v691, 4
      %v694 = vshll.u32 %v618, 16
      %v696 = vrot.slane %v694, 5
      %v697 = vor.u32 %v693, %v696
      %v698 = vrot.slane %v697, 4
      %v700 = vshll.u32 %v619, 16
      %v702 = vrot.slane %v700, 5
      %v703 = vsel %vm665, %v698, %v702
      %v704 = vshrl.u32 %v619, 16
      %v706 = vrot.slane %v704, 4
      %v707 = vor.u32 %v706, %v702
      %v708 = vrot.slane %v707, 4
      %v710 = vshll.u32 %v620, 16
      %v712 = vrot.slane %v710, 5
      %v713 = vsel %vm665, %v708, %v712
      %v715 = vshrl.u32 %v621, 16
      %v717 = vrot.slane %v715, 4
      %v718 = vshll.u32 %v621, 16
      %v720 = vrot.slane %v718, 5
      %v721 = vor.u32 %v717, %v720
      %v722 = vrot.slane %v721, 4
      %v724 = vshll.u32 %v622, 16
      %v726 = vrot.slane %v724, 5
      %v727 = vsel %vm665, %v722, %v726
      %v728 = vshrl.u32 %v622, 16
      %v730 = vrot.slane %v728, 4
      %v731 = vor.u32 %v730, %v726
      %v732 = vrot.slane %v731, 4
      %v734 = vshll.u32 %v623, 16
      %v736 = vrot.slane %v734, 5
      %v737 = vsel %vm665, %v732, %v736
      %v739 = vshrl.u32 %v624, 16
      %v741 = vrot.slane %v739, 4
      %v742 = vshll.u32 %v624, 16
      %v744 = vrot.slane %v742, 5
      %v745 = vor.u32 %v741, %v744
      %v746 = vrot.slane %v745, 4
      %v748 = vshll.u32 %v625, 16
      %v750 = vrot.slane %v748, 5
      %v751 = vsel %vm665, %v746, %v750
      %v752 = vshrl.u32 %v625, 16
      %v754 = vrot.slane %v752, 4
      %v755 = vor.u32 %v754, %v750
      %v756 = vrot.slane %v755, 4
      %v758 = vshll.u32 %v626, 16
      %v760 = vrot.slane %v758, 5
      %v761 = vsel %vm665, %v756, %v760
      %v763 = vshrl.u32 %v627, 16
      %v765 = vrot.slane %v763, 4
      %v766 = vshll.u32 %v627, 16
      %v768 = vrot.slane %v766, 5
      %v769 = vor.u32 %v765, %v768
      %v770 = vrot.slane %v769, 4
      %v772 = vshll.u32 %v628, 16
      %v774 = vrot.slane %v772, 5
      %v775 = vsel %vm665, %v770, %v774
      %v776 = vshrl.u32 %v628, 16
      %v778 = vrot.slane %v776, 4
      %v779 = vor.u32 %v778, %v774
      %v780 = vrot.slane %v779, 4
      %v782 = vshll.u32 %v629, 16
      %v784 = vrot.slane %v782, 5
      %v785 = vsel %vm665, %v780, %v784
      %v787 = vshrl.u32 %v630, 16
      %v789 = vrot.slane %v787, 4
      %v790 = vshll.u32 %v630, 16
      %v792 = vrot.slane %v790, 5
      %v793 = vor.u32 %v789, %v792
      %v794 = vrot.slane %v793, 4
      %v796 = vshll.u32 %v631, 16
      %v798 = vrot.slane %v796, 5
      %v799 = vsel %vm665, %v794, %v798
      %v800 = vshrl.u32 %v631, 16
      %v802 = vrot.slane %v800, 4
      %v803 = vor.u32 %v802, %v798
      %v804 = vrot.slane %v803, 4
      %v806 = vshll.u32 %v632, 16
      %v808 = vrot.slane %v806, 5
      %v809 = vsel %vm665, %v804, %v808
      %v811 = vshrl.u32 %v633, 16
      %v813 = vrot.slane %v811, 4
      %v814 = vshll.u32 %v633, 16
      %v816 = vrot.slane %v814, 5
      %v817 = vor.u32 %v813, %v816
      %v818 = vrot.slane %v817, 4
      %v820 = vshll.u32 %v634, 16
      %v822 = vrot.slane %v820, 5
      %v823 = vsel %vm665, %v818, %v822
      %v824 = vshrl.u32 %v634, 16
      %v826 = vrot.slane %v824, 4
      %v827 = vor.u32 %v826, %v822
      %v828 = vrot.slane %v827, 4
      %v830 = vshll.u32 %v635, 16
      %v832 = vrot.slane %v830, 5
      %v833 = vsel %vm665, %v828, %v832
      %v835 = vshrl.u32 %v636, 16
      %v837 = vrot.slane %v835, 4
      %v838 = vshll.u32 %v636, 16
      %v840 = vrot.slane %v838, 5
      %v841 = vor.u32 %v837, %v840
      %v842 = vrot.slane %v841, 4
      %v844 = vshll.u32 %v637, 16
      %v846 = vrot.slane %v844, 5
      %v847 = vsel %vm665, %v842, %v846
      %v848 = vshrl.u32 %v637, 16
      %v850 = vrot.slane %v848, 4
      %v851 = vor.u32 %v850, %v846
      %v852 = vrot.slane %v851, 4
      %v854 = vshll.u32 %v638, 16
      %v856 = vrot.slane %v854, 5
      %v857 = vsel %vm665, %v852, %v856
      %v859 = vshrl.u32 %v639, 16
      %v861 = vrot.slane %v859, 4
      %v862 = vshll.u32 %v639, 16
      %v864 = vrot.slane %v862, 5
      %v865 = vor.u32 %v861, %v864
      %v866 = vrot.slane %v865, 4
      %v868 = vshll.u32 %v640, 16
      %v870 = vrot.slane %v868, 5
      %v871 = vsel %vm665, %v866, %v870
      %v872 = vshrl.u32 %v640, 16
      %v874 = vrot.slane %v872, 4
      %v875 = vor.u32 %v874, %v870
      %v876 = vrot.slane %v875, 4
      %v878 = vshll.u32 %v641, 16
      %v880 = vrot.slane %v878, 5
      %v881 = vsel %vm665, %v876, %v880
      %v883 = vshrl.u32 %v642, 16
      %v885 = vrot.slane %v883, 4
      %v886 = vshll.u32 %v642, 16
      %v888 = vrot.slane %v886, 5
      %v889 = vor.u32 %v885, %v888
      %v890 = vrot.slane %v889, 4
      %v892 = vshll.u32 %v643, 16
      %v894 = vrot.slane %v892, 5
      %v895 = vsel %vm665, %v890, %v894
      %v896 = vshrl.u32 %v643, 16
      %v898 = vrot.slane %v896, 4
      %v899 = vor.u32 %v898, %v894
      %v900 = vrot.slane %v899, 4
      %v902 = vshll.u32 %v644, 16
      %v904 = vrot.slane %v902, 5
      %v905 = vsel %vm665, %v900, %v904
      %v907 = vshrl.u32 %v645, 16
      %v909 = vrot.slane %v907, 4
      %v910 = vshll.u32 %v645, 16
      %v912 = vrot.slane %v910, 5
      %v913 = vor.u32 %v909, %v912
      %v914 = vrot.slane %v913, 4
      %v916 = vshll.u32 %v646, 16
      %v918 = vrot.slane %v916, 5
      %v919 = vsel %vm665, %v914, %v918
      %v920 = vshrl.u32 %v646, 16
      %v922 = vrot.slane %v920, 4
      %v923 = vor.u32 %v922, %v918
      %v924 = vrot.slane %v923, 4
      %v926 = vshll.u32 %v647, 16
      %v928 = vrot.slane %v926, 5
      %v929 = vsel %vm665, %v924, %v928
      %v931 = vshrl.u32 %v648, 16
      %v933 = vrot.slane %v931, 4
      %v934 = vshll.u32 %v648, 16
      %v936 = vrot.slane %v934, 5
      %v937 = vor.u32 %v933, %v936
      %v938 = vrot.slane %v937, 4
      %v940 = vshll.u32 %v649, 16
      %v942 = vrot.slane %v940, 5
      %v943 = vsel %vm665, %v938, %v942
      %v944 = vshrl.u32 %v649, 16
      %v946 = vrot.slane %v944, 4
      %v947 = vor.u32 %v946, %v942
      %v948 = vrot.slane %v947, 4
      %v950 = vshll.u32 %v650, 16
      %v952 = vrot.slane %v950, 5
      %v953 = vsel %vm665, %v948, %v952
      %v955 = vshrl.u32 %v651, 16
      %v957 = vrot.slane %v955, 4
      %v958 = vshll.u32 %v651, 16
      %v960 = vrot.slane %v958, 5
      %v961 = vor.u32 %v957, %v960
      %v962 = vrot.slane %v961, 4
      %v964 = vshll.u32 %v652, 16
      %v966 = vrot.slane %v964, 5
      %v967 = vsel %vm665, %v962, %v966
      %v968 = vshrl.u32 %v652, 16
      %v970 = vrot.slane %v968, 4
      %v971 = vor.u32 %v970, %v966
      %v972 = vrot.slane %v971, 4
      %v974 = vshll.u32 %v653, 16
      %v976 = vrot.slane %v974, 5
      %v977 = vsel %vm665, %v972, %v976
      %v979 = vshrl.u32 %v654, 16
      %v981 = vrot.slane %v979, 4
      %v982 = vshll.u32 %v654, 16
      %v984 = vrot.slane %v982, 5
      %v985 = vor.u32 %v981, %v984
      %v986 = vrot.slane %v985, 4
      %v988 = vshll.u32 %v655, 16
      %v990 = vrot.slane %v988, 5
      %v991 = vsel %vm665, %v986, %v990
      %v992 = vshrl.u32 %v655, 16
      %v994 = vrot.slane %v992, 4
      %v995 = vor.u32 %v994, %v990
      %v996 = vrot.slane %v995, 4
      %v998 = vshll.u32 %v656, 16
      %v1000 = vrot.slane %v998, 5
      %v1001 = vsel %vm665, %v996, %v1000
      %v1003 = vshrl.u32 %v657, 16
      %v1005 = vrot.slane %v1003, 4
      %v1006 = vshll.u32 %v657, 16
      %v1008 = vrot.slane %v1006, 5
      %v1009 = vor.u32 %v1005, %v1008
      %v1010 = vrot.slane %v1009, 4
      %v1012 = vshll.u32 %v658, 16
      %v1014 = vrot.slane %v1012, 5
      %v1015 = vsel %vm665, %v1010, %v1014
      %v1016 = vshrl.u32 %v658, 16
      %v1018 = vrot.slane %v1016, 4
      %v1019 = vor.u32 %v1018, %v1014
      %v1020 = vrot.slane %v1019, 4
      %v1022 = vshll.u32 %v659, 16
      %v1024 = vrot.slane %v1022, 5
      %v1025 = vsel %vm665, %v1020, %v1024
      %v1027 = vshrl.u32 %v660, 16
      %v1029 = vrot.slane %v1027, 4
      %v1030 = vshll.u32 %v660, 16
      %v1032 = vrot.slane %v1030, 5
      %v1033 = vor.u32 %v1029, %v1032
      %v1034 = vrot.slane %v1033, 4
      %v1036 = vshll.u32 %v661, 16
      %v1038 = vrot.slane %v1036, 5
      %v1039 = vsel %vm665, %v1034, %v1038
      %v1040 = vshrl.u32 %v661, 16
      %v1042 = vrot.slane %v1040, 4
      %v1043 = vor.u32 %v1042, %v1038
      %v1044 = vrot.slane %v1043, 4
      %v1046 = vshll.u32 %v662, 16
      %v1048 = vrot.slane %v1046, 5
      %v1049 = vsel %vm665, %v1044, %v1048
      %v1050 = vunpack.c.l.b16 %v679
      %v1051 = vunpack.c.l.b16 %v689
      %v1052 = vunpack.c.l.b16 %v703
      %v1053 = vunpack.c.l.b16 %v713
      %v1054 = vunpack.c.l.b16 %v727
      %v1055 = vunpack.c.l.b16 %v737
      %v1056 = vunpack.c.l.b16 %v751
      %v1057 = vunpack.c.l.b16 %v761
      %v1058 = vunpack.c.l.b16 %v775
      %v1059 = vunpack.c.l.b16 %v785
      %v1060 = vunpack.c.l.b16 %v799
      %v1061 = vunpack.c.l.b16 %v809
      %v1062 = vunpack.c.l.b16 %v823
      %v1063 = vunpack.c.l.b16 %v833
      %v1064 = vunpack.c.l.b16 %v847
      %v1065 = vunpack.c.l.b16 %v857
      %v1066 = vunpack.c.l.b16 %v871
      %v1067 = vunpack.c.l.b16 %v881
      %v1068 = vunpack.c.l.b16 %v895
      %v1069 = vunpack.c.l.b16 %v905
      %v1070 = vunpack.c.l.b16 %v919
      %v1071 = vunpack.c.l.b16 %v929
      %v1072 = vunpack.c.l.b16 %v943
      %v1073 = vunpack.c.l.b16 %v953
      %v1074 = vunpack.c.l.b16 %v967
      %v1075 = vunpack.c.l.b16 %v977
      %v1076 = vunpack.c.l.b16 %v991
      %v1077 = vunpack.c.l.b16 %v1001
      %v1078 = vunpack.c.l.b16 %v1015
      %v1079 = vunpack.c.l.b16 %v1025
      %v1080 = vunpack.c.l.b16 %v1039
      %v1081 = vunpack.c.l.b16 %v1049
      %v1082 = vpack.c.b16 %v1051, %v1050
      %v1083 = vpack.c.b16 %v1053, %v1052
      %v1084 = vpack.c.b16 %v1055, %v1054
      %v1085 = vpack.c.b16 %v1057, %v1056
      %v1086 = vpack.c.b16 %v1059, %v1058
      %v1087 = vpack.c.b16 %v1061, %v1060
      %v1088 = vpack.c.b16 %v1063, %v1062
      %v1089 = vpack.c.b16 %v1065, %v1064
      %v1090 = vpack.c.b16 %v1067, %v1066
      %v1091 = vpack.c.b16 %v1069, %v1068
      %v1092 = vpack.c.b16 %v1071, %v1070
      %v1093 = vpack.c.b16 %v1073, %v1072
      %v1094 = vpack.c.b16 %v1075, %v1074
      %v1095 = vpack.c.b16 %v1077, %v1076
      %v1096 = vpack.c.b16 %v1079, %v1078
      %v1097 = vpack.c.b16 %v1081, %v1080
      %1114 = vst.msk [vmem:[#allocation2] sm:$0xff] %vm330, %v1082
      %1115 = vst.msk [vmem:[#allocation2 + $0x8] sm:$0xff] %vm330, %v1083
      %1116 = vst.msk [vmem:[#allocation2 + $0x10] sm:$0xff] %vm330, %v1084
      %1117 = vst.msk [vmem:[#allocation2 + $0x18] sm:$0xff] %vm330, %v1085
      %1118 = vst.msk [vmem:[#allocation2 + $0x20] sm:$0xff] %vm330, %v1086
      %1119 = vst.msk [vmem:[#allocation2 + $0x28] sm:$0xff] %vm330, %v1087
      %1120 = vst.msk [vmem:[#allocation2 + $0x30] sm:$0xff] %vm330, %v1088
      %1121 = vst.msk [vmem:[#allocation2 + $0x38] sm:$0xff] %vm330, %v1089
      %1122 = vst.msk [vmem:[#allocation2 + $0x40] sm:$0xff] %vm330, %v1090
      %1123 = vst.msk [vmem:[#allocation2 + $0x48] sm:$0xff] %vm330, %v1091
      %1124 = vst.msk [vmem:[#allocation2 + $0x50] sm:$0xff] %vm330, %v1092
      %1125 = vst.msk [vmem:[#allocation2 + $0x58] sm:$0xff] %vm330, %v1093
      %1126 = vst.msk [vmem:[#allocation2 + $0x60] sm:$0xff] %vm330, %v1094
      %1127 = vst.msk [vmem:[#allocation2 + $0x68] sm:$0xff] %vm330, %v1095
      %1128 = vst.msk [vmem:[#allocation2 + $0x70] sm:$0xff] %vm330, %v1096
      %1129 = vst.msk [vmem:[#allocation2 + $0x78] sm:$0xff] %vm330, %v1097
      %v1130 = vld [vmem:[%s201] sm:$0xf]
      %v1131 = vld [vmem:[%s201 + $0x4] sm:$0xf]
      %v1132 = vld [vmem:[%s201 + $0xc] sm:$0xf]
      %v1133 = vld [vmem:[%s201 + $0x10] sm:$0xf]
      %v1134 = vld [vmem:[%s201 + $0x18] sm:$0xf]
      %v1135 = vld [vmem:[%s201 + $0x1c] sm:$0xf]
      %v1136 = vld [vmem:[%s201 + $0x24] sm:$0xf]
      %v1137 = vld [vmem:[%s201 + $0x28] sm:$0xf]
      %v1138 = vld [vmem:[%s201 + $0x30] sm:$0xf]
      %v1139 = vld [vmem:[%s201 + $0x34] sm:$0xf]
      %v1140 = vld [vmem:[%s201 + $0x3c] sm:$0xf]
      %v1141 = vld [vmem:[%s201 + $0x40] sm:$0xf]
      %v1142 = vld [vmem:[%s201 + $0x48] sm:$0xf]
      %v1143 = vld [vmem:[%s201 + $0x4c] sm:$0xf]
      %v1144 = vld [vmem:[%s201 + $0x54] sm:$0xf]
      %v1145 = vld [vmem:[%s201 + $0x58] sm:$0xf]
      %v1146 = vld [vmem:[%s201 + $0x60] sm:$0xf]
      %v1147 = vld [vmem:[%s201 + $0x64] sm:$0xf]
      %v1148 = vld [vmem:[%s201 + $0x6c] sm:$0xf]
      %v1149 = vld [vmem:[%s201 + $0x70] sm:$0xf]
      %v1150 = vld [vmem:[%s201 + $0x78] sm:$0xf]
      %v1151 = vld [vmem:[%s201 + $0x7c] sm:$0xf]
      %v1152 = vld [vmem:[%s201 + $0x84] sm:$0xf]
      %v1153 = vld [vmem:[%s201 + $0x88] sm:$0xf]
      %v1154 = vld [vmem:[%s201 + $0x90] sm:$0xf]
      %v1155 = vld [vmem:[%s201 + $0x94] sm:$0xf]
      %v1156 = vld [vmem:[%s201 + $0x9c] sm:$0xf]
      %v1157 = vld [vmem:[%s201 + $0xa0] sm:$0xf]
      %v1158 = vld [vmem:[%s201 + $0xa8] sm:$0xf]
      %v1159 = vld [vmem:[%s201 + $0xac] sm:$0xf]
      %v1160 = vld [vmem:[%s201 + $0xb4] sm:$0xf]
      %v1161 = vld [vmem:[%s201 + $0xb8] sm:$0xf]
      %v1194 = vunpack.c.l.b16 %v1130
      %v1195 = vunpack.c.l.b16 %v1131
      %v1196 = vunpack.c.l.b16 %v1132
      %v1197 = vunpack.c.l.b16 %v1133
      %v1198 = vunpack.c.l.b16 %v1134
      %v1199 = vunpack.c.l.b16 %v1135
      %v1200 = vunpack.c.l.b16 %v1136
      %v1201 = vunpack.c.l.b16 %v1137
      %v1202 = vunpack.c.l.b16 %v1138
      %v1203 = vunpack.c.l.b16 %v1139
      %v1204 = vunpack.c.l.b16 %v1140
      %v1205 = vunpack.c.l.b16 %v1141
      %v1206 = vunpack.c.l.b16 %v1142
      %v1207 = vunpack.c.l.b16 %v1143
      %v1208 = vunpack.c.l.b16 %v1144
      %v1209 = vunpack.c.l.b16 %v1145
      %v1210 = vunpack.c.l.b16 %v1146
      %v1211 = vunpack.c.l.b16 %v1147
      %v1212 = vunpack.c.l.b16 %v1148
      %v1213 = vunpack.c.l.b16 %v1149
      %v1214 = vunpack.c.l.b16 %v1150
      %v1215 = vunpack.c.l.b16 %v1151
      %v1216 = vunpack.c.l.b16 %v1152
      %v1217 = vunpack.c.l.b16 %v1153
      %v1218 = vunpack.c.l.b16 %v1154
      %v1219 = vunpack.c.l.b16 %v1155
      %v1220 = vunpack.c.l.b16 %v1156
      %v1221 = vunpack.c.l.b16 %v1157
      %v1222 = vunpack.c.l.b16 %v1158
      %v1223 = vunpack.c.l.b16 %v1159
      %v1224 = vunpack.c.l.b16 %v1160
      %v1225 = vunpack.c.l.b16 %v1161
      %v1226 = vpack.c.b16 %v1195, %v1194
      %v1227 = vpack.c.b16 %v1197, %v1196
      %v1228 = vpack.c.b16 %v1199, %v1198
      %v1229 = vpack.c.b16 %v1201, %v1200
      %v1230 = vpack.c.b16 %v1203, %v1202
      %v1231 = vpack.c.b16 %v1205, %v1204
      %v1232 = vpack.c.b16 %v1207, %v1206
      %v1233 = vpack.c.b16 %v1209, %v1208
      %v1234 = vpack.c.b16 %v1211, %v1210
      %v1235 = vpack.c.b16 %v1213, %v1212
      %v1236 = vpack.c.b16 %v1215, %v1214
      %v1237 = vpack.c.b16 %v1217, %v1216
      %v1238 = vpack.c.b16 %v1219, %v1218
      %v1239 = vpack.c.b16 %v1221, %v1220
      %v1240 = vpack.c.b16 %v1223, %v1222
      %v1241 = vpack.c.b16 %v1225, %v1224
      %1242 = vrot.lane.b32.xlu0 %v1226, 8
      %v1243 = vpop.permute.xlu0 %1242
      %1244 = vrot.lane.b32.xlu0 %v1227, 8
      %v1245 = vpop.permute.xlu0 %1244
      %1246 = vrot.lane.b32.xlu0 %v1228, 8
      %v1247 = vpop.permute.xlu0 %1246
      %1248 = vrot.lane.b32.xlu0 %v1229, 8
      %v1249 = vpop.permute.xlu0 %1248
      %1250 = vrot.lane.b32.xlu0 %v1230, 8
      %v1251 = vpop.permute.xlu0 %1250
      %1252 = vrot.lane.b32.xlu0 %v1231, 8
      %v1253 = vpop.permute.xlu0 %1252
      %1254 = vrot.lane.b32.xlu0 %v1232, 8
      %v1255 = vpop.permute.xlu0 %1254
      %1256 = vrot.lane.b32.xlu0 %v1233, 8
      %v1257 = vpop.permute.xlu0 %1256
      %1258 = vrot.lane.b32.xlu0 %v1234, 8
      %v1259 = vpop.permute.xlu0 %1258
      %1260 = vrot.lane.b32.xlu0 %v1235, 8
      %v1261 = vpop.permute.xlu0 %1260
      %1262 = vrot.lane.b32.xlu0 %v1236, 8
      %v1263 = vpop.permute.xlu0 %1262
      %1264 = vrot.lane.b32.xlu0 %v1237, 8
      %v1265 = vpop.permute.xlu0 %1264
      %1266 = vrot.lane.b32.xlu0 %v1238, 8
      %v1267 = vpop.permute.xlu0 %1266
      %1268 = vrot.lane.b32.xlu0 %v1239, 8
      %v1269 = vpop.permute.xlu0 %1268
      %1270 = vrot.lane.b32.xlu0 %v1240, 8
      %v1271 = vpop.permute.xlu0 %1270
      %1272 = vrot.lane.b32.xlu0 %v1241, 8
      %v1273 = vpop.permute.xlu0 %1272
      %vm1290 = vcmask 130112
      %1291 = vst.msk [vmem:[#allocation2] sm:$0xff] %vm1290, %v1243
      %1292 = vst.msk [vmem:[#allocation2 + $0x8] sm:$0xff] %vm1290, %v1245
      %1293 = vst.msk [vmem:[#allocation2 + $0x10] sm:$0xff] %vm1290, %v1247
      %1294 = vst.msk [vmem:[#allocation2 + $0x18] sm:$0xff] %vm1290, %v1249
      %1295 = vst.msk [vmem:[#allocation2 + $0x20] sm:$0xff] %vm1290, %v1251
      %1296 = vst.msk [vmem:[#allocation2 + $0x28] sm:$0xff] %vm1290, %v1253
      %1297 = vst.msk [vmem:[#allocation2 + $0x30] sm:$0xff] %vm1290, %v1255
      %1298 = vst.msk [vmem:[#allocation2 + $0x38] sm:$0xff] %vm1290, %v1257
      %1299 = vst.msk [vmem:[#allocation2 + $0x40] sm:$0xff] %vm1290, %v1259
      %1300 = vst.msk [vmem:[#allocation2 + $0x48] sm:$0xff] %vm1290, %v1261
      %1301 = vst.msk [vmem:[#allocation2 + $0x50] sm:$0xff] %vm1290, %v1263
      %1302 = vst.msk [vmem:[#allocation2 + $0x58] sm:$0xff] %vm1290, %v1265
      %1303 = vst.msk [vmem:[#allocation2 + $0x60] sm:$0xff] %vm1290, %v1267
      %1304 = vst.msk [vmem:[#allocation2 + $0x68] sm:$0xff] %vm1290, %v1269
      %1305 = vst.msk [vmem:[#allocation2 + $0x70] sm:$0xff] %vm1290, %v1271
      %1306 = vst.msk [vmem:[#allocation2 + $0x78] sm:$0xff] %vm1290, %v1273
      %v1307 = vld [vmem:[#allocation2] sm:$0xff]
      %v1308 = vld [vmem:[#allocation2 + $0x8] sm:$0xff]
      %v1309 = vld [vmem:[#allocation2 + $0x10] sm:$0xff]
      %v1310 = vld [vmem:[#allocation2 + $0x18] sm:$0xff]
      %v1311 = vld [vmem:[#allocation2 + $0x20] sm:$0xff]
      %v1312 = vld [vmem:[#allocation2 + $0x28] sm:$0xff]
      %v1313 = vld [vmem:[#allocation2 + $0x30] sm:$0xff]
      %v1314 = vld [vmem:[#allocation2 + $0x38] sm:$0xff]
      %v1315 = vld [vmem:[#allocation2 + $0x40] sm:$0xff]
      %v1316 = vld [vmem:[#allocation2 + $0x48] sm:$0xff]
      %v1317 = vld [vmem:[#allocation2 + $0x50] sm:$0xff]
      %v1318 = vld [vmem:[#allocation2 + $0x58] sm:$0xff]
      %v1319 = vld [vmem:[#allocation2 + $0x60] sm:$0xff]
      %v1320 = vld [vmem:[#allocation2 + $0x68] sm:$0xff]
      %v1321 = vld [vmem:[#allocation2 + $0x70] sm:$0xff]
      %v1322 = vld [vmem:[#allocation2 + $0x78] sm:$0xff]
      %v1323 = vld [vmem:[%s1 + $0x4] sm:$0xf]
      %v1324 = vld [vmem:[%s1 + $0x8] sm:$0xf]
      %v1327 = vunpack.c.l.b16 %v1323
      %v1328 = vunpack.c.l.b16 %v1324
      %v1329 = vpack.c.b16 %v1328, %v1327
      %vm1331 = vcmask 130048
      %v1333 = vsel %vm1331, %v1307, 0
      %v1336 = vsel %vm1331, %v1308, 0
      %v1339 = vsel %vm1331, %v1309, 0
      %v1342 = vsel %vm1331, %v1310, 0
      %v1345 = vsel %vm1331, %v1311, 0
      %v1348 = vsel %vm1331, %v1312, 0
      %v1351 = vsel %vm1331, %v1313, 0
      %v1354 = vsel %vm1331, %v1314, 0
      %v1357 = vsel %vm1331, %v1315, 0
      %v1360 = vsel %vm1331, %v1316, 0
      %v1363 = vsel %vm1331, %v1317, 0
      %v1366 = vsel %vm1331, %v1318, 0
      %v1369 = vsel %vm1331, %v1319, 0
      %v1372 = vsel %vm1331, %v1320, 0
      %v1375 = vsel %vm1331, %v1321, 0
      %v1378 = vsel %vm1331, %v1322, 0
      %1380 = vmatprep.subr.bf16.mxu0 0
      %1381 = vmatpush1.bf16.msra.mxu0 %v1329
      %1382 = vmatprep.subr.bf16.mxu0 0
      %1383 = vmatpush1.bf16.msra.mxu0 0
      %1384 = vmatprep.subr.bf16.mxu0 0
      %1385 = vmatpush1.bf16.msra.mxu0 0
      %1386 = vmatprep.subr.bf16.mxu0 0
      %1387 = vmatpush1.bf16.msra.mxu0 0
      %1388 = vmatprep.subr.bf16.mxu0 0
      %1389 = vmatpush1.bf16.msra.mxu0 0
      %1390 = vmatprep.subr.bf16.mxu0 0
      %1391 = vmatpush1.bf16.msra.mxu0 0
      %1392 = vmatprep.subr.bf16.mxu0 0
      %1393 = vmatpush1.bf16.msra.mxu0 0
      %1394 = vmatprep.subr.bf16.mxu0 0
      %1395 = vmatpush1.bf16.msra.mxu0 0
      %1396 = vmatprep.subr.bf16.mxu0 0
      %1397 = vmatpush1.bf16.msra.mxu0 0
      %1398 = vmatprep.subr.bf16.mxu0 0
      %1399 = vmatpush1.bf16.msra.mxu0 0
      %1400 = vmatprep.subr.bf16.mxu0 0
      %1401 = vmatpush1.bf16.msra.mxu0 0
      %1402 = vmatprep.subr.bf16.mxu0 0
      %1403 = vmatpush1.bf16.msra.mxu0 0
      %1404 = vmatprep.subr.bf16.mxu0 0
      %1405 = vmatpush1.bf16.msra.mxu0 0
      %1406 = vmatprep.subr.bf16.mxu0 0
      %1407 = vmatpush1.bf16.msra.mxu0 0
      %1408 = vmatprep.subr.bf16.mxu0 0
      %1409 = vmatpush1.bf16.msra.mxu0 0
      %1410 = vmatprep.subr.bf16.mxu0 0
      %1411 = vmatpush1.bf16.msra.mxu0 0
      %1412 = vmatprep.mubr.bf16.mxu0 0
      %1413 = vmatmul.mubr.bf16.gmra.mrb[0].mxu0 %v1333
      %v1414 = vpop.f32.mrb[0].mxu0
      %v1415 = vadd.f32 %v368, %v1414
      %v1416 = vpop.f32.mrb[0].mxu0
      %v1417 = vpop.f32.mrb[0].mxu0
      %v1418 = vadd.f32 %v368, %v1417
      %v1419 = vpop.f32.mrb[0].mxu0
      %1420 = vmatprep.mubr.bf16.mxu0 0
      %1421 = vmatmul.mubr.bf16.gmra.mrb[0].mxu0 %v1336
      %v1422 = vpop.f32.mrb[0].mxu0
      %v1423 = vadd.f32 %v368, %v1422
      %v1424 = vpop.f32.mrb[0].mxu0
      %v1425 = vpop.f32.mrb[0].mxu0
      %v1426 = vadd.f32 %v368, %v1425
      %v1427 = vpop.f32.mrb[0].mxu0
      %1428 = vmatprep.mubr.bf16.mxu0 0
      %1429 = vmatmul.mubr.bf16.gmra.mrb[0].mxu0 %v1339
      %v1430 = vpop.f32.mrb[0].mxu0
      %v1431 = vadd.f32 %v368, %v1430
      %v1432 = vpop.f32.mrb[0].mxu0
      %v1433 = vpop.f32.mrb[0].mxu0
      %v1434 = vadd.f32 %v368, %v1433
      %v1435 = vpop.f32.mrb[0].mxu0
      %1436 = vmatprep.mubr.bf16.mxu0 0
      %1437 = vmatmul.mubr.bf16.gmra.mrb[0].mxu0 %v1342
      %v1438 = vpop.f32.mrb[0].mxu0
      %v1439 = vadd.f32 %v368, %v1438
      %v1440 = vpop.f32.mrb[0].mxu0
      %v1441 = vpop.f32.mrb[0].mxu0
      %v1442 = vadd.f32 %v368, %v1441
      %v1443 = vpop.f32.mrb[0].mxu0
      %1444 = vmatprep.mubr.bf16.mxu0 0
      %1445 = vmatmul.mubr.bf16.gmra.mrb[0].mxu0 %v1345
      %v1446 = vpop.f32.mrb[0].mxu0
      %v1447 = vadd.f32 %v368, %v1446
      %v1448 = vpop.f32.mrb[0].mxu0
      %v1449 = vpop.f32.mrb[0].mxu0
      %v1450 = vadd.f32 %v368, %v1449
      %v1451 = vpop.f32.mrb[0].mxu0
      %1452 = vmatprep.mubr.bf16.mxu0 0
      %1453 = vmatmul.mubr.bf16.gmra.mrb[0].mxu0 %v1348
      %v1454 = vpop.f32.mrb[0].mxu0
      %v1455 = vadd.f32 %v368, %v1454
      %v1456 = vpop.f32.mrb[0].mxu0
      %v1457 = vpop.f32.mrb[0].mxu0
      %v1458 = vadd.f32 %v368, %v1457
      %v1459 = vpop.f32.mrb[0].mxu0
      %1460 = vmatprep.mubr.bf16.mxu0 0
      %1461 = vmatmul.mubr.bf16.gmra.mrb[0].mxu0 %v1351
      %v1462 = vpop.f32.mrb[0].mxu0
      %v1463 = vadd.f32 %v368, %v1462
      %v1464 = vpop.f32.mrb[0].mxu0
      %v1465 = vpop.f32.mrb[0].mxu0
      %v1466 = vadd.f32 %v368, %v1465
      %v1467 = vpop.f32.mrb[0].mxu0
      %1468 = vmatprep.mubr.bf16.mxu0 0
      %1469 = vmatmul.mubr.bf16.gmra.mrb[0].mxu0 %v1354
      %v1470 = vpop.f32.mrb[0].mxu0
      %v1471 = vadd.f32 %v368, %v1470
      %v1472 = vpop.f32.mrb[0].mxu0
      %v1473 = vpop.f32.mrb[0].mxu0
      %v1474 = vadd.f32 %v368, %v1473
      %v1475 = vpop.f32.mrb[0].mxu0
      %1476 = vmatprep.mubr.bf16.mxu0 0
      %1477 = vmatmul.mubr.bf16.gmra.mrb[0].mxu0 %v1357
      %v1478 = vpop.f32.mrb[0].mxu0
      %v1479 = vadd.f32 %v368, %v1478
      %v1480 = vpop.f32.mrb[0].mxu0
      %v1481 = vpop.f32.mrb[0].mxu0
      %v1482 = vadd.f32 %v368, %v1481
      %v1483 = vpop.f32.mrb[0].mxu0
      %1484 = vmatprep.mubr.bf16.mxu0 0
      %1485 = vmatmul.mubr.bf16.gmra.mrb[0].mxu0 %v1360
      %v1486 = vpop.f32.mrb[0].mxu0
      %v1487 = vadd.f32 %v368, %v1486
      %v1488 = vpop.f32.mrb[0].mxu0
      %v1489 = vpop.f32.mrb[0].mxu0
      %v1490 = vadd.f32 %v368, %v1489
      %v1491 = vpop.f32.mrb[0].mxu0
      %1492 = vmatprep.mubr.bf16.mxu0 0
      %1493 = vmatmul.mubr.bf16.gmra.mrb[0].mxu0 %v1363
      %v1494 = vpop.f32.mrb[0].mxu0
      %v1495 = vadd.f32 %v368, %v1494
      %v1496 = vpop.f32.mrb[0].mxu0
      %v1497 = vpop.f32.mrb[0].mxu0
      %v1498 = vadd.f32 %v368, %v1497
      %v1499 = vpop.f32.mrb[0].mxu0
      %1500 = vmatprep.mubr.bf16.mxu0 0
      %1501 = vmatmul.mubr.bf16.gmra.mrb[0].mxu0 %v1366
      %v1502 = vpop.f32.mrb[0].mxu0
      %v1503 = vadd.f32 %v368, %v1502
      %v1504 = vpop.f32.mrb[0].mxu0
      %v1505 = vpop.f32.mrb[0].mxu0
      %v1506 = vadd.f32 %v368, %v1505
      %v1507 = vpop.f32.mrb[0].mxu0
      %1508 = vmatprep.mubr.bf16.mxu0 0
      %1509 = vmatmul.mubr.bf16.gmra.mrb[0].mxu0 %v1369
      %v1510 = vpop.f32.mrb[0].mxu0
      %v1511 = vadd.f32 %v368, %v1510
      %v1512 = vpop.f32.mrb[0].mxu0
      %v1513 = vpop.f32.mrb[0].mxu0
      %v1514 = vadd.f32 %v368, %v1513
      %v1515 = vpop.f32.mrb[0].mxu0
      %1516 = vmatprep.mubr.bf16.mxu0 0
      %1517 = vmatmul.mubr.bf16.gmra.mrb[0].mxu0 %v1372
      %v1518 = vpop.f32.mrb[0].mxu0
      %v1519 = vadd.f32 %v368, %v1518
      %v1520 = vpop.f32.mrb[0].mxu0
      %v1521 = vpop.f32.mrb[0].mxu0
      %v1522 = vadd.f32 %v368, %v1521
      %v1523 = vpop.f32.mrb[0].mxu0
      %1524 = vmatprep.mubr.bf16.mxu0 0
      %1525 = vmatmul.mubr.bf16.gmra.mrb[0].mxu0 %v1375
      %v1526 = vpop.f32.mrb[0].mxu0
      %v1527 = vadd.f32 %v368, %v1526
      %v1528 = vpop.f32.mrb[0].mxu0
      %v1529 = vpop.f32.mrb[0].mxu0
      %v1530 = vadd.f32 %v368, %v1529
      %v1531 = vpop.f32.mrb[0].mxu0
      %1532 = vmatprep.mubr.bf16.mxu0 0
      %1533 = vmatmul.mubr.bf16.gmra.mrb[0].mxu0 %v1378
      %v1534 = vpop.f32.mrb[0].mxu0
      %v1535 = vadd.f32 %v368, %v1534
      %v1536 = vpop.f32.mrb[0].mxu0
      %v1537 = vpop.f32.mrb[0].mxu0
      %v1538 = vadd.f32 %v368, %v1537
      %v1539 = vpop.f32.mrb[0].mxu0
      %1540 = vdwg.mxu0
      %s1541 = scalar_lea.vmem %s194, 256
      %1542 = vst.msk [vmem:[%s1541] sm:$0xff] %vm330, %v1415
      %1543 = vst.msk [vmem:[%s1541 + $0x8] sm:$0xff] %vm330, %v1418
      %1544 = vst.msk [vmem:[%s1541 + $0x10] sm:$0xff] %vm330, %v1423
      %1545 = vst.msk [vmem:[%s1541 + $0x18] sm:$0xff] %vm330, %v1426
      %1546 = vst.msk [vmem:[%s1541 + $0x20] sm:$0xff] %vm330, %v1431
      %1547 = vst.msk [vmem:[%s1541 + $0x28] sm:$0xff] %vm330, %v1434
      %1548 = vst.msk [vmem:[%s1541 + $0x30] sm:$0xff] %vm330, %v1439
      %1549 = vst.msk [vmem:[%s1541 + $0x38] sm:$0xff] %vm330, %v1442
      %1550 = vst.msk [vmem:[%s1541 + $0x40] sm:$0xff] %vm330, %v1447
      %1551 = vst.msk [vmem:[%s1541 + $0x48] sm:$0xff] %vm330, %v1450
      %1552 = vst.msk [vmem:[%s1541 + $0x50] sm:$0xff] %vm330, %v1455
      %1553 = vst.msk [vmem:[%s1541 + $0x58] sm:$0xff] %vm330, %v1458
      %1554 = vst.msk [vmem:[%s1541 + $0x60] sm:$0xff] %vm330, %v1463
      %1555 = vst.msk [vmem:[%s1541 + $0x68] sm:$0xff] %vm330, %v1466
      %1556 = vst.msk [vmem:[%s1541 + $0x70] sm:$0xff] %vm330, %v1471
      %1557 = vst.msk [vmem:[%s1541 + $0x78] sm:$0xff] %vm330, %v1474
      %1558 = vst.msk [vmem:[%s1541 + $0x80] sm:$0xff] %vm330, %v1479
      %1559 = vst.msk [vmem:[%s1541 + $0x88] sm:$0xff] %vm330, %v1482
      %1560 = vst.msk [vmem:[%s1541 + $0x90] sm:$0xff] %vm330, %v1487
      %1561 = vst.msk [vmem:[%s1541 + $0x98] sm:$0xff] %vm330, %v1490
      %1562 = vst.msk [vmem:[%s1541 + $0xa0] sm:$0xff] %vm330, %v1495
      %1563 = vst.msk [vmem:[%s1541 + $0xa8] sm:$0xff] %vm330, %v1498
      %1564 = vst.msk [vmem:[%s1541 + $0xb0] sm:$0xff] %vm330, %v1503
      %1565 = vst.msk [vmem:[%s1541 + $0xb8] sm:$0xff] %vm330, %v1506
      %1566 = vst.msk [vmem:[%s1541 + $0xc0] sm:$0xff] %vm330, %v1511
      %1567 = vst.msk [vmem:[%s1541 + $0xc8] sm:$0xff] %vm330, %v1514
      %1568 = vst.msk [vmem:[%s1541 + $0xd0] sm:$0xff] %vm330, %v1519
      %1569 = vst.msk [vmem:[%s1541 + $0xd8] sm:$0xff] %vm330, %v1522
      %1570 = vst.msk [vmem:[%s1541 + $0xe0] sm:$0xff] %vm330, %v1527
      %1571 = vst.msk [vmem:[%s1541 + $0xe8] sm:$0xff] %vm330, %v1530
      %1572 = vst.msk [vmem:[%s1541 + $0xf0] sm:$0xff] %vm330, %v1535
      %1573 = vst.msk [vmem:[%s1541 + $0xf8] sm:$0xff] %vm330, %v1538
      %s1574 = sadd.s32 %s197, 1
      %s1575 = smul.u32 %s1574, 3
      %s1576 = smul.addr %s1575, 4
      %s1577 = scalar_lea.vmem %s184, %s1576
      %v1578 = vld [vmem:[%s1577] sm:$0xf]
      %v1579 = vld [vmem:[%s1577 + $0x4] sm:$0xf]
      %v1580 = vld [vmem:[%s1577 + $0xc] sm:$0xf]
      %v1581 = vld [vmem:[%s1577 + $0x10] sm:$0xf]
      %v1582 = vld [vmem:[%s1577 + $0x18] sm:$0xf]
      %v1583 = vld [vmem:[%s1577 + $0x1c] sm:$0xf]
      %v1584 = vld [vmem:[%s1577 + $0x24] sm:$0xf]
      %v1585 = vld [vmem:[%s1577 + $0x28] sm:$0xf]
      %v1586 = vld [vmem:[%s1577 + $0x30] sm:$0xf]
      %v1587 = vld [vmem:[%s1577 + $0x34] sm:$0xf]
      %v1588 = vld [vmem:[%s1577 + $0x3c] sm:$0xf]
      %v1589 = vld [vmem:[%s1577 + $0x40] sm:$0xf]
      %v1590 = vld [vmem:[%s1577 + $0x48] sm:$0xf]
      %v1591 = vld [vmem:[%s1577 + $0x4c] sm:$0xf]
      %v1592 = vld [vmem:[%s1577 + $0x54] sm:$0xf]
      %v1593 = vld [vmem:[%s1577 + $0x58] sm:$0xf]
      %v1594 = vld [vmem:[%s1577 + $0x60] sm:$0xf]
      %v1595 = vld [vmem:[%s1577 + $0x64] sm:$0xf]
      %v1596 = vld [vmem:[%s1577 + $0x6c] sm:$0xf]
      %v1597 = vld [vmem:[%s1577 + $0x70] sm:$0xf]
      %v1598 = vld [vmem:[%s1577 + $0x78] sm:$0xf]
      %v1599 = vld [vmem:[%s1577 + $0x7c] sm:$0xf]
      %v1600 = vld [vmem:[%s1577 + $0x84] sm:$0xf]
      %v1601 = vld [vmem:[%s1577 + $0x88] sm:$0xf]
      %v1602 = vld [vmem:[%s1577 + $0x90] sm:$0xf]
      %v1603 = vld [vmem:[%s1577 + $0x94] sm:$0xf]
      %v1604 = vld [vmem:[%s1577 + $0x9c] sm:$0xf]
      %v1605 = vld [vmem:[%s1577 + $0xa0] sm:$0xf]
      %v1606 = vld [vmem:[%s1577 + $0xa8] sm:$0xf]
      %v1607 = vld [vmem:[%s1577 + $0xac] sm:$0xf]
      %v1608 = vld [vmem:[%s1577 + $0xb4] sm:$0xf]
      %v1609 = vld [vmem:[%s1577 + $0xb8] sm:$0xf]
      %v1642 = vunpack.c.l.b16 %v1578
      %v1643 = vunpack.c.l.b16 %v1579
      %v1644 = vunpack.c.l.b16 %v1580
      %v1645 = vunpack.c.l.b16 %v1581
      %v1646 = vunpack.c.l.b16 %v1582
      %v1647 = vunpack.c.l.b16 %v1583
      %v1648 = vunpack.c.l.b16 %v1584
      %v1649 = vunpack.c.l.b16 %v1585
      %v1650 = vunpack.c.l.b16 %v1586
      %v1651 = vunpack.c.l.b16 %v1587
      %v1652 = vunpack.c.l.b16 %v1588
      %v1653 = vunpack.c.l.b16 %v1589
      %v1654 = vunpack.c.l.b16 %v1590
      %v1655 = vunpack.c.l.b16 %v1591
      %v1656 = vunpack.c.l.b16 %v1592
      %v1657 = vunpack.c.l.b16 %v1593
      %v1658 = vunpack.c.l.b16 %v1594
      %v1659 = vunpack.c.l.b16 %v1595
      %v1660 = vunpack.c.l.b16 %v1596
      %v1661 = vunpack.c.l.b16 %v1597
      %v1662 = vunpack.c.l.b16 %v1598
      %v1663 = vunpack.c.l.b16 %v1599
      %v1664 = vunpack.c.l.b16 %v1600
      %v1665 = vunpack.c.l.b16 %v1601
      %v1666 = vunpack.c.l.b16 %v1602
      %v1667 = vunpack.c.l.b16 %v1603
      %v1668 = vunpack.c.l.b16 %v1604
      %v1669 = vunpack.c.l.b16 %v1605
      %v1670 = vunpack.c.l.b16 %v1606
      %v1671 = vunpack.c.l.b16 %v1607
      %v1672 = vunpack.c.l.b16 %v1608
      %v1673 = vunpack.c.l.b16 %v1609
      %v1674 = vpack.c.b16 %v1643, %v1642
      %v1675 = vpack.c.b16 %v1645, %v1644
      %v1676 = vpack.c.b16 %v1647, %v1646
      %v1677 = vpack.c.b16 %v1649, %v1648
      %v1678 = vpack.c.b16 %v1651, %v1650
      %v1679 = vpack.c.b16 %v1653, %v1652
      %v1680 = vpack.c.b16 %v1655, %v1654
      %v1681 = vpack.c.b16 %v1657, %v1656
      %v1682 = vpack.c.b16 %v1659, %v1658
      %v1683 = vpack.c.b16 %v1661, %v1660
      %v1684 = vpack.c.b16 %v1663, %v1662
      %v1685 = vpack.c.b16 %v1665, %v1664
      %v1686 = vpack.c.b16 %v1667, %v1666
      %v1687 = vpack.c.b16 %v1669, %v1668
      %v1688 = vpack.c.b16 %v1671, %v1670
      %v1689 = vpack.c.b16 %v1673, %v1672
      %1706 = vst.msk [vmem:[#allocation2] sm:$0xff] %vm330, %v1674
      %1707 = vst.msk [vmem:[#allocation2 + $0x8] sm:$0xff] %vm330, %v1675
      %1708 = vst.msk [vmem:[#allocation2 + $0x10] sm:$0xff] %vm330, %v1676
      %1709 = vst.msk [vmem:[#allocation2 + $0x18] sm:$0xff] %vm330, %v1677
      %1710 = vst.msk [vmem:[#allocation2 + $0x20] sm:$0xff] %vm330, %v1678
      %1711 = vst.msk [vmem:[#allocation2 + $0x28] sm:$0xff] %vm330, %v1679
      %1712 = vst.msk [vmem:[#allocation2 + $0x30] sm:$0xff] %vm330, %v1680
      %1713 = vst.msk [vmem:[#allocation2 + $0x38] sm:$0xff] %vm330, %v1681
      %1714 = vst.msk [vmem:[#allocation2 + $0x40] sm:$0xff] %vm330, %v1682
      %1715 = vst.msk [vmem:[#allocation2 + $0x48] sm:$0xff] %vm330, %v1683
      %1716 = vst.msk [vmem:[#allocation2 + $0x50] sm:$0xff] %vm330, %v1684
      %1717 = vst.msk [vmem:[#allocation2 + $0x58] sm:$0xff] %vm330, %v1685
      %1718 = vst.msk [vmem:[#allocation2 + $0x60] sm:$0xff] %vm330, %v1686
      %1719 = vst.msk [vmem:[#allocation2 + $0x68] sm:$0xff] %vm330, %v1687
      %1720 = vst.msk [vmem:[#allocation2 + $0x70] sm:$0xff] %vm330, %v1688
      %1721 = vst.msk [vmem:[#allocation2 + $0x78] sm:$0xff] %vm330, %v1689
      %v1722 = vld [vmem:[%s201] sm:$0xf]
      %v1723 = vld [vmem:[%s201 + $0x4] sm:$0xf]
      %v1724 = vld [vmem:[%s201 + $0xc] sm:$0xf]
      %v1725 = vld [vmem:[%s201 + $0x10] sm:$0xf]
      %v1726 = vld [vmem:[%s201 + $0x18] sm:$0xf]
      %v1727 = vld [vmem:[%s201 + $0x1c] sm:$0xf]
      %v1728 = vld [vmem:[%s201 + $0x24] sm:$0xf]
      %v1729 = vld [vmem:[%s201 + $0x28] sm:$0xf]
      %v1730 = vld [vmem:[%s201 + $0x30] sm:$0xf]
      %v1731 = vld [vmem:[%s201 + $0x34] sm:$0xf]
      %v1732 = vld [vmem:[%s201 + $0x3c] sm:$0xf]
      %v1733 = vld [vmem:[%s201 + $0x40] sm:$0xf]
      %v1734 = vld [vmem:[%s201 + $0x48] sm:$0xf]
      %v1735 = vld [vmem:[%s201 + $0x4c] sm:$0xf]
      %v1736 = vld [vmem:[%s201 + $0x54] sm:$0xf]
      %v1737 = vld [vmem:[%s201 + $0x58] sm:$0xf]
      %v1738 = vld [vmem:[%s201 + $0x60] sm:$0xf]
      %v1739 = vld [vmem:[%s201 + $0x64] sm:$0xf]
      %v1740 = vld [vmem:[%s201 + $0x6c] sm:$0xf]
      %v1741 = vld [vmem:[%s201 + $0x70] sm:$0xf]
      %v1742 = vld [vmem:[%s201 + $0x78] sm:$0xf]
      %v1743 = vld [vmem:[%s201 + $0x7c] sm:$0xf]
      %v1744 = vld [vmem:[%s201 + $0x84] sm:$0xf]
      %v1745 = vld [vmem:[%s201 + $0x88] sm:$0xf]
      %v1746 = vld [vmem:[%s201 + $0x90] sm:$0xf]
      %v1747 = vld [vmem:[%s201 + $0x94] sm:$0xf]
      %v1748 = vld [vmem:[%s201 + $0x9c] sm:$0xf]
      %v1749 = vld [vmem:[%s201 + $0xa0] sm:$0xf]
      %v1750 = vld [vmem:[%s201 + $0xa8] sm:$0xf]
      %v1751 = vld [vmem:[%s201 + $0xac] sm:$0xf]
      %v1752 = vld [vmem:[%s201 + $0xb4] sm:$0xf]
      %v1753 = vld [vmem:[%s201 + $0xb8] sm:$0xf]
      %v1786 = vunpack.c.l.b16 %v1722
      %v1787 = vunpack.c.l.b16 %v1723
      %v1788 = vunpack.c.l.b16 %v1724
      %v1789 = vunpack.c.l.b16 %v1725
      %v1790 = vunpack.c.l.b16 %v1726
      %v1791 = vunpack.c.l.b16 %v1727
      %v1792 = vunpack.c.l.b16 %v1728
      %v1793 = vunpack.c.l.b16 %v1729
      %v1794 = vunpack.c.l.b16 %v1730
      %v1795 = vunpack.c.l.b16 %v1731
      %v1796 = vunpack.c.l.b16 %v1732
      %v1797 = vunpack.c.l.b16 %v1733
      %v1798 = vunpack.c.l.b16 %v1734
      %v1799 = vunpack.c.l.b16 %v1735
      %v1800 = vunpack.c.l.b16 %v1736
      %v1801 = vunpack.c.l.b16 %v1737
      %v1802 = vunpack.c.l.b16 %v1738
      %v1803 = vunpack.c.l.b16 %v1739
      %v1804 = vunpack.c.l.b16 %v1740
      %v1805 = vunpack.c.l.b16 %v1741
      %v1806 = vunpack.c.l.b16 %v1742
      %v1807 = vunpack.c.l.b16 %v1743
      %v1808 = vunpack.c.l.b16 %v1744
      %v1809 = vunpack.c.l.b16 %v1745
      %v1810 = vunpack.c.l.b16 %v1746
      %v1811 = vunpack.c.l.b16 %v1747
      %v1812 = vunpack.c.l.b16 %v1748
      %v1813 = vunpack.c.l.b16 %v1749
      %v1814 = vunpack.c.l.b16 %v1750
      %v1815 = vunpack.c.l.b16 %v1751
      %v1816 = vunpack.c.l.b16 %v1752
      %v1817 = vunpack.c.l.b16 %v1753
      %v1818 = vpack.c.b16 %v1787, %v1786
      %v1819 = vpack.c.b16 %v1789, %v1788
      %v1820 = vpack.c.b16 %v1791, %v1790
      %v1821 = vpack.c.b16 %v1793, %v1792
      %v1822 = vpack.c.b16 %v1795, %v1794
      %v1823 = vpack.c.b16 %v1797, %v1796
      %v1824 = vpack.c.b16 %v1799, %v1798
      %v1825 = vpack.c.b16 %v1801, %v1800
      %v1826 = vpack.c.b16 %v1803, %v1802
      %v1827 = vpack.c.b16 %v1805, %v1804
      %v1828 = vpack.c.b16 %v1807, %v1806
      %v1829 = vpack.c.b16 %v1809, %v1808
      %v1830 = vpack.c.b16 %v1811, %v1810
      %v1831 = vpack.c.b16 %v1813, %v1812
      %v1832 = vpack.c.b16 %v1815, %v1814
      %v1833 = vpack.c.b16 %v1817, %v1816
      %1834 = vrot.lane.b32.xlu0 %v1818, 8
      %v1835 = vpop.permute.xlu0 %1834
      %1836 = vrot.lane.b32.xlu0 %v1819, 8
      %v1837 = vpop.permute.xlu0 %1836
      %1838 = vrot.lane.b32.xlu0 %v1820, 8
      %v1839 = vpop.permute.xlu0 %1838
      %1840 = vrot.lane.b32.xlu0 %v1821, 8
      %v1841 = vpop.permute.xlu0 %1840
      %1842 = vrot.lane.b32.xlu0 %v1822, 8
      %v1843 = vpop.permute.xlu0 %1842
      %1844 = vrot.lane.b32.xlu0 %v1823, 8
      %v1845 = vpop.permute.xlu0 %1844
      %1846 = vrot.lane.b32.xlu0 %v1824, 8
      %v1847 = vpop.permute.xlu0 %1846
      %1848 = vrot.lane.b32.xlu0 %v1825, 8
      %v1849 = vpop.permute.xlu0 %1848
      %1850 = vrot.lane.b32.xlu0 %v1826, 8
      %v1851 = vpop.permute.xlu0 %1850
      %1852 = vrot.lane.b32.xlu0 %v1827, 8
      %v1853 = vpop.permute.xlu0 %1852
      %1854 = vrot.lane.b32.xlu0 %v1828, 8
      %v1855 = vpop.permute.xlu0 %1854
      %1856 = vrot.lane.b32.xlu0 %v1829, 8
      %v1857 = vpop.permute.xlu0 %1856
      %1858 = vrot.lane.b32.xlu0 %v1830, 8
      %v1859 = vpop.permute.xlu0 %1858
      %1860 = vrot.lane.b32.xlu0 %v1831, 8
      %v1861 = vpop.permute.xlu0 %1860
      %1862 = vrot.lane.b32.xlu0 %v1832, 8
      %v1863 = vpop.permute.xlu0 %1862
      %1864 = vrot.lane.b32.xlu0 %v1833, 8
      %v1865 = vpop.permute.xlu0 %1864
      %1882 = vst.msk [vmem:[#allocation2] sm:$0xff] %vm1290, %v1835
      %1883 = vst.msk [vmem:[#allocation2 + $0x8] sm:$0xff] %vm1290, %v1837
      %1884 = vst.msk [vmem:[#allocation2 + $0x10] sm:$0xff] %vm1290, %v1839
      %1885 = vst.msk [vmem:[#allocation2 + $0x18] sm:$0xff] %vm1290, %v1841
      %1886 = vst.msk [vmem:[#allocation2 + $0x20] sm:$0xff] %vm1290, %v1843
      %1887 = vst.msk [vmem:[#allocation2 + $0x28] sm:$0xff] %vm1290, %v1845
      %1888 = vst.msk [vmem:[#allocation2 + $0x30] sm:$0xff] %vm1290, %v1847
      %1889 = vst.msk [vmem:[#allocation2 + $0x38] sm:$0xff] %vm1290, %v1849
      %1890 = vst.msk [vmem:[#allocation2 + $0x40] sm:$0xff] %vm1290, %v1851
      %1891 = vst.msk [vmem:[#allocation2 + $0x48] sm:$0xff] %vm1290, %v1853
      %1892 = vst.msk [vmem:[#allocation2 + $0x50] sm:$0xff] %vm1290, %v1855
      %1893 = vst.msk [vmem:[#allocation2 + $0x58] sm:$0xff] %vm1290, %v1857
      %1894 = vst.msk [vmem:[#allocation2 + $0x60] sm:$0xff] %vm1290, %v1859
      %1895 = vst.msk [vmem:[#allocation2 + $0x68] sm:$0xff] %vm1290, %v1861
      %1896 = vst.msk [vmem:[#allocation2 + $0x70] sm:$0xff] %vm1290, %v1863
      %1897 = vst.msk [vmem:[#allocation2 + $0x78] sm:$0xff] %vm1290, %v1865
      %v1898 = vld [vmem:[#allocation2] sm:$0xff]
      %v1899 = vld [vmem:[#allocation2 + $0x8] sm:$0xff]
      %v1900 = vld [vmem:[#allocation2 + $0x10] sm:$0xff]
      %v1901 = vld [vmem:[#allocation2 + $0x18] sm:$0xff]
      %v1902 = vld [vmem:[#allocation2 + $0x20] sm:$0xff]
      %v1903 = vld [vmem:[#allocation2 + $0x28] sm:$0xff]
      %v1904 = vld [vmem:[#allocation2 + $0x30] sm:$0xff]
      %v1905 = vld [vmem:[#allocation2 + $0x38] sm:$0xff]
      %v1906 = vld [vmem:[#allocation2 + $0x40] sm:$0xff]
      %v1907 = vld [vmem:[#allocation2 + $0x48] sm:$0xff]
      %v1908 = vld [vmem:[#allocation2 + $0x50] sm:$0xff]
      %v1909 = vld [vmem:[#allocation2 + $0x58] sm:$0xff]
      %v1910 = vld [vmem:[#allocation2 + $0x60] sm:$0xff]
      %v1911 = vld [vmem:[#allocation2 + $0x68] sm:$0xff]
      %v1912 = vld [vmem:[#allocation2 + $0x70] sm:$0xff]
      %v1913 = vld [vmem:[#allocation2 + $0x78] sm:$0xff]
      %v1914 = vld [vmem:[%s1 + $0xc] sm:$0xf]
      %v1915 = vld [vmem:[%s1 + $0x10] sm:$0xf]
      %v1918 = vunpack.c.l.b16 %v1914
      %v1919 = vunpack.c.l.b16 %v1915
      %v1920 = vpack.c.b16 %v1919, %v1918
      %v1923 = vsel %vm1331, %v1898, 0
      %v1926 = vsel %vm1331, %v1899, 0
      %v1929 = vsel %vm1331, %v1900, 0
      %v1932 = vsel %vm1331, %v1901, 0
      %v1935 = vsel %vm1331, %v1902, 0
      %v1938 = vsel %vm1331, %v1903, 0
      %v1941 = vsel %vm1331, %v1904, 0
      %v1944 = vsel %vm1331, %v1905, 0
      %v1947 = vsel %vm1331, %v1906, 0
      %v1950 = vsel %vm1331, %v1907, 0
      %v1953 = vsel %vm1331, %v1908, 0
      %v1956 = vsel %vm1331, %v1909, 0
      %v1959 = vsel %vm1331, %v1910, 0
      %v1962 = vsel %vm1331, %v1911, 0
      %v1965 = vsel %vm1331, %v1912, 0
      %v1968 = vsel %vm1331, %v1913, 0
      %1970 = vmatprep.subr.bf16.mxu0 0
      %1971 = vmatpush1.bf16.msra.mxu0 %v1920
      %1972 = vmatprep.subr.bf16.mxu0 0
      %1973 = vmatpush1.bf16.msra.mxu0 0
      %1974 = vmatprep.subr.bf16.mxu0 0
      %1975 = vmatpush1.bf16.msra.mxu0 0
      %1976 = vmatprep.subr.bf16.mxu0 0
      %1977 = vmatpush1.bf16.msra.mxu0 0
      %1978 = vmatprep.subr.bf16.mxu0 0
      %1979 = vmatpush1.bf16.msra.mxu0 0
      %1980 = vmatprep.subr.bf16.mxu0 0
      %1981 = vmatpush1.bf16.msra.mxu0 0
      %1982 = vmatprep.subr.bf16.mxu0 0
      %1983 = vmatpush1.bf16.msra.mxu0 0
      %1984 = vmatprep.subr.bf16.mxu0 0
      %1985 = vmatpush1.bf16.msra.mxu0 0
      %1986 = vmatprep.subr.bf16.mxu0 0
      %1987 = vmatpush1.bf16.msra.mxu0 0
      %1988 = vmatprep.subr.bf16.mxu0 0
      %1989 = vmatpush1.bf16.msra.mxu0 0
      %1990 = vmatprep.subr.bf16.mxu0 0
      %1991 = vmatpush1.bf16.msra.mxu0 0
      %1992 = vmatprep.subr.bf16.mxu0 0
      %1993 = vmatpush1.bf16.msra.mxu0 0
      %1994 = vmatprep.subr.bf16.mxu0 0
      %1995 = vmatpush1.bf16.msra.mxu0 0
      %1996 = vmatprep.subr.bf16.mxu0 0
      %1997 = vmatpush1.bf16.msra.mxu0 0
      %1998 = vmatprep.subr.bf16.mxu0 0
      %1999 = vmatpush1.bf16.msra.mxu0 0
      %2000 = vmatprep.subr.bf16.mxu0 0
      %2001 = vmatpush1.bf16.msra.mxu0 0
      %2002 = vmatprep.mubr.bf16.mxu0 0
      %2003 = vmatmul.mubr.bf16.gmra.mrb[0].mxu0 %v1923
      %v2004 = vpop.f32.mrb[0].mxu0
      %v2005 = vadd.f32 %v368, %v2004
      %v2006 = vpop.f32.mrb[0].mxu0
      %v2007 = vpop.f32.mrb[0].mxu0
      %v2008 = vadd.f32 %v368, %v2007
      %v2009 = vpop.f32.mrb[0].mxu0
      %2010 = vmatprep.mubr.bf16.mxu0 0
      %2011 = vmatmul.mubr.bf16.gmra.mrb[0].mxu0 %v1926
      %v2012 = vpop.f32.mrb[0].mxu0
      %v2013 = vadd.f32 %v368, %v2012
      %v2014 = vpop.f32.mrb[0].mxu0
      %v2015 = vpop.f32.mrb[0].mxu0
      %v2016 = vadd.f32 %v368, %v2015
      %v2017 = vpop.f32.mrb[0].mxu0
      %2018 = vmatprep.mubr.bf16.mxu0 0
      %2019 = vmatmul.mubr.bf16.gmra.mrb[0].mxu0 %v1929
      %v2020 = vpop.f32.mrb[0].mxu0
      %v2021 = vadd.f32 %v368, %v2020
      %v2022 = vpop.f32.mrb[0].mxu0
      %v2023 = vpop.f32.mrb[0].mxu0
      %v2024 = vadd.f32 %v368, %v2023
      %v2025 = vpop.f32.mrb[0].mxu0
      %2026 = vmatprep.mubr.bf16.mxu0 0
      %2027 = vmatmul.mubr.bf16.gmra.mrb[0].mxu0 %v1932
      %v2028 = vpop.f32.mrb[0].mxu0
      %v2029 = vadd.f32 %v368, %v2028
      %v2030 = vpop.f32.mrb[0].mxu0
      %v2031 = vpop.f32.mrb[0].mxu0
      %v2032 = vadd.f32 %v368, %v2031
      %v2033 = vpop.f32.mrb[0].mxu0
      %2034 = vmatprep.mubr.bf16.mxu0 0
      %2035 = vmatmul.mubr.bf16.gmra.mrb[0].mxu0 %v1935
      %v2036 = vpop.f32.mrb[0].mxu0
      %v2037 = vadd.f32 %v368, %v2036
      %v2038 = vpop.f32.mrb[0].mxu0
      %v2039 = vpop.f32.mrb[0].mxu0
      %v2040 = vadd.f32 %v368, %v2039
      %v2041 = vpop.f32.mrb[0].mxu0
      %2042 = vmatprep.mubr.bf16.mxu0 0
      %2043 = vmatmul.mubr.bf16.gmra.mrb[0].mxu0 %v1938
      %v2044 = vpop.f32.mrb[0].mxu0
      %v2045 = vadd.f32 %v368, %v2044
      %v2046 = vpop.f32.mrb[0].mxu0
      %v2047 = vpop.f32.mrb[0].mxu0
      %v2048 = vadd.f32 %v368, %v2047
      %v2049 = vpop.f32.mrb[0].mxu0
      %2050 = vmatprep.mubr.bf16.mxu0 0
      %2051 = vmatmul.mubr.bf16.gmra.mrb[0].mxu0 %v1941
      %v2052 = vpop.f32.mrb[0].mxu0
      %v2053 = vadd.f32 %v368, %v2052
      %v2054 = vpop.f32.mrb[0].mxu0
      %v2055 = vpop.f32.mrb[0].mxu0
      %v2056 = vadd.f32 %v368, %v2055
      %v2057 = vpop.f32.mrb[0].mxu0
      %2058 = vmatprep.mubr.bf16.mxu0 0
      %2059 = vmatmul.mubr.bf16.gmra.mrb[0].mxu0 %v1944
      %v2060 = vpop.f32.mrb[0].mxu0
      %v2061 = vadd.f32 %v368, %v2060
      %v2062 = vpop.f32.mrb[0].mxu0
      %v2063 = vpop.f32.mrb[0].mxu0
      %v2064 = vadd.f32 %v368, %v2063
      %v2065 = vpop.f32.mrb[0].mxu0
      %2066 = vmatprep.mubr.bf16.mxu0 0
      %2067 = vmatmul.mubr.bf16.gmra.mrb[0].mxu0 %v1947
      %v2068 = vpop.f32.mrb[0].mxu0
      %v2069 = vadd.f32 %v368, %v2068
      %v2070 = vpop.f32.mrb[0].mxu0
      %v2071 = vpop.f32.mrb[0].mxu0
      %v2072 = vadd.f32 %v368, %v2071
      %v2073 = vpop.f32.mrb[0].mxu0
      %2074 = vmatprep.mubr.bf16.mxu0 0
      %2075 = vmatmul.mubr.bf16.gmra.mrb[0].mxu0 %v1950
      %v2076 = vpop.f32.mrb[0].mxu0
      %v2077 = vadd.f32 %v368, %v2076
      %v2078 = vpop.f32.mrb[0].mxu0
      %v2079 = vpop.f32.mrb[0].mxu0
      %v2080 = vadd.f32 %v368, %v2079
      %v2081 = vpop.f32.mrb[0].mxu0
      %2082 = vmatprep.mubr.bf16.mxu0 0
      %2083 = vmatmul.mubr.bf16.gmra.mrb[0].mxu0 %v1953
      %v2084 = vpop.f32.mrb[0].mxu0
      %v2085 = vadd.f32 %v368, %v2084
      %v2086 = vpop.f32.mrb[0].mxu0
      %v2087 = vpop.f32.mrb[0].mxu0
      %v2088 = vadd.f32 %v368, %v2087
      %v2089 = vpop.f32.mrb[0].mxu0
      %2090 = vmatprep.mubr.bf16.mxu0 0
      %2091 = vmatmul.mubr.bf16.gmra.mrb[0].mxu0 %v1956
      %v2092 = vpop.f32.mrb[0].mxu0
      %v2093 = vadd.f32 %v368, %v2092
      %v2094 = vpop.f32.mrb[0].mxu0
      %v2095 = vpop.f32.mrb[0].mxu0
      %v2096 = vadd.f32 %v368, %v2095
      %v2097 = vpop.f32.mrb[0].mxu0
      %2098 = vmatprep.mubr.bf16.mxu0 0
      %2099 = vmatmul.mubr.bf16.gmra.mrb[0].mxu0 %v1959
      %v2100 = vpop.f32.mrb[0].mxu0
      %v2101 = vadd.f32 %v368, %v2100
      %v2102 = vpop.f32.mrb[0].mxu0
      %v2103 = vpop.f32.mrb[0].mxu0
      %v2104 = vadd.f32 %v368, %v2103
      %v2105 = vpop.f32.mrb[0].mxu0
      %2106 = vmatprep.mubr.bf16.mxu0 0
      %2107 = vmatmul.mubr.bf16.gmra.mrb[0].mxu0 %v1962
      %v2108 = vpop.f32.mrb[0].mxu0
      %v2109 = vadd.f32 %v368, %v2108
      %v2110 = vpop.f32.mrb[0].mxu0
      %v2111 = vpop.f32.mrb[0].mxu0
      %v2112 = vadd.f32 %v368, %v2111
      %v2113 = vpop.f32.mrb[0].mxu0
      %2114 = vmatprep.mubr.bf16.mxu0 0
      %2115 = vmatmul.mubr.bf16.gmra.mrb[0].mxu0 %v1965
      %v2116 = vpop.f32.mrb[0].mxu0
      %v2117 = vadd.f32 %v368, %v2116
      %v2118 = vpop.f32.mrb[0].mxu0
      %v2119 = vpop.f32.mrb[0].mxu0
      %v2120 = vadd.f32 %v368, %v2119
      %v2121 = vpop.f32.mrb[0].mxu0
      %2122 = vmatprep.mubr.bf16.mxu0 0
      %2123 = vmatmul.mubr.bf16.gmra.mrb[0].mxu0 %v1968
      %v2124 = vpop.f32.mrb[0].mxu0
      %v2125 = vadd.f32 %v368, %v2124
      %v2126 = vpop.f32.mrb[0].mxu0
      %v2127 = vpop.f32.mrb[0].mxu0
      %v2128 = vadd.f32 %v368, %v2127
      %v2129 = vpop.f32.mrb[0].mxu0
      %2130 = vdwg.mxu0
      %s2131 = scalar_lea.vmem %s194, 512
      %2132 = vst.msk [vmem:[%s2131] sm:$0xff] %vm330, %v2005
      %2133 = vst.msk [vmem:[%s2131 + $0x8] sm:$0xff] %vm330, %v2008
      %2134 = vst.msk [vmem:[%s2131 + $0x10] sm:$0xff] %vm330, %v2013
      %2135 = vst.msk [vmem:[%s2131 + $0x18] sm:$0xff] %vm330, %v2016
      %2136 = vst.msk [vmem:[%s2131 + $0x20] sm:$0xff] %vm330, %v2021
      %2137 = vst.msk [vmem:[%s2131 + $0x28] sm:$0xff] %vm330, %v2024
      %2138 = vst.msk [vmem:[%s2131 + $0x30] sm:$0xff] %vm330, %v2029
      %2139 = vst.msk [vmem:[%s2131 + $0x38] sm:$0xff] %vm330, %v2032
      %2140 = vst.msk [vmem:[%s2131 + $0x40] sm:$0xff] %vm330, %v2037
      %2141 = vst.msk [vmem:[%s2131 + $0x48] sm:$0xff] %vm330, %v2040
      %2142 = vst.msk [vmem:[%s2131 + $0x50] sm:$0xff] %vm330, %v2045
      %2143 = vst.msk [vmem:[%s2131 + $0x58] sm:$0xff] %vm330, %v2048
      %2144 = vst.msk [vmem:[%s2131 + $0x60] sm:$0xff] %vm330, %v2053
      %2145 = vst.msk [vmem:[%s2131 + $0x68] sm:$0xff] %vm330, %v2056
      %2146 = vst.msk [vmem:[%s2131 + $0x70] sm:$0xff] %vm330, %v2061
      %2147 = vst.msk [vmem:[%s2131 + $0x78] sm:$0xff] %vm330, %v2064
      %2148 = vst.msk [vmem:[%s2131 + $0x80] sm:$0xff] %vm330, %v2069
      %2149 = vst.msk [vmem:[%s2131 + $0x88] sm:$0xff] %vm330, %v2072
      %2150 = vst.msk [vmem:[%s2131 + $0x90] sm:$0xff] %vm330, %v2077
      %2151 = vst.msk [vmem:[%s2131 + $0x98] sm:$0xff] %vm330, %v2080
      %2152 = vst.msk [vmem:[%s2131 + $0xa0] sm:$0xff] %vm330, %v2085
      %2153 = vst.msk [vmem:[%s2131 + $0xa8] sm:$0xff] %vm330, %v2088
      %2154 = vst.msk [vmem:[%s2131 + $0xb0] sm:$0xff] %vm330, %v2093
      %2155 = vst.msk [vmem:[%s2131 + $0xb8] sm:$0xff] %vm330, %v2096
      %2156 = vst.msk [vmem:[%s2131 + $0xc0] sm:$0xff] %vm330, %v2101
      %2157 = vst.msk [vmem:[%s2131 + $0xc8] sm:$0xff] %vm330, %v2104
      %2158 = vst.msk [vmem:[%s2131 + $0xd0] sm:$0xff] %vm330, %v2109
      %2159 = vst.msk [vmem:[%s2131 + $0xd8] sm:$0xff] %vm330, %v2112
      %2160 = vst.msk [vmem:[%s2131 + $0xe0] sm:$0xff] %vm330, %v2117
      %2161 = vst.msk [vmem:[%s2131 + $0xe8] sm:$0xff] %vm330, %v2120
      %2162 = vst.msk [vmem:[%s2131 + $0xf0] sm:$0xff] %vm330, %v2125
      %2163 = vst.msk [vmem:[%s2131 + $0xf8] sm:$0xff] %vm330, %v2128
      %v2164 = vld [vmem:[%s1577] sm:$0xf]
      %v2165 = vld [vmem:[%s1577 + $0x4] sm:$0xf]
      %v2166 = vld [vmem:[%s1577 + $0x8] sm:$0x1]
      %v2167 = vld [vmem:[%s1577 + $0xc] sm:$0xf]
      %v2168 = vld [vmem:[%s1577 + $0x10] sm:$0xf]
      %v2169 = vld [vmem:[%s1577 + $0x14] sm:$0x1]
      %v2170 = vld [vmem:[%s1577 + $0x18] sm:$0xf]
      %v2171 = vld [vmem:[%s1577 + $0x1c] sm:$0xf]
      %v2172 = vld [vmem:[%s1577 + $0x20] sm:$0x1]
      %v2173 = vld [vmem:[%s1577 + $0x24] sm:$0xf]
      %v2174 = vld [vmem:[%s1577 + $0x28] sm:$0xf]
      %v2175 = vld [vmem:[%s1577 + $0x2c] sm:$0x1]
      %v2176 = vld [vmem:[%s1577 + $0x30] sm:$0xf]
      %v2177 = vld [vmem:[%s1577 + $0x34] sm:$0xf]
      %v2178 = vld [vmem:[%s1577 + $0x38] sm:$0x1]
      %v2179 = vld [vmem:[%s1577 + $0x3c] sm:$0xf]
      %v2180 = vld [vmem:[%s1577 + $0x40] sm:$0xf]
      %v2181 = vld [vmem:[%s1577 + $0x44] sm:$0x1]
      %v2182 = vld [vmem:[%s1577 + $0x48] sm:$0xf]
      %v2183 = vld [vmem:[%s1577 + $0x4c] sm:$0xf]
      %v2184 = vld [vmem:[%s1577 + $0x50] sm:$0x1]
      %v2185 = vld [vmem:[%s1577 + $0x54] sm:$0xf]
      %v2186 = vld [vmem:[%s1577 + $0x58] sm:$0xf]
      %v2187 = vld [vmem:[%s1577 + $0x5c] sm:$0x1]
      %v2188 = vld [vmem:[%s1577 + $0x60] sm:$0xf]
      %v2189 = vld [vmem:[%s1577 + $0x64] sm:$0xf]
      %v2190 = vld [vmem:[%s1577 + $0x68] sm:$0x1]
      %v2191 = vld [vmem:[%s1577 + $0x6c] sm:$0xf]
      %v2192 = vld [vmem:[%s1577 + $0x70] sm:$0xf]
      %v2193 = vld [vmem:[%s1577 + $0x74] sm:$0x1]
      %v2194 = vld [vmem:[%s1577 + $0x78] sm:$0xf]
      %v2195 = vld [vmem:[%s1577 + $0x7c] sm:$0xf]
      %v2196 = vld [vmem:[%s1577 + $0x80] sm:$0x1]
      %v2197 = vld [vmem:[%s1577 + $0x84] sm:$0xf]
      %v2198 = vld [vmem:[%s1577 + $0x88] sm:$0xf]
      %v2199 = vld [vmem:[%s1577 + $0x8c] sm:$0x1]
      %v2200 = vld [vmem:[%s1577 + $0x90] sm:$0xf]
      %v2201 = vld [vmem:[%s1577 + $0x94] sm:$0xf]
      %v2202 = vld [vmem:[%s1577 + $0x98] sm:$0x1]
      %v2203 = vld [vmem:[%s1577 + $0x9c] sm:$0xf]
      %v2204 = vld [vmem:[%s1577 + $0xa0] sm:$0xf]
      %v2205 = vld [vmem:[%s1577 + $0xa4] sm:$0x1]
      %v2206 = vld [vmem:[%s1577 + $0xa8] sm:$0xf]
      %v2207 = vld [vmem:[%s1577 + $0xac] sm:$0xf]
      %v2208 = vld [vmem:[%s1577 + $0xb0] sm:$0x1]
      %v2209 = vld [vmem:[%s1577 + $0xb4] sm:$0xf]
      %v2210 = vld [vmem:[%s1577 + $0xb8] sm:$0xf]
      %v2211 = vld [vmem:[%s1577 + $0xbc] sm:$0x1]
      %v2213 = vshrl.u32 %v2164, 16
      %v2215 = vrot.slane %v2213, 4
      %v2216 = vshll.u32 %v2164, 16
      %v2218 = vrot.slane %v2216, 5
      %v2219 = vor.u32 %v2215, %v2218
      %v2220 = vrot.slane %v2219, 4
      %v2222 = vshll.u32 %v2165, 16
      %v2224 = vrot.slane %v2222, 5
      %v2225 = vsel %vm665, %v2220, %v2224
      %v2226 = vshrl.u32 %v2165, 16
      %v2228 = vrot.slane %v2226, 4
      %v2229 = vor.u32 %v2228, %v2224
      %v2230 = vrot.slane %v2229, 4
      %v2232 = vshll.u32 %v2166, 16
      %v2234 = vrot.slane %v2232, 5
      %v2235 = vsel %vm665, %v2230, %v2234
      %v2237 = vshrl.u32 %v2167, 16
      %v2239 = vrot.slane %v2237, 4
      %v2240 = vshll.u32 %v2167, 16
      %v2242 = vrot.slane %v2240, 5
      %v2243 = vor.u32 %v2239, %v2242
      %v2244 = vrot.slane %v2243, 4
      %v2246 = vshll.u32 %v2168, 16
      %v2248 = vrot.slane %v2246, 5
      %v2249 = vsel %vm665, %v2244, %v2248
      %v2250 = vshrl.u32 %v2168, 16
      %v2252 = vrot.slane %v2250, 4
      %v2253 = vor.u32 %v2252, %v2248
      %v2254 = vrot.slane %v2253, 4
      %v2256 = vshll.u32 %v2169, 16
      %v2258 = vrot.slane %v2256, 5
      %v2259 = vsel %vm665, %v2254, %v2258
      %v2261 = vshrl.u32 %v2170, 16
      %v2263 = vrot.slane %v2261, 4
      %v2264 = vshll.u32 %v2170, 16
      %v2266 = vrot.slane %v2264, 5
      %v2267 = vor.u32 %v2263, %v2266
      %v2268 = vrot.slane %v2267, 4
      %v2270 = vshll.u32 %v2171, 16
      %v2272 = vrot.slane %v2270, 5
      %v2273 = vsel %vm665, %v2268, %v2272
      %v2274 = vshrl.u32 %v2171, 16
      %v2276 = vrot.slane %v2274, 4
      %v2277 = vor.u32 %v2276, %v2272
      %v2278 = vrot.slane %v2277, 4
      %v2280 = vshll.u32 %v2172, 16
      %v2282 = vrot.slane %v2280, 5
      %v2283 = vsel %vm665, %v2278, %v2282
      %v2285 = vshrl.u32 %v2173, 16
      %v2287 = vrot.slane %v2285, 4
      %v2288 = vshll.u32 %v2173, 16
      %v2290 = vrot.slane %v2288, 5
      %v2291 = vor.u32 %v2287, %v2290
      %v2292 = vrot.slane %v2291, 4
      %v2294 = vshll.u32 %v2174, 16
      %v2296 = vrot.slane %v2294, 5
      %v2297 = vsel %vm665, %v2292, %v2296
      %v2298 = vshrl.u32 %v2174, 16
      %v2300 = vrot.slane %v2298, 4
      %v2301 = vor.u32 %v2300, %v2296
      %v2302 = vrot.slane %v2301, 4
      %v2304 = vshll.u32 %v2175, 16
      %v2306 = vrot.slane %v2304, 5
      %v2307 = vsel %vm665, %v2302, %v2306
      %v2309 = vshrl.u32 %v2176, 16
      %v2311 = vrot.slane %v2309, 4
      %v2312 = vshll.u32 %v2176, 16
      %v2314 = vrot.slane %v2312, 5
      %v2315 = vor.u32 %v2311, %v2314
      %v2316 = vrot.slane %v2315, 4
      %v2318 = vshll.u32 %v2177, 16
      %v2320 = vrot.slane %v2318, 5
      %v2321 = vsel %vm665, %v2316, %v2320
      %v2322 = vshrl.u32 %v2177, 16
      %v2324 = vrot.slane %v2322, 4
      %v2325 = vor.u32 %v2324, %v2320
      %v2326 = vrot.slane %v2325, 4
      %v2328 = vshll.u32 %v2178, 16
      %v2330 = vrot.slane %v2328, 5
      %v2331 = vsel %vm665, %v2326, %v2330
      %v2333 = vshrl.u32 %v2179, 16
      %v2335 = vrot.slane %v2333, 4
      %v2336 = vshll.u32 %v2179, 16
      %v2338 = vrot.slane %v2336, 5
      %v2339 = vor.u32 %v2335, %v2338
      %v2340 = vrot.slane %v2339, 4
      %v2342 = vshll.u32 %v2180, 16
      %v2344 = vrot.slane %v2342, 5
      %v2345 = vsel %vm665, %v2340, %v2344
      %v2346 = vshrl.u32 %v2180, 16
      %v2348 = vrot.slane %v2346, 4
      %v2349 = vor.u32 %v2348, %v2344
      %v2350 = vrot.slane %v2349, 4
      %v2352 = vshll.u32 %v2181, 16
      %v2354 = vrot.slane %v2352, 5
      %v2355 = vsel %vm665, %v2350, %v2354
      %v2357 = vshrl.u32 %v2182, 16
      %v2359 = vrot.slane %v2357, 4
      %v2360 = vshll.u32 %v2182, 16
      %v2362 = vrot.slane %v2360, 5
      %v2363 = vor.u32 %v2359, %v2362
      %v2364 = vrot.slane %v2363, 4
      %v2366 = vshll.u32 %v2183, 16
      %v2368 = vrot.slane %v2366, 5
      %v2369 = vsel %vm665, %v2364, %v2368
      %v2370 = vshrl.u32 %v2183, 16
      %v2372 = vrot.slane %v2370, 4
      %v2373 = vor.u32 %v2372, %v2368
      %v2374 = vrot.slane %v2373, 4
      %v2376 = vshll.u32 %v2184, 16
      %v2378 = vrot.slane %v2376, 5
      %v2379 = vsel %vm665, %v2374, %v2378
      %v2381 = vshrl.u32 %v2185, 16
      %v2383 = vrot.slane %v2381, 4
      %v2384 = vshll.u32 %v2185, 16
      %v2386 = vrot.slane %v2384, 5
      %v2387 = vor.u32 %v2383, %v2386
      %v2388 = vrot.slane %v2387, 4
      %v2390 = vshll.u32 %v2186, 16
      %v2392 = vrot.slane %v2390, 5
      %v2393 = vsel %vm665, %v2388, %v2392
      %v2394 = vshrl.u32 %v2186, 16
      %v2396 = vrot.slane %v2394, 4
      %v2397 = vor.u32 %v2396, %v2392
      %v2398 = vrot.slane %v2397, 4
      %v2400 = vshll.u32 %v2187, 16
      %v2402 = vrot.slane %v2400, 5
      %v2403 = vsel %vm665, %v2398, %v2402
      %v2405 = vshrl.u32 %v2188, 16
      %v2407 = vrot.slane %v2405, 4
      %v2408 = vshll.u32 %v2188, 16
      %v2410 = vrot.slane %v2408, 5
      %v2411 = vor.u32 %v2407, %v2410
      %v2412 = vrot.slane %v2411, 4
      %v2414 = vshll.u32 %v2189, 16
      %v2416 = vrot.slane %v2414, 5
      %v2417 = vsel %vm665, %v2412, %v2416
      %v2418 = vshrl.u32 %v2189, 16
      %v2420 = vrot.slane %v2418, 4
      %v2421 = vor.u32 %v2420, %v2416
      %v2422 = vrot.slane %v2421, 4
      %v2424 = vshll.u32 %v2190, 16
      %v2426 = vrot.slane %v2424, 5
      %v2427 = vsel %vm665, %v2422, %v2426
      %v2429 = vshrl.u32 %v2191, 16
      %v2431 = vrot.slane %v2429, 4
      %v2432 = vshll.u32 %v2191, 16
      %v2434 = vrot.slane %v2432, 5
      %v2435 = vor.u32 %v2431, %v2434
      %v2436 = vrot.slane %v2435, 4
      %v2438 = vshll.u32 %v2192, 16
      %v2440 = vrot.slane %v2438, 5
      %v2441 = vsel %vm665, %v2436, %v2440
      %v2442 = vshrl.u32 %v2192, 16
      %v2444 = vrot.slane %v2442, 4
      %v2445 = vor.u32 %v2444, %v2440
      %v2446 = vrot.slane %v2445, 4
      %v2448 = vshll.u32 %v2193, 16
      %v2450 = vrot.slane %v2448, 5
      %v2451 = vsel %vm665, %v2446, %v2450
      %v2453 = vshrl.u32 %v2194, 16
      %v2455 = vrot.slane %v2453, 4
      %v2456 = vshll.u32 %v2194, 16
      %v2458 = vrot.slane %v2456, 5
      %v2459 = vor.u32 %v2455, %v2458
      %v2460 = vrot.slane %v2459, 4
      %v2462 = vshll.u32 %v2195, 16
      %v2464 = vrot.slane %v2462, 5
      %v2465 = vsel %vm665, %v2460, %v2464
      %v2466 = vshrl.u32 %v2195, 16
      %v2468 = vrot.slane %v2466, 4
      %v2469 = vor.u32 %v2468, %v2464
      %v2470 = vrot.slane %v2469, 4
      %v2472 = vshll.u32 %v2196, 16
      %v2474 = vrot.slane %v2472, 5
      %v2475 = vsel %vm665, %v2470, %v2474
      %v2477 = vshrl.u32 %v2197, 16
      %v2479 = vrot.slane %v2477, 4
      %v2480 = vshll.u32 %v2197, 16
      %v2482 = vrot.slane %v2480, 5
      %v2483 = vor.u32 %v2479, %v2482
      %v2484 = vrot.slane %v2483, 4
      %v2486 = vshll.u32 %v2198, 16
      %v2488 = vrot.slane %v2486, 5
      %v2489 = vsel %vm665, %v2484, %v2488
      %v2490 = vshrl.u32 %v2198, 16
      %v2492 = vrot.slane %v2490, 4
      %v2493 = vor.u32 %v2492, %v2488
      %v2494 = vrot.slane %v2493, 4
      %v2496 = vshll.u32 %v2199, 16
      %v2498 = vrot.slane %v2496, 5
      %v2499 = vsel %vm665, %v2494, %v2498
      %v2501 = vshrl.u32 %v2200, 16
      %v2503 = vrot.slane %v2501, 4
      %v2504 = vshll.u32 %v2200, 16
      %v2506 = vrot.slane %v2504, 5
      %v2507 = vor.u32 %v2503, %v2506
      %v2508 = vrot.slane %v2507, 4
      %v2510 = vshll.u32 %v2201, 16
      %v2512 = vrot.slane %v2510, 5
      %v2513 = vsel %vm665, %v2508, %v2512
      %v2514 = vshrl.u32 %v2201, 16
      %v2516 = vrot.slane %v2514, 4
      %v2517 = vor.u32 %v2516, %v2512
      %v2518 = vrot.slane %v2517, 4
      %v2520 = vshll.u32 %v2202, 16
      %v2522 = vrot.slane %v2520, 5
      %v2523 = vsel %vm665, %v2518, %v2522
      %v2525 = vshrl.u32 %v2203, 16
      %v2527 = vrot.slane %v2525, 4
      %v2528 = vshll.u32 %v2203, 16
      %v2530 = vrot.slane %v2528, 5
      %v2531 = vor.u32 %v2527, %v2530
      %v2532 = vrot.slane %v2531, 4
      %v2534 = vshll.u32 %v2204, 16
      %v2536 = vrot.slane %v2534, 5
      %v2537 = vsel %vm665, %v2532, %v2536
      %v2538 = vshrl.u32 %v2204, 16
      %v2540 = vrot.slane %v2538, 4
      %v2541 = vor.u32 %v2540, %v2536
      %v2542 = vrot.slane %v2541, 4
      %v2544 = vshll.u32 %v2205, 16
      %v2546 = vrot.slane %v2544, 5
      %v2547 = vsel %vm665, %v2542, %v2546
      %v2549 = vshrl.u32 %v2206, 16
      %v2551 = vrot.slane %v2549, 4
      %v2552 = vshll.u32 %v2206, 16
      %v2554 = vrot.slane %v2552, 5
      %v2555 = vor.u32 %v2551, %v2554
      %v2556 = vrot.slane %v2555, 4
      %v2558 = vshll.u32 %v2207, 16
      %v2560 = vrot.slane %v2558, 5
      %v2561 = vsel %vm665, %v2556, %v2560
      %v2562 = vshrl.u32 %v2207, 16
      %v2564 = vrot.slane %v2562, 4
      %v2565 = vor.u32 %v2564, %v2560
      %v2566 = vrot.slane %v2565, 4
      %v2568 = vshll.u32 %v2208, 16
      %v2570 = vrot.slane %v2568, 5
      %v2571 = vsel %vm665, %v2566, %v2570
      %v2573 = vshrl.u32 %v2209, 16
      %v2575 = vrot.slane %v2573, 4
      %v2576 = vshll.u32 %v2209, 16
      %v2578 = vrot.slane %v2576, 5
      %v2579 = vor.u32 %v2575, %v2578
      %v2580 = vrot.slane %v2579, 4
      %v2582 = vshll.u32 %v2210, 16
      %v2584 = vrot.slane %v2582, 5
      %v2585 = vsel %vm665, %v2580, %v2584
      %v2586 = vshrl.u32 %v2210, 16
      %v2588 = vrot.slane %v2586, 4
      %v2589 = vor.u32 %v2588, %v2584
      %v2590 = vrot.slane %v2589, 4
      %v2592 = vshll.u32 %v2211, 16
      %v2594 = vrot.slane %v2592, 5
      %v2595 = vsel %vm665, %v2590, %v2594
      %v2596 = vunpack.c.l.b16 %v2225
      %v2597 = vunpack.c.l.b16 %v2235
      %v2598 = vunpack.c.l.b16 %v2249
      %v2599 = vunpack.c.l.b16 %v2259
      %v2600 = vunpack.c.l.b16 %v2273
      %v2601 = vunpack.c.l.b16 %v2283
      %v2602 = vunpack.c.l.b16 %v2297
      %v2603 = vunpack.c.l.b16 %v2307
      %v2604 = vunpack.c.l.b16 %v2321
      %v2605 = vunpack.c.l.b16 %v2331
      %v2606 = vunpack.c.l.b16 %v2345
      %v2607 = vunpack.c.l.b16 %v2355
      %v2608 = vunpack.c.l.b16 %v2369
      %v2609 = vunpack.c.l.b16 %v2379
      %v2610 = vunpack.c.l.b16 %v2393
      %v2611 = vunpack.c.l.b16 %v2403
      %v2612 = vunpack.c.l.b16 %v2417
      %v2613 = vunpack.c.l.b16 %v2427
      %v2614 = vunpack.c.l.b16 %v2441
      %v2615 = vunpack.c.l.b16 %v2451
      %v2616 = vunpack.c.l.b16 %v2465
      %v2617 = vunpack.c.l.b16 %v2475
      %v2618 = vunpack.c.l.b16 %v2489
      %v2619 = vunpack.c.l.b16 %v2499
      %v2620 = vunpack.c.l.b16 %v2513
      %v2621 = vunpack.c.l.b16 %v2523
      %v2622 = vunpack.c.l.b16 %v2537
      %v2623 = vunpack.c.l.b16 %v2547
      %v2624 = vunpack.c.l.b16 %v2561
      %v2625 = vunpack.c.l.b16 %v2571
      %v2626 = vunpack.c.l.b16 %v2585
      %v2627 = vunpack.c.l.b16 %v2595
      %v2628 = vpack.c.b16 %v2597, %v2596
      %v2629 = vpack.c.b16 %v2599, %v2598
      %v2630 = vpack.c.b16 %v2601, %v2600
      %v2631 = vpack.c.b16 %v2603, %v2602
      %v2632 = vpack.c.b16 %v2605, %v2604
      %v2633 = vpack.c.b16 %v2607, %v2606
      %v2634 = vpack.c.b16 %v2609, %v2608
      %v2635 = vpack.c.b16 %v2611, %v2610
      %v2636 = vpack.c.b16 %v2613, %v2612
      %v2637 = vpack.c.b16 %v2615, %v2614
      %v2638 = vpack.c.b16 %v2617, %v2616
      %v2639 = vpack.c.b16 %v2619, %v2618
      %v2640 = vpack.c.b16 %v2621, %v2620
      %v2641 = vpack.c.b16 %v2623, %v2622
      %v2642 = vpack.c.b16 %v2625, %v2624
      %v2643 = vpack.c.b16 %v2627, %v2626
      %2660 = vst.msk [vmem:[#allocation2] sm:$0xff] %vm330, %v2628
      %2661 = vst.msk [vmem:[#allocation2 + $0x8] sm:$0xff] %vm330, %v2629
      %2662 = vst.msk [vmem:[#allocation2 + $0x10] sm:$0xff] %vm330, %v2630
      %2663 = vst.msk [vmem:[#allocation2 + $0x18] sm:$0xff] %vm330, %v2631
      %2664 = vst.msk [vmem:[#allocation2 + $0x20] sm:$0xff] %vm330, %v2632
      %2665 = vst.msk [vmem:[#allocation2 + $0x28] sm:$0xff] %vm330, %v2633
      %2666 = vst.msk [vmem:[#allocation2 + $0x30] sm:$0xff] %vm330, %v2634
      %2667 = vst.msk [vmem:[#allocation2 + $0x38] sm:$0xff] %vm330, %v2635
      %2668 = vst.msk [vmem:[#allocation2 + $0x40] sm:$0xff] %vm330, %v2636
      %2669 = vst.msk [vmem:[#allocation2 + $0x48] sm:$0xff] %vm330, %v2637
      %2670 = vst.msk [vmem:[#allocation2 + $0x50] sm:$0xff] %vm330, %v2638
      %2671 = vst.msk [vmem:[#allocation2 + $0x58] sm:$0xff] %vm330, %v2639
      %2672 = vst.msk [vmem:[#allocation2 + $0x60] sm:$0xff] %vm330, %v2640
      %2673 = vst.msk [vmem:[#allocation2 + $0x68] sm:$0xff] %vm330, %v2641
      %2674 = vst.msk [vmem:[#allocation2 + $0x70] sm:$0xff] %vm330, %v2642
      %2675 = vst.msk [vmem:[#allocation2 + $0x78] sm:$0xff] %vm330, %v2643
      %v2676 = vld [vmem:[%s1577] sm:$0xf]
      %v2677 = vld [vmem:[%s1577 + $0x4] sm:$0xf]
      %v2678 = vld [vmem:[%s1577 + $0xc] sm:$0xf]
      %v2679 = vld [vmem:[%s1577 + $0x10] sm:$0xf]
      %v2680 = vld [vmem:[%s1577 + $0x18] sm:$0xf]
      %v2681 = vld [vmem:[%s1577 + $0x1c] sm:$0xf]
      %v2682 = vld [vmem:[%s1577 + $0x24] sm:$0xf]
      %v2683 = vld [vmem:[%s1577 + $0x28] sm:$0xf]
      %v2684 = vld [vmem:[%s1577 + $0x30] sm:$0xf]
      %v2685 = vld [vmem:[%s1577 + $0x34] sm:$0xf]
      %v2686 = vld [vmem:[%s1577 + $0x3c] sm:$0xf]
      %v2687 = vld [vmem:[%s1577 + $0x40] sm:$0xf]
      %v2688 = vld [vmem:[%s1577 + $0x48] sm:$0xf]
      %v2689 = vld [vmem:[%s1577 + $0x4c] sm:$0xf]
      %v2690 = vld [vmem:[%s1577 + $0x54] sm:$0xf]
      %v2691 = vld [vmem:[%s1577 + $0x58] sm:$0xf]
      %v2692 = vld [vmem:[%s1577 + $0x60] sm:$0xf]
      %v2693 = vld [vmem:[%s1577 + $0x64] sm:$0xf]
      %v2694 = vld [vmem:[%s1577 + $0x6c] sm:$0xf]
      %v2695 = vld [vmem:[%s1577 + $0x70] sm:$0xf]
      %v2696 = vld [vmem:[%s1577 + $0x78] sm:$0xf]
      %v2697 = vld [vmem:[%s1577 + $0x7c] sm:$0xf]
      %v2698 = vld [vmem:[%s1577 + $0x84] sm:$0xf]
      %v2699 = vld [vmem:[%s1577 + $0x88] sm:$0xf]
      %v2700 = vld [vmem:[%s1577 + $0x90] sm:$0xf]
      %v2701 = vld [vmem:[%s1577 + $0x94] sm:$0xf]
      %v2702 = vld [vmem:[%s1577 + $0x9c] sm:$0xf]
      %v2703 = vld [vmem:[%s1577 + $0xa0] sm:$0xf]
      %v2704 = vld [vmem:[%s1577 + $0xa8] sm:$0xf]
      %v2705 = vld [vmem:[%s1577 + $0xac] sm:$0xf]
      %v2706 = vld [vmem:[%s1577 + $0xb4] sm:$0xf]
      %v2707 = vld [vmem:[%s1577 + $0xb8] sm:$0xf]
      %v2740 = vunpack.c.l.b16 %v2676
      %v2741 = vunpack.c.l.b16 %v2677
      %v2742 = vunpack.c.l.b16 %v2678
      %v2743 = vunpack.c.l.b16 %v2679
      %v2744 = vunpack.c.l.b16 %v2680
      %v2745 = vunpack.c.l.b16 %v2681
      %v2746 = vunpack.c.l.b16 %v2682
      %v2747 = vunpack.c.l.b16 %v2683
      %v2748 = vunpack.c.l.b16 %v2684
      %v2749 = vunpack.c.l.b16 %v2685
      %v2750 = vunpack.c.l.b16 %v2686
      %v2751 = vunpack.c.l.b16 %v2687
      %v2752 = vunpack.c.l.b16 %v2688
      %v2753 = vunpack.c.l.b16 %v2689
      %v2754 = vunpack.c.l.b16 %v2690
      %v2755 = vunpack.c.l.b16 %v2691
      %v2756 = vunpack.c.l.b16 %v2692
      %v2757 = vunpack.c.l.b16 %v2693
      %v2758 = vunpack.c.l.b16 %v2694
      %v2759 = vunpack.c.l.b16 %v2695
      %v2760 = vunpack.c.l.b16 %v2696
      %v2761 = vunpack.c.l.b16 %v2697
      %v2762 = vunpack.c.l.b16 %v2698
      %v2763 = vunpack.c.l.b16 %v2699
      %v2764 = vunpack.c.l.b16 %v2700
      %v2765 = vunpack.c.l.b16 %v2701
      %v2766 = vunpack.c.l.b16 %v2702
      %v2767 = vunpack.c.l.b16 %v2703
      %v2768 = vunpack.c.l.b16 %v2704
      %v2769 = vunpack.c.l.b16 %v2705
      %v2770 = vunpack.c.l.b16 %v2706
      %v2771 = vunpack.c.l.b16 %v2707
      %v2772 = vpack.c.b16 %v2741, %v2740
      %v2773 = vpack.c.b16 %v2743, %v2742
      %v2774 = vpack.c.b16 %v2745, %v2744
      %v2775 = vpack.c.b16 %v2747, %v2746
      %v2776 = vpack.c.b16 %v2749, %v2748
      %v2777 = vpack.c.b16 %v2751, %v2750
      %v2778 = vpack.c.b16 %v2753, %v2752
      %v2779 = vpack.c.b16 %v2755, %v2754
      %v2780 = vpack.c.b16 %v2757, %v2756
      %v2781 = vpack.c.b16 %v2759, %v2758
      %v2782 = vpack.c.b16 %v2761, %v2760
      %v2783 = vpack.c.b16 %v2763, %v2762
      %v2784 = vpack.c.b16 %v2765, %v2764
      %v2785 = vpack.c.b16 %v2767, %v2766
      %v2786 = vpack.c.b16 %v2769, %v2768
      %v2787 = vpack.c.b16 %v2771, %v2770
      %2788 = vrot.lane.b32.xlu0 %v2772, 8
      %v2789 = vpop.permute.xlu0 %2788
      %2790 = vrot.lane.b32.xlu0 %v2773, 8
      %v2791 = vpop.permute.xlu0 %2790
      %2792 = vrot.lane.b32.xlu0 %v2774, 8
      %v2793 = vpop.permute.xlu0 %2792
      %2794 = vrot.lane.b32.xlu0 %v2775, 8
      %v2795 = vpop.permute.xlu0 %2794
      %2796 = vrot.lane.b32.xlu0 %v2776, 8
      %v2797 = vpop.permute.xlu0 %2796
      %2798 = vrot.lane.b32.xlu0 %v2777, 8
      %v2799 = vpop.permute.xlu0 %2798
      %2800 = vrot.lane.b32.xlu0 %v2778, 8
      %v2801 = vpop.permute.xlu0 %2800
      %2802 = vrot.lane.b32.xlu0 %v2779, 8
      %v2803 = vpop.permute.xlu0 %2802
      %2804 = vrot.lane.b32.xlu0 %v2780, 8
      %v2805 = vpop.permute.xlu0 %2804
      %2806 = vrot.lane.b32.xlu0 %v2781, 8
      %v2807 = vpop.permute.xlu0 %2806
      %2808 = vrot.lane.b32.xlu0 %v2782, 8
      %v2809 = vpop.permute.xlu0 %2808
      %2810 = vrot.lane.b32.xlu0 %v2783, 8
      %v2811 = vpop.permute.xlu0 %2810
      %2812 = vrot.lane.b32.xlu0 %v2784, 8
      %v2813 = vpop.permute.xlu0 %2812
      %2814 = vrot.lane.b32.xlu0 %v2785, 8
      %v2815 = vpop.permute.xlu0 %2814
      %2816 = vrot.lane.b32.xlu0 %v2786, 8
      %v2817 = vpop.permute.xlu0 %2816
      %2818 = vrot.lane.b32.xlu0 %v2787, 8
      %v2819 = vpop.permute.xlu0 %2818
      %2836 = vst.msk [vmem:[#allocation2] sm:$0xff] %vm1290, %v2789
      %2837 = vst.msk [vmem:[#allocation2 + $0x8] sm:$0xff] %vm1290, %v2791
      %2838 = vst.msk [vmem:[#allocation2 + $0x10] sm:$0xff] %vm1290, %v2793
      %2839 = vst.msk [vmem:[#allocation2 + $0x18] sm:$0xff] %vm1290, %v2795
      %2840 = vst.msk [vmem:[#allocation2 + $0x20] sm:$0xff] %vm1290, %v2797
      %2841 = vst.msk [vmem:[#allocation2 + $0x28] sm:$0xff] %vm1290, %v2799
      %2842 = vst.msk [vmem:[#allocation2 + $0x30] sm:$0xff] %vm1290, %v2801
      %2843 = vst.msk [vmem:[#allocation2 + $0x38] sm:$0xff] %vm1290, %v2803
      %2844 = vst.msk [vmem:[#allocation2 + $0x40] sm:$0xff] %vm1290, %v2805
      %2845 = vst.msk [vmem:[#allocation2 + $0x48] sm:$0xff] %vm1290, %v2807
      %2846 = vst.msk [vmem:[#allocation2 + $0x50] sm:$0xff] %vm1290, %v2809
      %2847 = vst.msk [vmem:[#allocation2 + $0x58] sm:$0xff] %vm1290, %v2811
      %2848 = vst.msk [vmem:[#allocation2 + $0x60] sm:$0xff] %vm1290, %v2813
      %2849 = vst.msk [vmem:[#allocation2 + $0x68] sm:$0xff] %vm1290, %v2815
      %2850 = vst.msk [vmem:[#allocation2 + $0x70] sm:$0xff] %vm1290, %v2817
      %2851 = vst.msk [vmem:[#allocation2 + $0x78] sm:$0xff] %vm1290, %v2819
      %v2852 = vld [vmem:[%s201] sm:$0xf]
      %v2853 = vld [vmem:[%s201 + $0x4] sm:$0xf]
      %v2854 = vld [vmem:[%s201 + $0x8] sm:$0x1]
      %v2855 = vld [vmem:[%s201 + $0xc] sm:$0xf]
      %v2856 = vld [vmem:[%s201 + $0x10] sm:$0xf]
      %v2857 = vld [vmem:[%s201 + $0x14] sm:$0x1]
      %v2858 = vld [vmem:[%s201 + $0x18] sm:$0xf]
      %v2859 = vld [vmem:[%s201 + $0x1c] sm:$0xf]
      %v2860 = vld [vmem:[%s201 + $0x20] sm:$0x1]
      %v2861 = vld [vmem:[%s201 + $0x24] sm:$0xf]
      %v2862 = vld [vmem:[%s201 + $0x28] sm:$0xf]
      %v2863 = vld [vmem:[%s201 + $0x2c] sm:$0x1]
      %v2864 = vld [vmem:[%s201 + $0x30] sm:$0xf]
      %v2865 = vld [vmem:[%s201 + $0x34] sm:$0xf]
      %v2866 = vld [vmem:[%s201 + $0x38] sm:$0x1]
      %v2867 = vld [vmem:[%s201 + $0x3c] sm:$0xf]
      %v2868 = vld [vmem:[%s201 + $0x40] sm:$0xf]
      %v2869 = vld [vmem:[%s201 + $0x44] sm:$0x1]
      %v2870 = vld [vmem:[%s201 + $0x48] sm:$0xf]
      %v2871 = vld [vmem:[%s201 + $0x4c] sm:$0xf]
      %v2872 = vld [vmem:[%s201 + $0x50] sm:$0x1]
      %v2873 = vld [vmem:[%s201 + $0x54] sm:$0xf]
      %v2874 = vld [vmem:[%s201 + $0x58] sm:$0xf]
      %v2875 = vld [vmem:[%s201 + $0x5c] sm:$0x1]
      %v2876 = vld [vmem:[%s201 + $0x60] sm:$0xf]
      %v2877 = vld [vmem:[%s201 + $0x64] sm:$0xf]
      %v2878 = vld [vmem:[%s201 + $0x68] sm:$0x1]
      %v2879 = vld [vmem:[%s201 + $0x6c] sm:$0xf]
      %v2880 = vld [vmem:[%s201 + $0x70] sm:$0xf]
      %v2881 = vld [vmem:[%s201 + $0x74] sm:$0x1]
      %v2882 = vld [vmem:[%s201 + $0x78] sm:$0xf]
      %v2883 = vld [vmem:[%s201 + $0x7c] sm:$0xf]
      %v2884 = vld [vmem:[%s201 + $0x80] sm:$0x1]
      %v2885 = vld [vmem:[%s201 + $0x84] sm:$0xf]
      %v2886 = vld [vmem:[%s201 + $0x88] sm:$0xf]
      %v2887 = vld [vmem:[%s201 + $0x8c] sm:$0x1]
      %v2888 = vld [vmem:[%s201 + $0x90] sm:$0xf]
      %v2889 = vld [vmem:[%s201 + $0x94] sm:$0xf]
      %v2890 = vld [vmem:[%s201 + $0x98] sm:$0x1]
      %v2891 = vld [vmem:[%s201 + $0x9c] sm:$0xf]
      %v2892 = vld [vmem:[%s201 + $0xa0] sm:$0xf]
      %v2893 = vld [vmem:[%s201 + $0xa4] sm:$0x1]
      %v2894 = vld [vmem:[%s201 + $0xa8] sm:$0xf]
      %v2895 = vld [vmem:[%s201 + $0xac] sm:$0xf]
      %v2896 = vld [vmem:[%s201 + $0xb0] sm:$0x1]
      %v2897 = vld [vmem:[%s201 + $0xb4] sm:$0xf]
      %v2898 = vld [vmem:[%s201 + $0xb8] sm:$0xf]
      %v2899 = vld [vmem:[%s201 + $0xbc] sm:$0x1]
      %v2901 = vshrl.u32 %v2852, 16
      %v2903 = vrot.slane %v2901, 4
      %v2904 = vshll.u32 %v2852, 16
      %v2906 = vrot.slane %v2904, 5
      %v2907 = vor.u32 %v2903, %v2906
      %v2908 = vrot.slane %v2907, 4
      %v2910 = vshll.u32 %v2853, 16
      %v2912 = vrot.slane %v2910, 5
      %v2913 = vsel %vm665, %v2908, %v2912
      %v2914 = vshrl.u32 %v2853, 16
      %v2916 = vrot.slane %v2914, 4
      %v2917 = vor.u32 %v2916, %v2912
      %v2918 = vrot.slane %v2917, 4
      %v2920 = vshll.u32 %v2854, 16
      %v2922 = vrot.slane %v2920, 5
      %v2923 = vsel %vm665, %v2918, %v2922
      %v2925 = vshrl.u32 %v2855, 16
      %v2927 = vrot.slane %v2925, 4
      %v2928 = vshll.u32 %v2855, 16
      %v2930 = vrot.slane %v2928, 5
      %v2931 = vor.u32 %v2927, %v2930
      %v2932 = vrot.slane %v2931, 4
      %v2934 = vshll.u32 %v2856, 16
      %v2936 = vrot.slane %v2934, 5
      %v2937 = vsel %vm665, %v2932, %v2936
      %v2938 = vshrl.u32 %v2856, 16
      %v2940 = vrot.slane %v2938, 4
      %v2941 = vor.u32 %v2940, %v2936
      %v2942 = vrot.slane %v2941, 4
      %v2944 = vshll.u32 %v2857, 16
      %v2946 = vrot.slane %v2944, 5
      %v2947 = vsel %vm665, %v2942, %v2946
      %v2949 = vshrl.u32 %v2858, 16
      %v2951 = vrot.slane %v2949, 4
      %v2952 = vshll.u32 %v2858, 16
      %v2954 = vrot.slane %v2952, 5
      %v2955 = vor.u32 %v2951, %v2954
      %v2956 = vrot.slane %v2955, 4
      %v2958 = vshll.u32 %v2859, 16
      %v2960 = vrot.slane %v2958, 5
      %v2961 = vsel %vm665, %v2956, %v2960
      %v2962 = vshrl.u32 %v2859, 16
      %v2964 = vrot.slane %v2962, 4
      %v2965 = vor.u32 %v2964, %v2960
      %v2966 = vrot.slane %v2965, 4
      %v2968 = vshll.u32 %v2860, 16
      %v2970 = vrot.slane %v2968, 5
      %v2971 = vsel %vm665, %v2966, %v2970
      %v2973 = vshrl.u32 %v2861, 16
      %v2975 = vrot.slane %v2973, 4
      %v2976 = vshll.u32 %v2861, 16
      %v2978 = vrot.slane %v2976, 5
      %v2979 = vor.u32 %v2975, %v2978
      %v2980 = vrot.slane %v2979, 4
      %v2982 = vshll.u32 %v2862, 16
      %v2984 = vrot.slane %v2982, 5
      %v2985 = vsel %vm665, %v2980, %v2984
      %v2986 = vshrl.u32 %v2862, 16
      %v2988 = vrot.slane %v2986, 4
      %v2989 = vor.u32 %v2988, %v2984
      %v2990 = vrot.slane %v2989, 4
      %v2992 = vshll.u32 %v2863, 16
      %v2994 = vrot.slane %v2992, 5
      %v2995 = vsel %vm665, %v2990, %v2994
      %v2997 = vshrl.u32 %v2864, 16
      %v2999 = vrot.slane %v2997, 4
      %v3000 = vshll.u32 %v2864, 16
      %v3002 = vrot.slane %v3000, 5
      %v3003 = vor.u32 %v2999, %v3002
      %v3004 = vrot.slane %v3003, 4
      %v3006 = vshll.u32 %v2865, 16
      %v3008 = vrot.slane %v3006, 5
      %v3009 = vsel %vm665, %v3004, %v3008
      %v3010 = vshrl.u32 %v2865, 16
      %v3012 = vrot.slane %v3010, 4
      %v3013 = vor.u32 %v3012, %v3008
      %v3014 = vrot.slane %v3013, 4
      %v3016 = vshll.u32 %v2866, 16
      %v3018 = vrot.slane %v3016, 5
      %v3019 = vsel %vm665, %v3014, %v3018
      %v3021 = vshrl.u32 %v2867, 16
      %v3023 = vrot.slane %v3021, 4
      %v3024 = vshll.u32 %v2867, 16
      %v3026 = vrot.slane %v3024, 5
      %v3027 = vor.u32 %v3023, %v3026
      %v3028 = vrot.slane %v3027, 4
      %v3030 = vshll.u32 %v2868, 16
      %v3032 = vrot.slane %v3030, 5
      %v3033 = vsel %vm665, %v3028, %v3032
      %v3034 = vshrl.u32 %v2868, 16
      %v3036 = vrot.slane %v3034, 4
      %v3037 = vor.u32 %v3036, %v3032
      %v3038 = vrot.slane %v3037, 4
      %v3040 = vshll.u32 %v2869, 16
      %v3042 = vrot.slane %v3040, 5
      %v3043 = vsel %vm665, %v3038, %v3042
      %v3045 = vshrl.u32 %v2870, 16
      %v3047 = vrot.slane %v3045, 4
      %v3048 = vshll.u32 %v2870, 16
      %v3050 = vrot.slane %v3048, 5
      %v3051 = vor.u32 %v3047, %v3050
      %v3052 = vrot.slane %v3051, 4
      %v3054 = vshll.u32 %v2871, 16
      %v3056 = vrot.slane %v3054, 5
      %v3057 = vsel %vm665, %v3052, %v3056
      %v3058 = vshrl.u32 %v2871, 16
      %v3060 = vrot.slane %v3058, 4
      %v3061 = vor.u32 %v3060, %v3056
      %v3062 = vrot.slane %v3061, 4
      %v3064 = vshll.u32 %v2872, 16
      %v3066 = vrot.slane %v3064, 5
      %v3067 = vsel %vm665, %v3062, %v3066
      %v3069 = vshrl.u32 %v2873, 16
      %v3071 = vrot.slane %v3069, 4
      %v3072 = vshll.u32 %v2873, 16
      %v3074 = vrot.slane %v3072, 5
      %v3075 = vor.u32 %v3071, %v3074
      %v3076 = vrot.slane %v3075, 4
      %v3078 = vshll.u32 %v2874, 16
      %v3080 = vrot.slane %v3078, 5
      %v3081 = vsel %vm665, %v3076, %v3080
      %v3082 = vshrl.u32 %v2874, 16
      %v3084 = vrot.slane %v3082, 4
      %v3085 = vor.u32 %v3084, %v3080
      %v3086 = vrot.slane %v3085, 4
      %v3088 = vshll.u32 %v2875, 16
      %v3090 = vrot.slane %v3088, 5
      %v3091 = vsel %vm665, %v3086, %v3090
      %v3093 = vshrl.u32 %v2876, 16
      %v3095 = vrot.slane %v3093, 4
      %v3096 = vshll.u32 %v2876, 16
      %v3098 = vrot.slane %v3096, 5
      %v3099 = vor.u32 %v3095, %v3098
      %v3100 = vrot.slane %v3099, 4
      %v3102 = vshll.u32 %v2877, 16
      %v3104 = vrot.slane %v3102, 5
      %v3105 = vsel %vm665, %v3100, %v3104
      %v3106 = vshrl.u32 %v2877, 16
      %v3108 = vrot.slane %v3106, 4
      %v3109 = vor.u32 %v3108, %v3104
      %v3110 = vrot.slane %v3109, 4
      %v3112 = vshll.u32 %v2878, 16
      %v3114 = vrot.slane %v3112, 5
      %v3115 = vsel %vm665, %v3110, %v3114
      %v3117 = vshrl.u32 %v2879, 16
      %v3119 = vrot.slane %v3117, 4
      %v3120 = vshll.u32 %v2879, 16
      %v3122 = vrot.slane %v3120, 5
      %v3123 = vor.u32 %v3119, %v3122
      %v3124 = vrot.slane %v3123, 4
      %v3126 = vshll.u32 %v2880, 16
      %v3128 = vrot.slane %v3126, 5
      %v3129 = vsel %vm665, %v3124, %v3128
      %v3130 = vshrl.u32 %v2880, 16
      %v3132 = vrot.slane %v3130, 4
      %v3133 = vor.u32 %v3132, %v3128
      %v3134 = vrot.slane %v3133, 4
      %v3136 = vshll.u32 %v2881, 16
      %v3138 = vrot.slane %v3136, 5
      %v3139 = vsel %vm665, %v3134, %v3138
      %v3141 = vshrl.u32 %v2882, 16
      %v3143 = vrot.slane %v3141, 4
      %v3144 = vshll.u32 %v2882, 16
      %v3146 = vrot.slane %v3144, 5
      %v3147 = vor.u32 %v3143, %v3146
      %v3148 = vrot.slane %v3147, 4
      %v3150 = vshll.u32 %v2883, 16
      %v3152 = vrot.slane %v3150, 5
      %v3153 = vsel %vm665, %v3148, %v3152
      %v3154 = vshrl.u32 %v2883, 16
      %v3156 = vrot.slane %v3154, 4
      %v3157 = vor.u32 %v3156, %v3152
      %v3158 = vrot.slane %v3157, 4
      %v3160 = vshll.u32 %v2884, 16
      %v3162 = vrot.slane %v3160, 5
      %v3163 = vsel %vm665, %v3158, %v3162
      %v3165 = vshrl.u32 %v2885, 16
      %v3167 = vrot.slane %v3165, 4
      %v3168 = vshll.u32 %v2885, 16
      %v3170 = vrot.slane %v3168, 5
      %v3171 = vor.u32 %v3167, %v3170
      %v3172 = vrot.slane %v3171, 4
      %v3174 = vshll.u32 %v2886, 16
      %v3176 = vrot.slane %v3174, 5
      %v3177 = vsel %vm665, %v3172, %v3176
      %v3178 = vshrl.u32 %v2886, 16
      %v3180 = vrot.slane %v3178, 4
      %v3181 = vor.u32 %v3180, %v3176
      %v3182 = vrot.slane %v3181, 4
      %v3184 = vshll.u32 %v2887, 16
      %v3186 = vrot.slane %v3184, 5
      %v3187 = vsel %vm665, %v3182, %v3186
      %v3189 = vshrl.u32 %v2888, 16
      %v3191 = vrot.slane %v3189, 4
      %v3192 = vshll.u32 %v2888, 16
      %v3194 = vrot.slane %v3192, 5
      %v3195 = vor.u32 %v3191, %v3194
      %v3196 = vrot.slane %v3195, 4
      %v3198 = vshll.u32 %v2889, 16
      %v3200 = vrot.slane %v3198, 5
      %v3201 = vsel %vm665, %v3196, %v3200
      %v3202 = vshrl.u32 %v2889, 16
      %v3204 = vrot.slane %v3202, 4
      %v3205 = vor.u32 %v3204, %v3200
      %v3206 = vrot.slane %v3205, 4
      %v3208 = vshll.u32 %v2890, 16
      %v3210 = vrot.slane %v3208, 5
      %v3211 = vsel %vm665, %v3206, %v3210
      %v3213 = vshrl.u32 %v2891, 16
      %v3215 = vrot.slane %v3213, 4
      %v3216 = vshll.u32 %v2891, 16
      %v3218 = vrot.slane %v3216, 5
      %v3219 = vor.u32 %v3215, %v3218
      %v3220 = vrot.slane %v3219, 4
      %v3222 = vshll.u32 %v2892, 16
      %v3224 = vrot.slane %v3222, 5
      %v3225 = vsel %vm665, %v3220, %v3224
      %v3226 = vshrl.u32 %v2892, 16
      %v3228 = vrot.slane %v3226, 4
      %v3229 = vor.u32 %v3228, %v3224
      %v3230 = vrot.slane %v3229, 4
      %v3232 = vshll.u32 %v2893, 16
      %v3234 = vrot.slane %v3232, 5
      %v3235 = vsel %vm665, %v3230, %v3234
      %v3237 = vshrl.u32 %v2894, 16
      %v3239 = vrot.slane %v3237, 4
      %v3240 = vshll.u32 %v2894, 16
      %v3242 = vrot.slane %v3240, 5
      %v3243 = vor.u32 %v3239, %v3242
      %v3244 = vrot.slane %v3243, 4
      %v3246 = vshll.u32 %v2895, 16
      %v3248 = vrot.slane %v3246, 5
      %v3249 = vsel %vm665, %v3244, %v3248
      %v3250 = vshrl.u32 %v2895, 16
      %v3252 = vrot.slane %v3250, 4
      %v3253 = vor.u32 %v3252, %v3248
      %v3254 = vrot.slane %v3253, 4
      %v3256 = vshll.u32 %v2896, 16
      %v3258 = vrot.slane %v3256, 5
      %v3259 = vsel %vm665, %v3254, %v3258
      %v3261 = vshrl.u32 %v2897, 16
      %v3263 = vrot.slane %v3261, 4
      %v3264 = vshll.u32 %v2897, 16
      %v3266 = vrot.slane %v3264, 5
      %v3267 = vor.u32 %v3263, %v3266
      %v3268 = vrot.slane %v3267, 4
      %v3270 = vshll.u32 %v2898, 16
      %v3272 = vrot.slane %v3270, 5
      %v3273 = vsel %vm665, %v3268, %v3272
      %v3274 = vshrl.u32 %v2898, 16
      %v3276 = vrot.slane %v3274, 4
      %v3277 = vor.u32 %v3276, %v3272
      %v3278 = vrot.slane %v3277, 4
      %v3280 = vshll.u32 %v2899, 16
      %v3282 = vrot.slane %v3280, 5
      %v3283 = vsel %vm665, %v3278, %v3282
      %v3284 = vunpack.c.l.b16 %v2913
      %v3285 = vunpack.c.l.b16 %v2923
      %v3286 = vunpack.c.l.b16 %v2937
      %v3287 = vunpack.c.l.b16 %v2947
      %v3288 = vunpack.c.l.b16 %v2961
      %v3289 = vunpack.c.l.b16 %v2971
      %v3290 = vunpack.c.l.b16 %v2985
      %v3291 = vunpack.c.l.b16 %v2995
      %v3292 = vunpack.c.l.b16 %v3009
      %v3293 = vunpack.c.l.b16 %v3019
      %v3294 = vunpack.c.l.b16 %v3033
      %v3295 = vunpack.c.l.b16 %v3043
      %v3296 = vunpack.c.l.b16 %v3057
      %v3297 = vunpack.c.l.b16 %v3067
      %v3298 = vunpack.c.l.b16 %v3081
      %v3299 = vunpack.c.l.b16 %v3091
      %v3300 = vunpack.c.l.b16 %v3105
      %v3301 = vunpack.c.l.b16 %v3115
      %v3302 = vunpack.c.l.b16 %v3129
      %v3303 = vunpack.c.l.b16 %v3139
      %v3304 = vunpack.c.l.b16 %v3153
      %v3305 = vunpack.c.l.b16 %v3163
      %v3306 = vunpack.c.l.b16 %v3177
      %v3307 = vunpack.c.l.b16 %v3187
      %v3308 = vunpack.c.l.b16 %v3201
      %v3309 = vunpack.c.l.b16 %v3211
      %v3310 = vunpack.c.l.b16 %v3225
      %v3311 = vunpack.c.l.b16 %v3235
      %v3312 = vunpack.c.l.b16 %v3249
      %v3313 = vunpack.c.l.b16 %v3259
      %v3314 = vunpack.c.l.b16 %v3273
      %v3315 = vunpack.c.l.b16 %v3283
      %v3316 = vpack.c.b16 %v3285, %v3284
      %v3317 = vpack.c.b16 %v3287, %v3286
      %v3318 = vpack.c.b16 %v3289, %v3288
      %v3319 = vpack.c.b16 %v3291, %v3290
      %v3320 = vpack.c.b16 %v3293, %v3292
      %v3321 = vpack.c.b16 %v3295, %v3294
      %v3322 = vpack.c.b16 %v3297, %v3296
      %v3323 = vpack.c.b16 %v3299, %v3298
      %v3324 = vpack.c.b16 %v3301, %v3300
      %v3325 = vpack.c.b16 %v3303, %v3302
      %v3326 = vpack.c.b16 %v3305, %v3304
      %v3327 = vpack.c.b16 %v3307, %v3306
      %v3328 = vpack.c.b16 %v3309, %v3308
      %v3329 = vpack.c.b16 %v3311, %v3310
      %v3330 = vpack.c.b16 %v3313, %v3312
      %v3331 = vpack.c.b16 %v3315, %v3314
      %3332 = vrot.lane.b32.xlu0 %v3316, 16
      %v3333 = vpop.permute.xlu0 %3332
      %3334 = vrot.lane.b32.xlu0 %v3317, 16
      %v3335 = vpop.permute.xlu0 %3334
      %3336 = vrot.lane.b32.xlu0 %v3318, 16
      %v3337 = vpop.permute.xlu0 %3336
      %3338 = vrot.lane.b32.xlu0 %v3319, 16
      %v3339 = vpop.permute.xlu0 %3338
      %3340 = vrot.lane.b32.xlu0 %v3320, 16
      %v3341 = vpop.permute.xlu0 %3340
      %3342 = vrot.lane.b32.xlu0 %v3321, 16
      %v3343 = vpop.permute.xlu0 %3342
      %3344 = vrot.lane.b32.xlu0 %v3322, 16
      %v3345 = vpop.permute.xlu0 %3344
      %3346 = vrot.lane.b32.xlu0 %v3323, 16
      %v3347 = vpop.permute.xlu0 %3346
      %3348 = vrot.lane.b32.xlu0 %v3324, 16
      %v3349 = vpop.permute.xlu0 %3348
      %3350 = vrot.lane.b32.xlu0 %v3325, 16
      %v3351 = vpop.permute.xlu0 %3350
      %3352 = vrot.lane.b32.xlu0 %v3326, 16
      %v3353 = vpop.permute.xlu0 %3352
      %3354 = vrot.lane.b32.xlu0 %v3327, 16
      %v3355 = vpop.permute.xlu0 %3354
      %3356 = vrot.lane.b32.xlu0 %v3328, 16
      %v3357 = vpop.permute.xlu0 %3356
      %3358 = vrot.lane.b32.xlu0 %v3329, 16
      %v3359 = vpop.permute.xlu0 %3358
      %3360 = vrot.lane.b32.xlu0 %v3330, 16
      %v3361 = vpop.permute.xlu0 %3360
      %3362 = vrot.lane.b32.xlu0 %v3331, 16
      %v3363 = vpop.permute.xlu0 %3362
      %vm3380 = vcmask 195712
      %3381 = vst.msk [vmem:[#allocation2] sm:$0xff] %vm3380, %v3333
      %3382 = vst.msk [vmem:[#allocation2 + $0x8] sm:$0xff] %vm3380, %v3335
      %3383 = vst.msk [vmem:[#allocation2 + $0x10] sm:$0xff] %vm3380, %v3337
      %3384 = vst.msk [vmem:[#allocation2 + $0x18] sm:$0xff] %vm3380, %v3339
      %3385 = vst.msk [vmem:[#allocation2 + $0x20] sm:$0xff] %vm3380, %v3341
      %3386 = vst.msk [vmem:[#allocation2 + $0x28] sm:$0xff] %vm3380, %v3343
      %3387 = vst.msk [vmem:[#allocation2 + $0x30] sm:$0xff] %vm3380, %v3345
      %3388 = vst.msk [vmem:[#allocation2 + $0x38] sm:$0xff] %vm3380, %v3347
      %3389 = vst.msk [vmem:[#allocation2 + $0x40] sm:$0xff] %vm3380, %v3349
      %3390 = vst.msk [vmem:[#allocation2 + $0x48] sm:$0xff] %vm3380, %v3351
      %3391 = vst.msk [vmem:[#allocation2 + $0x50] sm:$0xff] %vm3380, %v3353
      %3392 = vst.msk [vmem:[#allocation2 + $0x58] sm:$0xff] %vm3380, %v3355
      %3393 = vst.msk [vmem:[#allocation2 + $0x60] sm:$0xff] %vm3380, %v3357
      %3394 = vst.msk [vmem:[#allocation2 + $0x68] sm:$0xff] %vm3380, %v3359
      %3395 = vst.msk [vmem:[#allocation2 + $0x70] sm:$0xff] %vm3380, %v3361
      %3396 = vst.msk [vmem:[#allocation2 + $0x78] sm:$0xff] %vm3380, %v3363
      %v3397 = vld [vmem:[%s201] sm:$0xf]
      %v3398 = vld [vmem:[%s201 + $0x4] sm:$0xf]
      %v3399 = vld [vmem:[%s201 + $0xc] sm:$0xf]
      %v3400 = vld [vmem:[%s201 + $0x10] sm:$0xf]
      %v3401 = vld [vmem:[%s201 + $0x18] sm:$0xf]
      %v3402 = vld [vmem:[%s201 + $0x1c] sm:$0xf]
      %v3403 = vld [vmem:[%s201 + $0x24] sm:$0xf]
      %v3404 = vld [vmem:[%s201 + $0x28] sm:$0xf]
      %v3405 = vld [vmem:[%s201 + $0x30] sm:$0xf]
      %v3406 = vld [vmem:[%s201 + $0x34] sm:$0xf]
      %v3407 = vld [vmem:[%s201 + $0x3c] sm:$0xf]
      %v3408 = vld [vmem:[%s201 + $0x40] sm:$0xf]
      %v3409 = vld [vmem:[%s201 + $0x48] sm:$0xf]
      %v3410 = vld [vmem:[%s201 + $0x4c] sm:$0xf]
      %v3411 = vld [vmem:[%s201 + $0x54] sm:$0xf]
      %v3412 = vld [vmem:[%s201 + $0x58] sm:$0xf]
      %v3413 = vld [vmem:[%s201 + $0x60] sm:$0xf]
      %v3414 = vld [vmem:[%s201 + $0x64] sm:$0xf]
      %v3415 = vld [vmem:[%s201 + $0x6c] sm:$0xf]
      %v3416 = vld [vmem:[%s201 + $0x70] sm:$0xf]
      %v3417 = vld [vmem:[%s201 + $0x78] sm:$0xf]
      %v3418 = vld [vmem:[%s201 + $0x7c] sm:$0xf]
      %v3419 = vld [vmem:[%s201 + $0x84] sm:$0xf]
      %v3420 = vld [vmem:[%s201 + $0x88] sm:$0xf]
      %v3421 = vld [vmem:[%s201 + $0x90] sm:$0xf]
      %v3422 = vld [vmem:[%s201 + $0x94] sm:$0xf]
      %v3423 = vld [vmem:[%s201 + $0x9c] sm:$0xf]
      %v3424 = vld [vmem:[%s201 + $0xa0] sm:$0xf]
      %v3425 = vld [vmem:[%s201 + $0xa8] sm:$0xf]
      %v3426 = vld [vmem:[%s201 + $0xac] sm:$0xf]
      %v3427 = vld [vmem:[%s201 + $0xb4] sm:$0xf]
      %v3428 = vld [vmem:[%s201 + $0xb8] sm:$0xf]
      %v3461 = vunpack.c.l.b16 %v3397
      %v3462 = vunpack.c.l.b16 %v3398
      %v3463 = vunpack.c.l.b16 %v3399
      %v3464 = vunpack.c.l.b16 %v3400
      %v3465 = vunpack.c.l.b16 %v3401
      %v3466 = vunpack.c.l.b16 %v3402
      %v3467 = vunpack.c.l.b16 %v3403
      %v3468 = vunpack.c.l.b16 %v3404
      %v3469 = vunpack.c.l.b16 %v3405
      %v3470 = vunpack.c.l.b16 %v3406
      %v3471 = vunpack.c.l.b16 %v3407
      %v3472 = vunpack.c.l.b16 %v3408
      %v3473 = vunpack.c.l.b16 %v3409
      %v3474 = vunpack.c.l.b16 %v3410
      %v3475 = vunpack.c.l.b16 %v3411
      %v3476 = vunpack.c.l.b16 %v3412
      %v3477 = vunpack.c.l.b16 %v3413
      %v3478 = vunpack.c.l.b16 %v3414
      %v3479 = vunpack.c.l.b16 %v3415
      %v3480 = vunpack.c.l.b16 %v3416
      %v3481 = vunpack.c.l.b16 %v3417
      %v3482 = vunpack.c.l.b16 %v3418
      %v3483 = vunpack.c.l.b16 %v3419
      %v3484 = vunpack.c.l.b16 %v3420
      %v3485 = vunpack.c.l.b16 %v3421
      %v3486 = vunpack.c.l.b16 %v3422
      %v3487 = vunpack.c.l.b16 %v3423
      %v3488 = vunpack.c.l.b16 %v3424
      %v3489 = vunpack.c.l.b16 %v3425
      %v3490 = vunpack.c.l.b16 %v3426
      %v3491 = vunpack.c.l.b16 %v3427
      %v3492 = vunpack.c.l.b16 %v3428
      %v3493 = vpack.c.b16 %v3462, %v3461
      %v3494 = vpack.c.b16 %v3464, %v3463
      %v3495 = vpack.c.b16 %v3466, %v3465
      %v3496 = vpack.c.b16 %v3468, %v3467
      %v3497 = vpack.c.b16 %v3470, %v3469
      %v3498 = vpack.c.b16 %v3472, %v3471
      %v3499 = vpack.c.b16 %v3474, %v3473
      %v3500 = vpack.c.b16 %v3476, %v3475
      %v3501 = vpack.c.b16 %v3478, %v3477
      %v3502 = vpack.c.b16 %v3480, %v3479
      %v3503 = vpack.c.b16 %v3482, %v3481
      %v3504 = vpack.c.b16 %v3484, %v3483
      %v3505 = vpack.c.b16 %v3486, %v3485
      %v3506 = vpack.c.b16 %v3488, %v3487
      %v3507 = vpack.c.b16 %v3490, %v3489
      %v3508 = vpack.c.b16 %v3492, %v3491
      %3509 = vrot.lane.b32.xlu0 %v3493, 24
      %v3510 = vpop.permute.xlu0 %3509
      %3511 = vrot.lane.b32.xlu0 %v3494, 24
      %v3512 = vpop.permute.xlu0 %3511
      %3513 = vrot.lane.b32.xlu0 %v3495, 24
      %v3514 = vpop.permute.xlu0 %3513
      %3515 = vrot.lane.b32.xlu0 %v3496, 24
      %v3516 = vpop.permute.xlu0 %3515
      %3517 = vrot.lane.b32.xlu0 %v3497, 24
      %v3518 = vpop.permute.xlu0 %3517
      %3519 = vrot.lane.b32.xlu0 %v3498, 24
      %v3520 = vpop.permute.xlu0 %3519
      %3521 = vrot.lane.b32.xlu0 %v3499, 24
      %v3522 = vpop.permute.xlu0 %3521
      %3523 = vrot.lane.b32.xlu0 %v3500, 24
      %v3524 = vpop.permute.xlu0 %3523
      %3525 = vrot.lane.b32.xlu0 %v3501, 24
      %v3526 = vpop.permute.xlu0 %3525
      %3527 = vrot.lane.b32.xlu0 %v3502, 24
      %v3528 = vpop.permute.xlu0 %3527
      %3529 = vrot.lane.b32.xlu0 %v3503, 24
      %v3530 = vpop.permute.xlu0 %3529
      %3531 = vrot.lane.b32.xlu0 %v3504, 24
      %v3532 = vpop.permute.xlu0 %3531
      %3533 = vrot.lane.b32.xlu0 %v3505, 24
      %v3534 = vpop.permute.xlu0 %3533
      %3535 = vrot.lane.b32.xlu0 %v3506, 24
      %v3536 = vpop.permute.xlu0 %3535
      %3537 = vrot.lane.b32.xlu0 %v3507, 24
      %v3538 = vpop.permute.xlu0 %3537
      %3539 = vrot.lane.b32.xlu0 %v3508, 24
      %v3540 = vpop.permute.xlu0 %3539
      %vm3557 = vcmask 261312
      %3558 = vst.msk [vmem:[#allocation2] sm:$0xff] %vm3557, %v3510
      %3559 = vst.msk [vmem:[#allocation2 + $0x8] sm:$0xff] %vm3557, %v3512
      %3560 = vst.msk [vmem:[#allocation2 + $0x10] sm:$0xff] %vm3557, %v3514
      %3561 = vst.msk [vmem:[#allocation2 + $0x18] sm:$0xff] %vm3557, %v3516
      %3562 = vst.msk [vmem:[#allocation2 + $0x20] sm:$0xff] %vm3557, %v3518
      %3563 = vst.msk [vmem:[#allocation2 + $0x28] sm:$0xff] %vm3557, %v3520
      %3564 = vst.msk [vmem:[#allocation2 + $0x30] sm:$0xff] %vm3557, %v3522
      %3565 = vst.msk [vmem:[#allocation2 + $0x38] sm:$0xff] %vm3557, %v3524
      %3566 = vst.msk [vmem:[#allocation2 + $0x40] sm:$0xff] %vm3557, %v3526
      %3567 = vst.msk [vmem:[#allocation2 + $0x48] sm:$0xff] %vm3557, %v3528
      %3568 = vst.msk [vmem:[#allocation2 + $0x50] sm:$0xff] %vm3557, %v3530
      %3569 = vst.msk [vmem:[#allocation2 + $0x58] sm:$0xff] %vm3557, %v3532
      %3570 = vst.msk [vmem:[#allocation2 + $0x60] sm:$0xff] %vm3557, %v3534
      %3571 = vst.msk [vmem:[#allocation2 + $0x68] sm:$0xff] %vm3557, %v3536
      %3572 = vst.msk [vmem:[#allocation2 + $0x70] sm:$0xff] %vm3557, %v3538
      %3573 = vst.msk [vmem:[#allocation2 + $0x78] sm:$0xff] %vm3557, %v3540
      %v3574 = vld [vmem:[#allocation2] sm:$0xff]
      %v3575 = vld [vmem:[#allocation2 + $0x8] sm:$0xff]
      %v3576 = vld [vmem:[#allocation2 + $0x10] sm:$0xff]
      %v3577 = vld [vmem:[#allocation2 + $0x18] sm:$0xff]
      %v3578 = vld [vmem:[#allocation2 + $0x20] sm:$0xff]
      %v3579 = vld [vmem:[#allocation2 + $0x28] sm:$0xff]
      %v3580 = vld [vmem:[#allocation2 + $0x30] sm:$0xff]
      %v3581 = vld [vmem:[#allocation2 + $0x38] sm:$0xff]
      %v3582 = vld [vmem:[#allocation2 + $0x40] sm:$0xff]
      %v3583 = vld [vmem:[#allocation2 + $0x48] sm:$0xff]
      %v3584 = vld [vmem:[#allocation2 + $0x50] sm:$0xff]
      %v3585 = vld [vmem:[#allocation2 + $0x58] sm:$0xff]
      %v3586 = vld [vmem:[#allocation2 + $0x60] sm:$0xff]
      %v3587 = vld [vmem:[#allocation2 + $0x68] sm:$0xff]
      %v3588 = vld [vmem:[#allocation2 + $0x70] sm:$0xff]
      %v3589 = vld [vmem:[#allocation2 + $0x78] sm:$0xff]
      %v3590 = vld [vmem:[%s1 + $0x14] sm:$0xf]
      %v3591 = vld [vmem:[%s1 + $0x18] sm:$0xf]
      %v3592 = vld [vmem:[%s1 + $0x1c] sm:$0xf]
      %v3593 = vld [vmem:[%s1 + $0x20] sm:$0xf]
      %v3598 = vunpack.c.l.b16 %v3590
      %v3599 = vunpack.c.l.b16 %v3591
      %v3600 = vunpack.c.l.b16 %v3592
      %v3601 = vunpack.c.l.b16 %v3593
      %v3602 = vpack.c.b16 %v3599, %v3598
      %v3603 = vpack.c.b16 %v3601, %v3600
      %vm3606 = vcmask 261120
      %v3608 = vsel %vm3606, %v3574, 0
      %v3611 = vsel %vm3606, %v3575, 0
      %v3614 = vsel %vm3606, %v3576, 0
      %v3617 = vsel %vm3606, %v3577, 0
      %v3620 = vsel %vm3606, %v3578, 0
      %v3623 = vsel %vm3606, %v3579, 0
      %v3626 = vsel %vm3606, %v3580, 0
      %v3629 = vsel %vm3606, %v3581, 0
      %v3632 = vsel %vm3606, %v3582, 0
      %v3635 = vsel %vm3606, %v3583, 0
      %v3638 = vsel %vm3606, %v3584, 0
      %v3641 = vsel %vm3606, %v3585, 0
      %v3644 = vsel %vm3606, %v3586, 0
      %v3647 = vsel %vm3606, %v3587, 0
      %v3650 = vsel %vm3606, %v3588, 0
      %v3653 = vsel %vm3606, %v3589, 0
      %3655 = vmatprep.subr.bf16.mxu0 0
      %3656 = vmatpush1.bf16.msra.mxu0 %v3602
      %3657 = vmatprep.subr.bf16.mxu0 0
      %3658 = vmatpush1.bf16.msra.mxu0 %v3603
      %3659 = vmatprep.subr.bf16.mxu0 0
      %3660 = vmatpush1.bf16.msra.mxu0 0
      %3661 = vmatprep.subr.bf16.mxu0 0
      %3662 = vmatpush1.bf16.msra.mxu0 0
      %3663 = vmatprep.subr.bf16.mxu0 0
      %3664 = vmatpush1.bf16.msra.mxu0 0
      %3665 = vmatprep.subr.bf16.mxu0 0
      %3666 = vmatpush1.bf16.msra.mxu0 0
      %3667 = vmatprep.subr.bf16.mxu0 0
      %3668 = vmatpush1.bf16.msra.mxu0 0
      %3669 = vmatprep.subr.bf16.mxu0 0
      %3670 = vmatpush1.bf16.msra.mxu0 0
      %3671 = vmatprep.subr.bf16.mxu0 0
      %3672 = vmatpush1.bf16.msra.mxu0 0
      %3673 = vmatprep.subr.bf16.mxu0 0
      %3674 = vmatpush1.bf16.msra.mxu0 0
      %3675 = vmatprep.subr.bf16.mxu0 0
      %3676 = vmatpush1.bf16.msra.mxu0 0
      %3677 = vmatprep.subr.bf16.mxu0 0
      %3678 = vmatpush1.bf16.msra.mxu0 0
      %3679 = vmatprep.subr.bf16.mxu0 0
      %3680 = vmatpush1.bf16.msra.mxu0 0
      %3681 = vmatprep.subr.bf16.mxu0 0
      %3682 = vmatpush1.bf16.msra.mxu0 0
      %3683 = vmatprep.subr.bf16.mxu0 0
      %3684 = vmatpush1.bf16.msra.mxu0 0
      %3685 = vmatprep.subr.bf16.mxu0 0
      %3686 = vmatpush1.bf16.msra.mxu0 0
      %3687 = vmatprep.mubr.bf16.mxu0 0
      %3688 = vmatmul.mubr.bf16.gmra.mrb[0].mxu0 %v3608
      %v3689 = vpop.f32.mrb[0].mxu0
      %v3690 = vadd.f32 %v368, %v3689
      %v3691 = vpop.f32.mrb[0].mxu0
      %v3692 = vpop.f32.mrb[0].mxu0
      %v3693 = vadd.f32 %v368, %v3692
      %v3694 = vpop.f32.mrb[0].mxu0
      %3695 = vmatprep.mubr.bf16.mxu0 0
      %3696 = vmatmul.mubr.bf16.gmra.mrb[0].mxu0 %v3611
      %v3697 = vpop.f32.mrb[0].mxu0
      %v3698 = vadd.f32 %v368, %v3697
      %v3699 = vpop.f32.mrb[0].mxu0
      %v3700 = vpop.f32.mrb[0].mxu0
      %v3701 = vadd.f32 %v368, %v3700
      %v3702 = vpop.f32.mrb[0].mxu0
      %3703 = vmatprep.mubr.bf16.mxu0 0
      %3704 = vmatmul.mubr.bf16.gmra.mrb[0].mxu0 %v3614
      %v3705 = vpop.f32.mrb[0].mxu0
      %v3706 = vadd.f32 %v368, %v3705
      %v3707 = vpop.f32.mrb[0].mxu0
      %v3708 = vpop.f32.mrb[0].mxu0
      %v3709 = vadd.f32 %v368, %v3708
      %v3710 = vpop.f32.mrb[0].mxu0
      %3711 = vmatprep.mubr.bf16.mxu0 0
      %3712 = vmatmul.mubr.bf16.gmra.mrb[0].mxu0 %v3617
      %v3713 = vpop.f32.mrb[0].mxu0
      %v3714 = vadd.f32 %v368, %v3713
      %v3715 = vpop.f32.mrb[0].mxu0
      %v3716 = vpop.f32.mrb[0].mxu0
      %v3717 = vadd.f32 %v368, %v3716
      %v3718 = vpop.f32.mrb[0].mxu0
      %3719 = vmatprep.mubr.bf16.mxu0 0
      %3720 = vmatmul.mubr.bf16.gmra.mrb[0].mxu0 %v3620
      %v3721 = vpop.f32.mrb[0].mxu0
      %v3722 = vadd.f32 %v368, %v3721
      %v3723 = vpop.f32.mrb[0].mxu0
      %v3724 = vpop.f32.mrb[0].mxu0
      %v3725 = vadd.f32 %v368, %v3724
      %v3726 = vpop.f32.mrb[0].mxu0
      %3727 = vmatprep.mubr.bf16.mxu0 0
      %3728 = vmatmul.mubr.bf16.gmra.mrb[0].mxu0 %v3623
      %v3729 = vpop.f32.mrb[0].mxu0
      %v3730 = vadd.f32 %v368, %v3729
      %v3731 = vpop.f32.mrb[0].mxu0
      %v3732 = vpop.f32.mrb[0].mxu0
      %v3733 = vadd.f32 %v368, %v3732
      %v3734 = vpop.f32.mrb[0].mxu0
      %3735 = vmatprep.mubr.bf16.mxu0 0
      %3736 = vmatmul.mubr.bf16.gmra.mrb[0].mxu0 %v3626
      %v3737 = vpop.f32.mrb[0].mxu0
      %v3738 = vadd.f32 %v368, %v3737
      %v3739 = vpop.f32.mrb[0].mxu0
      %v3740 = vpop.f32.mrb[0].mxu0
      %v3741 = vadd.f32 %v368, %v3740
      %v3742 = vpop.f32.mrb[0].mxu0
      %3743 = vmatprep.mubr.bf16.mxu0 0
      %3744 = vmatmul.mubr.bf16.gmra.mrb[0].mxu0 %v3629
      %v3745 = vpop.f32.mrb[0].mxu0
      %v3746 = vadd.f32 %v368, %v3745
      %v3747 = vpop.f32.mrb[0].mxu0
      %v3748 = vpop.f32.mrb[0].mxu0
      %v3749 = vadd.f32 %v368, %v3748
      %v3750 = vpop.f32.mrb[0].mxu0
      %3751 = vmatprep.mubr.bf16.mxu0 0
      %3752 = vmatmul.mubr.bf16.gmra.mrb[0].mxu0 %v3632
      %v3753 = vpop.f32.mrb[0].mxu0
      %v3754 = vadd.f32 %v368, %v3753
      %v3755 = vpop.f32.mrb[0].mxu0
      %v3756 = vpop.f32.mrb[0].mxu0
      %v3757 = vadd.f32 %v368, %v3756
      %v3758 = vpop.f32.mrb[0].mxu0
      %3759 = vmatprep.mubr.bf16.mxu0 0
      %3760 = vmatmul.mubr.bf16.gmra.mrb[0].mxu0 %v3635
      %v3761 = vpop.f32.mrb[0].mxu0
      %v3762 = vadd.f32 %v368, %v3761
      %v3763 = vpop.f32.mrb[0].mxu0
      %v3764 = vpop.f32.mrb[0].mxu0
      %v3765 = vadd.f32 %v368, %v3764
      %v3766 = vpop.f32.mrb[0].mxu0
      %3767 = vmatprep.mubr.bf16.mxu0 0
      %3768 = vmatmul.mubr.bf16.gmra.mrb[0].mxu0 %v3638
      %v3769 = vpop.f32.mrb[0].mxu0
      %v3770 = vadd.f32 %v368, %v3769
      %v3771 = vpop.f32.mrb[0].mxu0
      %v3772 = vpop.f32.mrb[0].mxu0
      %v3773 = vadd.f32 %v368, %v3772
      %v3774 = vpop.f32.mrb[0].mxu0
      %3775 = vmatprep.mubr.bf16.mxu0 0
      %3776 = vmatmul.mubr.bf16.gmra.mrb[0].mxu0 %v3641
      %v3777 = vpop.f32.mrb[0].mxu0
      %v3778 = vadd.f32 %v368, %v3777
      %v3779 = vpop.f32.mrb[0].mxu0
      %v3780 = vpop.f32.mrb[0].mxu0
      %v3781 = vadd.f32 %v368, %v3780
      %v3782 = vpop.f32.mrb[0].mxu0
      %3783 = vmatprep.mubr.bf16.mxu0 0
      %3784 = vmatmul.mubr.bf16.gmra.mrb[0].mxu0 %v3644
      %v3785 = vpop.f32.mrb[0].mxu0
      %v3786 = vadd.f32 %v368, %v3785
      %v3787 = vpop.f32.mrb[0].mxu0
      %v3788 = vpop.f32.mrb[0].mxu0
      %v3789 = vadd.f32 %v368, %v3788
      %v3790 = vpop.f32.mrb[0].mxu0
      %3791 = vmatprep.mubr.bf16.mxu0 0
      %3792 = vmatmul.mubr.bf16.gmra.mrb[0].mxu0 %v3647
      %v3793 = vpop.f32.mrb[0].mxu0
      %v3794 = vadd.f32 %v368, %v3793
      %v3795 = vpop.f32.mrb[0].mxu0
      %v3796 = vpop.f32.mrb[0].mxu0
      %v3797 = vadd.f32 %v368, %v3796
      %v3798 = vpop.f32.mrb[0].mxu0
      %3799 = vmatprep.mubr.bf16.mxu0 0
      %3800 = vmatmul.mubr.bf16.gmra.mrb[0].mxu0 %v3650
      %v3801 = vpop.f32.mrb[0].mxu0
      %v3802 = vadd.f32 %v368, %v3801
      %v3803 = vpop.f32.mrb[0].mxu0
      %v3804 = vpop.f32.mrb[0].mxu0
      %v3805 = vadd.f32 %v368, %v3804
      %v3806 = vpop.f32.mrb[0].mxu0
      %3807 = vmatprep.mubr.bf16.mxu0 0
      %3808 = vmatmul.mubr.bf16.gmra.mrb[0].mxu0 %v3653
      %v3809 = vpop.f32.mrb[0].mxu0
      %v3810 = vadd.f32 %v368, %v3809
      %v3811 = vpop.f32.mrb[0].mxu0
      %v3812 = vpop.f32.mrb[0].mxu0
      %v3813 = vadd.f32 %v368, %v3812
      %v3814 = vpop.f32.mrb[0].mxu0
      %3815 = vdwg.mxu0
      %s3816 = scalar_lea.vmem %s194, 768
      %3817 = vst.msk [vmem:[%s3816] sm:$0xff] %vm330, %v3690
      %3818 = vst.msk [vmem:[%s3816 + $0x8] sm:$0xff] %vm330, %v3693
      %3819 = vst.msk [vmem:[%s3816 + $0x10] sm:$0xff] %vm330, %v3698
      %3820 = vst.msk [vmem:[%s3816 + $0x18] sm:$0xff] %vm330, %v3701
      %3821 = vst.msk [vmem:[%s3816 + $0x20] sm:$0xff] %vm330, %v3706
      %3822 = vst.msk [vmem:[%s3816 + $0x28] sm:$0xff] %vm330, %v3709
      %3823 = vst.msk [vmem:[%s3816 + $0x30] sm:$0xff] %vm330, %v3714
      %3824 = vst.msk [vmem:[%s3816 + $0x38] sm:$0xff] %vm330, %v3717
      %3825 = vst.msk [vmem:[%s3816 + $0x40] sm:$0xff] %vm330, %v3722
      %3826 = vst.msk [vmem:[%s3816 + $0x48] sm:$0xff] %vm330, %v3725
      %3827 = vst.msk [vmem:[%s3816 + $0x50] sm:$0xff] %vm330, %v3730
      %3828 = vst.msk [vmem:[%s3816 + $0x58] sm:$0xff] %vm330, %v3733
      %3829 = vst.msk [vmem:[%s3816 + $0x60] sm:$0xff] %vm330, %v3738
      %3830 = vst.msk [vmem:[%s3816 + $0x68] sm:$0xff] %vm330, %v3741
      %3831 = vst.msk [vmem:[%s3816 + $0x70] sm:$0xff] %vm330, %v3746
      %3832 = vst.msk [vmem:[%s3816 + $0x78] sm:$0xff] %vm330, %v3749
      %3833 = vst.msk [vmem:[%s3816 + $0x80] sm:$0xff] %vm330, %v3754
      %3834 = vst.msk [vmem:[%s3816 + $0x88] sm:$0xff] %vm330, %v3757
      %3835 = vst.msk [vmem:[%s3816 + $0x90] sm:$0xff] %vm330, %v3762
      %3836 = vst.msk [vmem:[%s3816 + $0x98] sm:$0xff] %vm330, %v3765
      %3837 = vst.msk [vmem:[%s3816 + $0xa0] sm:$0xff] %vm330, %v3770
      %3838 = vst.msk [vmem:[%s3816 + $0xa8] sm:$0xff] %vm330, %v3773
      %3839 = vst.msk [vmem:[%s3816 + $0xb0] sm:$0xff] %vm330, %v3778
      %3840 = vst.msk [vmem:[%s3816 + $0xb8] sm:$0xff] %vm330, %v3781
      %3841 = vst.msk [vmem:[%s3816 + $0xc0] sm:$0xff] %vm330, %v3786
      %3842 = vst.msk [vmem:[%s3816 + $0xc8] sm:$0xff] %vm330, %v3789
      %3843 = vst.msk [vmem:[%s3816 + $0xd0] sm:$0xff] %vm330, %v3794
      %3844 = vst.msk [vmem:[%s3816 + $0xd8] sm:$0xff] %vm330, %v3797
      %3845 = vst.msk [vmem:[%s3816 + $0xe0] sm:$0xff] %vm330, %v3802
      %3846 = vst.msk [vmem:[%s3816 + $0xe8] sm:$0xff] %vm330, %v3805
      %3847 = vst.msk [vmem:[%s3816 + $0xf0] sm:$0xff] %vm330, %v3810
      %3848 = vst.msk [vmem:[%s3816 + $0xf8] sm:$0xff] %vm330, %v3813
      %s3849 = smul.u32 16, %s19
      %p3850 = scmp.lt.s32.totalorder %s18, 1
      %s3851 = scalar_select %p3850, %s18, 1
      %p3852 = scmp.lt.s32.totalorder %s3849, 15
      %s3853 = scalar_select %p3852, %s3849, 15
      %s3854 = smul.addr %s3853, 2
      %s3855 = smul.addr %s3851, 128
      %s3856 = sadd.s32 %s3854, %s3855
      %s3857 = smul.addr %s3856, 8
      %s3858 = scalar_lea.vmem %s3, %s3857
      // Predicated region
      $region33: #{tpu_custom_call.1} parent=31 // pred_check
        %p3859 = pneg %p114
      $region34: #{tpu_custom_call.1} parent=31 // pred_check_branch
        %3861 = sbr.rel (%p3859) target = $region36
      $region35: #{tpu_custom_call.1} parent=31 // pred_region
        %s3862 = smul.u32 16, %s19
      $region36: #{tpu_custom_call.1} parent=31 // pred_fallthru
        _
    $region32: #{tpu_custom_call.1} parent=5 // pred_fallthru
      _
    %p3863 = scmp.le.s32.totalorder 2, %s9
    // Predicated region
    $region37: #{tpu_custom_call.1} parent=5 // pred_check
      %p3864 = pneg %p3863
    $region38: #{tpu_custom_call.1} parent=5 // pred_check_branch
      %3866 = sbr.rel (%p3864) target = $region40
    $region39: #{tpu_custom_call.1} parent=5 // pred_region
      %s3867 = ssub.s32 %s9, 2
      // Predicated region
      $region41: #{tpu_custom_call.1} parent=39 // pred_check
        %p3868 = pneg %p120
      $region42: #{tpu_custom_call.1} parent=39 // pred_check_branch
        %3870 = sbr.rel (%p3868) target = $region44
      $region43: #{tpu_custom_call.1} parent=39 // pred_region
        %s3871 = smul.u32 16, %s21
        %p3872 = scmp.lt.s32.totalorder %s20, 1
        %s3873 = scalar_select %p3872, %s20, 1
        %p3874 = scmp.lt.s32.totalorder %s3871, 15
        %s3875 = scalar_select %p3874, %s3871, 15
        %s3876 = smul.addr %s3875, 2
        %s3877 = smul.addr %s3873, 128
        %s3878 = sadd.s32 %s3876, %s3877
        %s3879 = smul.addr %s3878, 8
        %s3880 = scalar_lea.vmem %s3, %s3879
      $region44: #{tpu_custom_call.1} parent=39 // pred_fallthru
        _
    $region40: #{tpu_custom_call.1} parent=5 // pred_fallthru
      _
  $region6: #{tpu_custom_call.1} parent=0 // loop_footer
    %s13 = sadd.s32 1, %s9
  $region7: #{tpu_custom_call.1} parent=0 // loop_footer_branch
    %8 = sbr.rel target = $region3
  $region8: #{tpu_custom_call.1} parent=0 // loop_exit
    _

</llo_original>
